<compile_context>
chip_gen: v5e
topology: v5e:2x2
jax: 0.10.0
libtpu: 0.0.40
codegen_flags: <defaults>
</compile_context>

<pallas_src>
import functools

import jax
import jax.numpy as jnp
from jax.experimental import pallas as pl
from jax.experimental.pallas import tpu as pltpu

EPS = 1e-5
LANE = 128


def _round_up(x, m):
    return (x + m - 1) // m * m


# ------------------------- fused BasicBlock kernel --------------------------

def _make_block_kernel(s, Ho, Wo, Ci, Co, equal_in_out):
    """Builds the fused BasicBlock kernel body (one image per grid step).

    Ref layout:
      x_ref   : (s*s, Ho, Wo, Ci) bf16   phase-split input image
      sc/sh   : (1, C) f32               folded BN (eval) scale / shift
      w1_ref  : (9, Ci, Co) bf16         conv1 taps, t = ki*3 + kj
      w2_ref  : (9, Co, Co) bf16         conv2 taps
      wsc_ref : (Ci, Co) bf16            1x1 shortcut (only if not equal_in_out)
      o_ref   : (1, Ho, Wo, Co) bf16
      pad1_ref: (s*s, Ho+2//s, Wo+2//s, Ci) f32 scratch (padded bn1+relu input)
      pad2_ref: (Ho+2, Wo+2, Co) f32 scratch (padded bn2+relu conv1 output)
    """
    M = Ho * Wo
    # per-phase placement offset of the valid samples inside the padded scratch
    offs = tuple(1 if p == 0 else 0 for p in range(s))

    def kernel(*refs):
        if equal_in_out:
            (x_ref, sc1_ref, sh1_ref, w1_ref, sc2_ref, sh2_ref, w2_ref,
             o_ref, pad1_ref, pad2_ref) = refs
            wsc_ref = None
        else:
            (x_ref, sc1_ref, sh1_ref, w1_ref, sc2_ref, sh2_ref, w2_ref, wsc_ref,
             o_ref, pad1_ref, pad2_ref) = refs

        # ---- stage 1: bn1 + relu (f32 math), written into zero-padded scratch.
        pad1_ref[...] = jnp.zeros_like(pad1_ref)
        for pi in range(s):
            for pj in range(s):
                v = x_ref[pi * s + pj].astype(jnp.float32)        # (Ho, Wo, Ci)
                v = jnp.maximum(v * sc1_ref[...] + sh1_ref[...], 0.0)
                pad1_ref[pi * s + pj,
                         offs[pi]:offs[pi] + Ho,
                         offs[pj]:offs[pj] + Wo, :] = v

        # ---- stage 2: conv1 = 9 shifted MXU matmuls (bf16 in, f32 accumulate).
        mid = jnp.zeros((M, Co), jnp.float32)
        for ki in range(3):
            for kj in range(3):
                ph = (ki % s) * s + (kj % s)
                r0, c0 = ki // s, kj // s
                patch = pad1_ref[ph, r0:r0 + Ho, c0:c0 + Wo, :]    # (Ho, Wo, Ci)
                mid = mid + jnp.dot(
                    patch.reshape(M, Ci).astype(jnp.bfloat16),
                    w1_ref[ki * 3 + kj],
                    preferred_element_type=jnp.float32)

        # ---- stage 3: bn2 + relu (f32), written into second padded scratch.
        pad2_ref[...] = jnp.zeros_like(pad2_ref)
        mid = jnp.maximum(mid * sc2_ref[...] + sh2_ref[...], 0.0)
        pad2_ref[1:Ho + 1, 1:Wo + 1, :] = mid.reshape(Ho, Wo, Co)
        # TODO(synk): dropout skipped (dropRate = 0.0 / inference); add a
        # pltpu.prng_random_bits mask here if a nonzero dropRate is needed.

        # ---- stage 4: conv2 (stride 1) + residual add, cast to bf16 output.
        acc = jnp.zeros((M, Co), jnp.float32)
        for ki in range(3):
            for kj in range(3):
                patch = pad2_ref[ki:ki + Ho, kj:kj + Wo, :]        # (Ho, Wo, Co)
                acc = acc + jnp.dot(
                    patch.reshape(M, Co).astype(jnp.bfloat16),
                    w2_ref[ki * 3 + kj],
                    preferred_element_type=jnp.float32)

        if equal_in_out:
            # identity shortcut: raw x (stride is necessarily 1 here)
            res = x_ref[0].astype(jnp.float32).reshape(M, Co)
        else:
            # 1x1 strided shortcut on bn1+relu(x): reuse the conv1 center tap.
            ph = (1 % s) * s + (1 % s)
            r0 = 1 // s
            cp = pad1_ref[ph, r0:r0 + Ho, r0:r0 + Wo, :]
            res = jnp.dot(cp.reshape(M, Ci).astype(jnp.bfloat16), wsc_ref[...],
                          preferred_element_type=jnp.float32)

        o_ref[0] = (acc + res).reshape(Ho, Wo, Co).astype(o_ref.dtype)

    return kernel


# ------------------------------- wrappers -----------------------------------

def _phase_split(x, s):
    """(N,H,W,C) -> (N*s*s, H//s, W//s, C).

    Phase p = pi*s + pj holds the samples of the 1-pixel zero-padded image at
    padded coords (s*i + pi, s*j + pj); the zero border is re-created inside the
    kernel, so only the valid samples are shipped (no 9x im2col blow-up)."""
    if s == 1:
        return x
    N, H, W, C = x.shape
    phases = []
    for pi in range(s):
        r0 = s - 1 if pi == 0 else pi - 1
        for pj in range(s):
            c0 = s - 1 if pj == 0 else pj - 1
            phases.append(x[:, r0::s, c0::s, :])
    xin = jnp.stack(phases, axis=1)                 # (N, s*s, H//s, W//s, C)
    return xin.reshape(N * s * s, H // s, W // s, C)


def fused_basic_block(x, scale1, shift1, w1, scale2, shift2, w2, wsc, stride):
    """One WideResNet BasicBlock as a single pallas_call.

    x: (N, H, W, Ci) bf16 with lane-padded channels. Returns (N, Ho, Wo, Co) bf16.
    """
    N, H, W, Ci = x.shape
    Co = w1.shape[-1]
    s = stride
    equal_in_out = wsc is None
    assert s in (1, 2) and H % s == 0 and W % s == 0
    assert not (equal_in_out and s != 1), "identity residual requires stride 1"
    Ho, Wo = H // s, W // s
    assert Ho % 8 == 0 and Wo % 8 == 0, "spatial dims must stay sublane-aligned"
    nph = s * s
    halo = 2 // s                      # extra scratch rows/cols beyond Ho/Wo
    Hp, Wp = Ho + halo, Wo + halo

    xin = _phase_split(x, s)
    kernel = _make_block_kernel(s, Ho, Wo, Ci, Co, equal_in_out)

    in_specs = [
        pl.BlockSpec((nph, Ho, Wo, Ci), lambda i: (i, 0, 0, 0)),
        pl.BlockSpec((1, Ci), lambda i: (0, 0)),
        pl.BlockSpec((1, Ci), lambda i: (0, 0)),
        pl.BlockSpec((9, Ci, Co), lambda i: (0, 0, 0)),
        pl.BlockSpec((1, Co), lambda i: (0, 0)),
        pl.BlockSpec((1, Co), lambda i: (0, 0)),
        pl.BlockSpec((9, Co, Co), lambda i: (0, 0, 0)),
    ]
    inputs = [xin, scale1, shift1, w1, scale2, shift2, w2]
    if not equal_in_out:
        in_specs.append(pl.BlockSpec((Ci, Co), lambda i: (0, 0)))
        inputs.append(wsc)

    # Advisory cost hint for the XLA scheduler around the custom call.
    flops = 2 * N * Ho * Wo * 9 * (Ci * Co + Co * Co)
    if not equal_in_out:
        flops += 2 * N * Ho * Wo * Ci * Co
    bytes_accessed = (
        (xin.size + w1.size + w2.size + N * Ho * Wo * Co) * 2
        + (scale1.size + shift1.size + scale2.size + shift2.size) * 4
        + (0 if equal_in_out else wsc.size * 2))

    return pl.pallas_call(
        kernel,
        out_shape=jax.ShapeDtypeStruct((N, Ho, Wo, Co), jnp.bfloat16),
        grid=(N,),
        in_specs=in_specs,
        out_specs=pl.BlockSpec((1, Ho, Wo, Co), lambda i: (i, 0, 0, 0)),
        scratch_shapes=[pltpu.VMEM((nph, Hp, Wp, Ci), jnp.float32),
                        pltpu.VMEM((Ho + 2, Wo + 2, Co), jnp.float32)],
        compiler_params=pltpu.CompilerParams(
            dimension_semantics=("parallel",),
            vmem_limit_bytes=32 * 1024 * 1024),
        cost_estimate=pl.CostEstimate(flops=flops, transcendentals=0,
                                      bytes_accessed=bytes_accessed),
    )(*inputs)


# -------------------------- parameter preprocessing --------------------------

def _fold_bn(p, prefix, cpad):
    """Inference BN -> (scale, shift), zero-padded to cpad, shape (1, cpad) f32."""
    scale = p[prefix + "_gamma"] / jnp.sqrt(p[prefix + "_var"] + EPS)
    shift = p[prefix + "_beta"] - p[prefix + "_mean"] * scale
    c = scale.shape[0]
    scale = jnp.pad(scale, (0, cpad - c)).reshape(1, cpad).astype(jnp.float32)
    shift = jnp.pad(shift, (0, cpad - c)).reshape(1, cpad).astype(jnp.float32)
    return scale, shift


def _prep_w3x3(w, ci_pad, co_pad):
    """PyTorch (Cout, Cin, 3, 3) -> (9, ci_pad, co_pad) bf16, tap t = kh*3+kw."""
    co, ci = w.shape[0], w.shape[1]
    wm = jnp.transpose(w, (2, 3, 1, 0)).reshape(9, ci, co)
    wm = jnp.pad(wm, ((0, 0), (0, ci_pad - ci), (0, co_pad - co)))
    return wm.astype(jnp.bfloat16)


def _prep_w1x1(w, ci_pad, co_pad):
    """PyTorch (Cout, Cin, 1, 1) -> (ci_pad, co_pad) bf16."""
    co, ci = w.shape[0], w.shape[1]
    wm = jnp.transpose(w[:, :, 0, 0], (1, 0))
    wm = jnp.pad(wm, ((0, ci_pad - ci), (0, co_pad - co)))
    return wm.astype(jnp.bfloat16)


def basic_block_forward(x, p, stride):
    """x: (N, H, W, ci_pad) bf16 NHWC; one fused pallas_call per BasicBlock."""
    cout, cin = p["conv1_w"].shape[0], p["conv1_w"].shape[1]
    ci_pad = _round_up(cin, LANE)
    co_pad = _round_up(cout, LANE)
    assert x.shape[-1] == ci_pad
    scale1, shift1 = _fold_bn(p, "bn1", ci_pad)
    scale2, shift2 = _fold_bn(p, "bn2", co_pad)
    w1 = _prep_w3x3(p["conv1_w"], ci_pad, co_pad)
    w2 = _prep_w3x3(p["conv2_w"], co_pad, co_pad)
    wsc = None if cin == cout else _prep_w1x1(p["shortcut_w"], ci_pad, co_pad)
    return fused_basic_block(x, scale1, shift1, w1, scale2, shift2, w2, wsc, stride)


def network_block_forward(x_nchw, params, stride):
    """NetworkBlock.forward. Input/output NCHW f32 to match PyTorch."""
    x = jnp.transpose(x_nchw, (0, 2, 3, 1))                  # NCHW -> NHWC
    cin = params[0]["conv1_w"].shape[1]
    ci_pad = _round_up(cin, LANE)
    x = jnp.pad(x, ((0, 0), (0, 0), (0, 0), (0, ci_pad - cin))).astype(jnp.bfloat16)
    for i, p in enumerate(params):
        x = basic_block_forward(x, p, stride if i == 0 else 1)
    cout = params[-1]["conv1_w"].shape[0]
    out = x[..., :cout].astype(jnp.float32)
    return jnp.transpose(out, (0, 3, 1, 2))                  # NHWC -> NCHW


# ----------------------------- parameter init --------------------------------

def init_network_block(key, nb_layers, in_planes, out_planes):
    params = []
    for i in range(nb_layers):
        cin = in_planes if i == 0 else out_planes
        cout = out_planes
        key, *ks = jax.random.split(key, 13)
        blk = {
            "bn1_gamma": jax.random.uniform(ks[0], (cin,), jnp.float32, 0.5, 1.5),
            "bn1_beta": 0.1 * jax.random.normal(ks[1], (cin,), jnp.float32),
            "bn1_mean": 0.1 * jax.random.normal(ks[2], (cin,), jnp.float32),
            "bn1_var": jax.random.uniform(ks[3], (cin,), jnp.float32, 0.5, 1.5),
            "conv1_w": jax.random.normal(ks[4], (cout, cin, 3, 3), jnp.float32)
                       * (2.0 / (9 * cin)) ** 0.5,
            "bn2_gamma": jax.random.uniform(ks[5], (cout,), jnp.float32, 0.5, 1.5),
            "bn2_beta": 0.1 * jax.random.normal(ks[6], (cout,), jnp.float32),
            "bn2_mean": 0.1 * jax.random.normal(ks[7], (cout,), jnp.float32),
            "bn2_var": jax.random.uniform(ks[8], (cout,), jnp.float32, 0.5, 1.5),
            "conv2_w": jax.random.normal(ks[9], (cout, cout, 3, 3), jnp.float32)
                       * (2.0 / (9 * cout)) ** 0.5,
        }
        if cin != cout:
            blk["shortcut_w"] = (jax.random.normal(ks[10], (cout, cin, 1, 1), jnp.float32)
                                 * (2.0 / cin) ** 0.5)
        params.append(blk)
    return params


# ------------------------ pure-JAX reference (check) -------------------------

def _ref_conv(x, w, stride, pad):
    return jax.lax.conv_general_dilated(
        x, jnp.transpose(w, (2, 3, 1, 0)),
        window_strides=(stride, stride), padding=[(pad, pad), (pad, pad)],
        dimension_numbers=("NHWC", "HWIO", "NHWC"))


def _ref_bn_relu(x, p, prefix):
    g, b = p[prefix + "_gamma"], p[prefix + "_beta"]
    m, v = p[prefix + "_mean"], p[prefix + "_var"]
    return jnp.maximum((x - m) / jnp.sqrt(v + EPS) * g + b, 0.0)


def ref_forward(x_nchw, params, stride):
    x = jnp.transpose(x_nchw, (0, 2, 3, 1))
    for i, p in enumerate(params):
        s = stride if i == 0 else 1
        cin, cout = x.shape[-1], p["conv1_w"].shape[0]
        bnr = _ref_bn_relu(x, p, "bn1")
        out = _ref_conv(bnr, p["conv1_w"], s, 1)
        out = _ref_bn_relu(out, p, "bn2")
        out = _ref_conv(out, p["conv2_w"], 1, 1)
        res = x if cin == cout else _ref_conv(bnr, p["shortcut_w"], s, 0)
        x = res + out
    return jnp.transpose(x, (0, 3, 1, 2))


# ---------------------------------- main -------------------------------------

if __name__ == "__main__":
    nb_layers, in_planes, out_planes, stride = 2, 4, 8, 2
    key = jax.random.PRNGKey(0)
    kx, kp = jax.random.split(key)
    x = jax.random.normal(kx, (2, in_planes, 16, 16), jnp.float32)   # NCHW
    params = init_network_block(kp, nb_layers, in_planes, out_planes)

    fwd = jax.jit(functools.partial(network_block_forward, stride=stride))
    out = jax.block_until_ready(fwd(x, params))

    ref = jax.block_until_ready(ref_forward(x, params, stride))
    assert out.shape == (2, out_planes, 8, 8), out.shape
    # Tolerance sized for the bf16-MXU / bf16-activation path (f32 reference).
    max_err = float(jnp.max(jnp.abs(out - ref)))
    assert jnp.allclose(out, ref, atol=5e-2, rtol=5e-2), max_err
    print("KERNEL_OK")
</pallas_src>

<mosaic_0001>
module attributes {stable_mosaic.version = 11 : i64} {
  func.func @kernel(%arg0: i32, %arg1: memref<4x8x8x128xbf16, #tpu.memory_space<vmem>>, %arg2: memref<1x128xf32, #tpu.memory_space<vmem>>, %arg3: memref<1x128xf32, #tpu.memory_space<vmem>>, %arg4: memref<9x128x128xbf16, #tpu.memory_space<vmem>>, %arg5: memref<1x128xf32, #tpu.memory_space<vmem>>, %arg6: memref<1x128xf32, #tpu.memory_space<vmem>>, %arg7: memref<9x128x128xbf16, #tpu.memory_space<vmem>>, %arg8: memref<128x128xbf16, #tpu.memory_space<vmem>>, %arg9: memref<1x8x8x128xbf16, #tpu.memory_space<vmem>>, %arg10: memref<4x9x9x128xf32, #tpu.memory_space<vmem>>, %arg11: memref<10x10x128xf32, #tpu.memory_space<vmem>>) attributes {dimension_semantics = [#tpu.dimension_semantics<parallel>], iteration_bounds = array<i64: 2>, scalar_prefetch = 0 : i64, scratch_operands = 2 : i64, tpu.core_type = #tpu.core_type<tc>, window_params = [{transform_indices = @transform_0, window_bounds = array<i64: 4, 8, 8, 128>}, {pipeline_mode = #tpu.pipeline_mode<synchronous>, transform_indices = @transform_1, window_bounds = array<i64: 1, 128>}, {pipeline_mode = #tpu.pipeline_mode<synchronous>, transform_indices = @transform_2, window_bounds = array<i64: 1, 128>}, {pipeline_mode = #tpu.pipeline_mode<synchronous>, transform_indices = @transform_3, window_bounds = array<i64: 9, 128, 128>}, {pipeline_mode = #tpu.pipeline_mode<synchronous>, transform_indices = @transform_4, window_bounds = array<i64: 1, 128>}, {pipeline_mode = #tpu.pipeline_mode<synchronous>, transform_indices = @transform_5, window_bounds = array<i64: 1, 128>}, {pipeline_mode = #tpu.pipeline_mode<synchronous>, transform_indices = @transform_6, window_bounds = array<i64: 9, 128, 128>}, {pipeline_mode = #tpu.pipeline_mode<synchronous>, transform_indices = @transform_7, window_bounds = array<i64: 128, 128>}, {transform_indices = @transform_8, window_bounds = array<i64: 1, 8, 8, 128>}]} {
    %cst = arith.constant 0.000000e+00 : f32
    %0 = vector.broadcast %cst : f32 to vector<4x9x9x128xf32>
    %c0 = arith.constant 0 : index
    %c0_0 = arith.constant 0 : index
    %c0_1 = arith.constant 0 : index
    %c0_2 = arith.constant 0 : index
    %1 = vector.load %arg10[%c0, %c0_0, %c0_1, %c0_2] : memref<4x9x9x128xf32, #tpu.memory_space<vmem>>, vector<4x9x9x128xf32>
    tpu.vector_store %arg10[%c0, %c0_0, %c0_1, %c0_2], %0 {strides = array<i32>} : memref<4x9x9x128xf32, #tpu.memory_space<vmem>>, vector<4x9x9x128xf32>,
    %c0_3 = arith.constant 0 : index
    %c0_4 = arith.constant 0 : index
    %c0_5 = arith.constant 0 : index
    %c0_6 = arith.constant 0 : index
    %2 = vector.load %arg1[%c0_3, %c0_4, %c0_5, %c0_6] : memref<4x8x8x128xbf16, #tpu.memory_space<vmem>>, vector<1x8x8x128xbf16>
    %3 = vector.shape_cast %2 : vector<1x8x8x128xbf16> to vector<8x8x128xbf16>
    %4 = arith.extf %3 : vector<8x8x128xbf16> to vector<8x8x128xf32>
    %c0_7 = arith.constant 0 : index
    %c0_8 = arith.constant 0 : index
    %5 = vector.load %arg2[%c0_7, %c0_8] : memref<1x128xf32, #tpu.memory_space<vmem>>, vector<1x128xf32>
    %6 = vector.shape_cast %5 : vector<1x128xf32> to vector<1x1x128xf32>
    %7 = vector.broadcast %6 : vector<1x1x128xf32> to vector<8x8x128xf32>
    %8 = arith.mulf %4, %7 : vector<8x8x128xf32>
    %c0_9 = arith.constant 0 : index
    %c0_10 = arith.constant 0 : index
    %9 = vector.load %arg3[%c0_9, %c0_10] : memref<1x128xf32, #tpu.memory_space<vmem>>, vector<1x128xf32>
    %10 = vector.shape_cast %9 : vector<1x128xf32> to vector<1x1x128xf32>
    %11 = vector.broadcast %10 : vector<1x1x128xf32> to vector<8x8x128xf32>
    %12 = arith.addf %8, %11 : vector<8x8x128xf32>
    %cst_11 = arith.constant 0.000000e+00 : f32
    %13 = vector.broadcast %cst_11 : f32 to vector<8x8x128xf32>
    %14 = arith.maximumf %12, %13 : vector<8x8x128xf32>
    %c0_12 = arith.constant 0 : index
    %c1 = arith.constant 1 : index
    %c1_13 = arith.constant 1 : index
    %c0_14 = arith.constant 0 : index
    %15 = vector.load %arg10[%c0_12, %c1, %c1_13, %c0_14] : memref<4x9x9x128xf32, #tpu.memory_space<vmem>>, vector<1x8x8x128xf32>
    %16 = vector.shape_cast %15 : vector<1x8x8x128xf32> to vector<8x8x128xf32>
    %17 = vector.shape_cast %14 : vector<8x8x128xf32> to vector<1x8x8x128xf32>
    tpu.vector_store %arg10[%c0_12, %c1, %c1_13, %c0_14], %17 {strides = array<i32>} : memref<4x9x9x128xf32, #tpu.memory_space<vmem>>, vector<1x8x8x128xf32>,
    %c1_15 = arith.constant 1 : index
    %c0_16 = arith.constant 0 : index
    %c0_17 = arith.constant 0 : index
    %c0_18 = arith.constant 0 : index
    %18 = vector.load %arg1[%c1_15, %c0_16, %c0_17, %c0_18] : memref<4x8x8x128xbf16, #tpu.memory_space<vmem>>, vector<1x8x8x128xbf16>
    %19 = vector.shape_cast %18 : vector<1x8x8x128xbf16> to vector<8x8x128xbf16>
    %20 = arith.extf %19 : vector<8x8x128xbf16> to vector<8x8x128xf32>
    %c0_19 = arith.constant 0 : index
    %c0_20 = arith.constant 0 : index
    %21 = vector.load %arg2[%c0_19, %c0_20] : memref<1x128xf32, #tpu.memory_space<vmem>>, vector<1x128xf32>
    %22 = vector.shape_cast %21 : vector<1x128xf32> to vector<1x1x128xf32>
    %23 = vector.broadcast %22 : vector<1x1x128xf32> to vector<8x8x128xf32>
    %24 = arith.mulf %20, %23 : vector<8x8x128xf32>
    %c0_21 = arith.constant 0 : index
    %c0_22 = arith.constant 0 : index
    %25 = vector.load %arg3[%c0_21, %c0_22] : memref<1x128xf32, #tpu.memory_space<vmem>>, vector<1x128xf32>
    %26 = vector.shape_cast %25 : vector<1x128xf32> to vector<1x1x128xf32>
    %27 = vector.broadcast %26 : vector<1x1x128xf32> to vector<8x8x128xf32>
    %28 = arith.addf %24, %27 : vector<8x8x128xf32>
    %cst_23 = arith.constant 0.000000e+00 : f32
    %29 = vector.broadcast %cst_23 : f32 to vector<8x8x128xf32>
    %30 = arith.maximumf %28, %29 : vector<8x8x128xf32>
    %c1_24 = arith.constant 1 : index
    %c1_25 = arith.constant 1 : index
    %c0_26 = arith.constant 0 : index
    %c0_27 = arith.constant 0 : index
    %31 = vector.load %arg10[%c1_24, %c1_25, %c0_26, %c0_27] : memref<4x9x9x128xf32, #tpu.memory_space<vmem>>, vector<1x8x8x128xf32>
    %32 = vector.shape_cast %31 : vector<1x8x8x128xf32> to vector<8x8x128xf32>
    %33 = vector.shape_cast %30 : vector<8x8x128xf32> to vector<1x8x8x128xf32>
    tpu.vector_store %arg10[%c1_24, %c1_25, %c0_26, %c0_27], %33 {strides = array<i32>} : memref<4x9x9x128xf32, #tpu.memory_space<vmem>>, vector<1x8x8x128xf32>,
    %c2 = arith.constant 2 : index
    %c0_28 = arith.constant 0 : index
    %c0_29 = arith.constant 0 : index
    %c0_30 = arith.constant 0 : index
    %34 = vector.load %arg1[%c2, %c0_28, %c0_29, %c0_30] : memref<4x8x8x128xbf16, #tpu.memory_space<vmem>>, vector<1x8x8x128xbf16>
    %35 = vector.shape_cast %34 : vector<1x8x8x128xbf16> to vector<8x8x128xbf16>
    %36 = arith.extf %35 : vector<8x8x128xbf16> to vector<8x8x128xf32>
    %c0_31 = arith.constant 0 : index
    %c0_32 = arith.constant 0 : index
    %37 = vector.load %arg2[%c0_31, %c0_32] : memref<1x128xf32, #tpu.memory_space<vmem>>, vector<1x128xf32>
    %38 = vector.shape_cast %37 : vector<1x128xf32> to vector<1x1x128xf32>
    %39 = vector.broadcast %38 : vector<1x1x128xf32> to vector<8x8x128xf32>
    %40 = arith.mulf %36, %39 : vector<8x8x128xf32>
    %c0_33 = arith.constant 0 : index
    %c0_34 = arith.constant 0 : index
    %41 = vector.load %arg3[%c0_33, %c0_34] : memref<1x128xf32, #tpu.memory_space<vmem>>, vector<1x128xf32>
    %42 = vector.shape_cast %41 : vector<1x128xf32> to vector<1x1x128xf32>
    %43 = vector.broadcast %42 : vector<1x1x128xf32> to vector<8x8x128xf32>
    %44 = arith.addf %40, %43 : vector<8x8x128xf32>
    %cst_35 = arith.constant 0.000000e+00 : f32
    %45 = vector.broadcast %cst_35 : f32 to vector<8x8x128xf32>
    %46 = arith.maximumf %44, %45 : vector<8x8x128xf32>
    %c2_36 = arith.constant 2 : index
    %c0_37 = arith.constant 0 : index
    %c1_38 = arith.constant 1 : index
    %c0_39 = arith.constant 0 : index
    %47 = vector.load %arg10[%c2_36, %c0_37, %c1_38, %c0_39] : memref<4x9x9x128xf32, #tpu.memory_space<vmem>>, vector<1x8x8x128xf32>
    %48 = vector.shape_cast %47 : vector<1x8x8x128xf32> to vector<8x8x128xf32>
    %49 = vector.shape_cast %46 : vector<8x8x128xf32> to vector<1x8x8x128xf32>
    tpu.vector_store %arg10[%c2_36, %c0_37, %c1_38, %c0_39], %49 {strides = array<i32>} : memref<4x9x9x128xf32, #tpu.memory_space<vmem>>, vector<1x8x8x128xf32>,
    %c3 = arith.constant 3 : index
    %c0_40 = arith.constant 0 : index
    %c0_41 = arith.constant 0 : index
    %c0_42 = arith.constant 0 : index
    %50 = vector.load %arg1[%c3, %c0_40, %c0_41, %c0_42] : memref<4x8x8x128xbf16, #tpu.memory_space<vmem>>, vector<1x8x8x128xbf16>
    %51 = vector.shape_cast %50 : vector<1x8x8x128xbf16> to vector<8x8x128xbf16>
    %52 = arith.extf %51 : vector<8x8x128xbf16> to vector<8x8x128xf32>
    %c0_43 = arith.constant 0 : index
    %c0_44 = arith.constant 0 : index
    %53 = vector.load %arg2[%c0_43, %c0_44] : memref<1x128xf32, #tpu.memory_space<vmem>>, vector<1x128xf32>
    %54 = vector.shape_cast %53 : vector<1x128xf32> to vector<1x1x128xf32>
    %55 = vector.broadcast %54 : vector<1x1x128xf32> to vector<8x8x128xf32>
    %56 = arith.mulf %52, %55 : vector<8x8x128xf32>
    %c0_45 = arith.constant 0 : index
    %c0_46 = arith.constant 0 : index
    %57 = vector.load %arg3[%c0_45, %c0_46] : memref<1x128xf32, #tpu.memory_space<vmem>>, vector<1x128xf32>
    %58 = vector.shape_cast %57 : vector<1x128xf32> to vector<1x1x128xf32>
    %59 = vector.broadcast %58 : vector<1x1x128xf32> to vector<8x8x128xf32>
    %60 = arith.addf %56, %59 : vector<8x8x128xf32>
    %cst_47 = arith.constant 0.000000e+00 : f32
    %61 = vector.broadcast %cst_47 : f32 to vector<8x8x128xf32>
    %62 = arith.maximumf %60, %61 : vector<8x8x128xf32>
    %c3_48 = arith.constant 3 : index
    %c0_49 = arith.constant 0 : index
    %c0_50 = arith.constant 0 : index
    %c0_51 = arith.constant 0 : index
    %63 = vector.load %arg10[%c3_48, %c0_49, %c0_50, %c0_51] : memref<4x9x9x128xf32, #tpu.memory_space<vmem>>, vector<1x8x8x128xf32>
    %64 = vector.shape_cast %63 : vector<1x8x8x128xf32> to vector<8x8x128xf32>
    %65 = vector.shape_cast %62 : vector<8x8x128xf32> to vector<1x8x8x128xf32>
    tpu.vector_store %arg10[%c3_48, %c0_49, %c0_50, %c0_51], %65 {strides = array<i32>} : memref<4x9x9x128xf32, #tpu.memory_space<vmem>>, vector<1x8x8x128xf32>,
    %cst_52 = arith.constant 0.000000e+00 : f32
    %66 = vector.broadcast %cst_52 : f32 to vector<64x128xf32>
    %c0_53 = arith.constant 0 : index
    %c0_54 = arith.constant 0 : index
    %c0_55 = arith.constant 0 : index
    %c0_56 = arith.constant 0 : index
    %67 = vector.load %arg10[%c0_53, %c0_54, %c0_55, %c0_56] : memref<4x9x9x128xf32, #tpu.memory_space<vmem>>, vector<1x8x8x128xf32>
    %68 = vector.shape_cast %67 : vector<1x8x8x128xf32> to vector<8x8x128xf32>
    %69 = vector.shape_cast %68 : vector<8x8x128xf32> to vector<64x128xf32>
    %70 = arith.truncf %69 : vector<64x128xf32> to vector<64x128xbf16>
    %c0_57 = arith.constant 0 : index
    %c0_58 = arith.constant 0 : index
    %c0_59 = arith.constant 0 : index
    %71 = vector.load %arg4[%c0_57, %c0_58, %c0_59] : memref<9x128x128xbf16, #tpu.memory_space<vmem>>, vector<1x128x128xbf16>
    %72 = vector.shape_cast %71 : vector<1x128x128xbf16> to vector<128x128xbf16>
    %cst_60 = arith.constant dense<0.000000e+00> : vector<64x128xf32>
    %73 = tpu.matmul %70, %72, %cst_60 {dimension_numbers = #tpu.dot_dimension_numbers<[1], [0], [0], [1], [0, 0, 1, 1], [], []>} : vector<64x128xbf16>, vector<128x128xbf16>, vector<64x128xf32> -> vector<64x128xf32>
    %74 = arith.addf %66, %73 : vector<64x128xf32>
    %c1_61 = arith.constant 1 : index
    %c0_62 = arith.constant 0 : index
    %c0_63 = arith.constant 0 : index
    %c0_64 = arith.constant 0 : index
    %75 = vector.load %arg10[%c1_61, %c0_62, %c0_63, %c0_64] : memref<4x9x9x128xf32, #tpu.memory_space<vmem>>, vector<1x8x8x128xf32>
    %76 = vector.shape_cast %75 : vector<1x8x8x128xf32> to vector<8x8x128xf32>
    %77 = vector.shape_cast %76 : vector<8x8x128xf32> to vector<64x128xf32>
    %78 = arith.truncf %77 : vector<64x128xf32> to vector<64x128xbf16>
    %c1_65 = arith.constant 1 : index
    %c0_66 = arith.constant 0 : index
    %c0_67 = arith.constant 0 : index
    %79 = vector.load %arg4[%c1_65, %c0_66, %c0_67] : memref<9x128x128xbf16, #tpu.memory_space<vmem>>, vector<1x128x128xbf16>
    %80 = vector.shape_cast %79 : vector<1x128x128xbf16> to vector<128x128xbf16>
    %cst_68 = arith.constant dense<0.000000e+00> : vector<64x128xf32>
    %81 = tpu.matmul %78, %80, %cst_68 {dimension_numbers = #tpu.dot_dimension_numbers<[1], [0], [0], [1], [0, 0, 1, 1], [], []>} : vector<64x128xbf16>, vector<128x128xbf16>, vector<64x128xf32> -> vector<64x128xf32>
    %82 = arith.addf %74, %81 : vector<64x128xf32>
    %c0_69 = arith.constant 0 : index
    %c0_70 = arith.constant 0 : index
    %c1_71 = arith.constant 1 : index
    %c0_72 = arith.constant 0 : index
    %83 = vector.load %arg10[%c0_69, %c0_70, %c1_71, %c0_72] : memref<4x9x9x128xf32, #tpu.memory_space<vmem>>, vector<1x8x8x128xf32>
    %84 = vector.shape_cast %83 : vector<1x8x8x128xf32> to vector<8x8x128xf32>
    %85 = vector.shape_cast %84 : vector<8x8x128xf32> to vector<64x128xf32>
    %86 = arith.truncf %85 : vector<64x128xf32> to vector<64x128xbf16>
    %c2_73 = arith.constant 2 : index
    %c0_74 = arith.constant 0 : index
    %c0_75 = arith.constant 0 : index
    %87 = vector.load %arg4[%c2_73, %c0_74, %c0_75] : memref<9x128x128xbf16, #tpu.memory_space<vmem>>, vector<1x128x128xbf16>
    %88 = vector.shape_cast %87 : vector<1x128x128xbf16> to vector<128x128xbf16>
    %cst_76 = arith.constant dense<0.000000e+00> : vector<64x128xf32>
    %89 = tpu.matmul %86, %88, %cst_76 {dimension_numbers = #tpu.dot_dimension_numbers<[1], [0], [0], [1], [0, 0, 1, 1], [], []>} : vector<64x128xbf16>, vector<128x128xbf16>, vector<64x128xf32> -> vector<64x128xf32>
    %90 = arith.addf %82, %89 : vector<64x128xf32>
    %c2_77 = arith.constant 2 : index
    %c0_78 = arith.constant 0 : index
    %c0_79 = arith.constant 0 : index
    %c0_80 = arith.constant 0 : index
    %91 = vector.load %arg10[%c2_77, %c0_78, %c0_79, %c0_80] : memref<4x9x9x128xf32, #tpu.memory_space<vmem>>, vector<1x8x8x128xf32>
    %92 = vector.shape_cast %91 : vector<1x8x8x128xf32> to vector<8x8x128xf32>
    %93 = vector.shape_cast %92 : vector<8x8x128xf32> to vector<64x128xf32>
    %94 = arith.truncf %93 : vector<64x128xf32> to vector<64x128xbf16>
    %c3_81 = arith.constant 3 : index
    %c0_82 = arith.constant 0 : index
    %c0_83 = arith.constant 0 : index
    %95 = vector.load %arg4[%c3_81, %c0_82, %c0_83] : memref<9x128x128xbf16, #tpu.memory_space<vmem>>, vector<1x128x128xbf16>
    %96 = vector.shape_cast %95 : vector<1x128x128xbf16> to vector<128x128xbf16>
    %cst_84 = arith.constant dense<0.000000e+00> : vector<64x128xf32>
    %97 = tpu.matmul %94, %96, %cst_84 {dimension_numbers = #tpu.dot_dimension_numbers<[1], [0], [0], [1], [0, 0, 1, 1], [], []>} : vector<64x128xbf16>, vector<128x128xbf16>, vector<64x128xf32> -> vector<64x128xf32>
    %98 = arith.addf %90, %97 : vector<64x128xf32>
    %c3_85 = arith.constant 3 : index
    %c0_86 = arith.constant 0 : index
    %c0_87 = arith.constant 0 : index
    %c0_88 = arith.constant 0 : index
    %99 = vector.load %arg10[%c3_85, %c0_86, %c0_87, %c0_88] : memref<4x9x9x128xf32, #tpu.memory_space<vmem>>, vector<1x8x8x128xf32>
    %100 = vector.shape_cast %99 : vector<1x8x8x128xf32> to vector<8x8x128xf32>
    %101 = vector.shape_cast %100 : vector<8x8x128xf32> to vector<64x128xf32>
    %102 = arith.truncf %101 : vector<64x128xf32> to vector<64x128xbf16>
    %c4 = arith.constant 4 : index
    %c0_89 = arith.constant 0 : index
    %c0_90 = arith.constant 0 : index
    %103 = vector.load %arg4[%c4, %c0_89, %c0_90] : memref<9x128x128xbf16, #tpu.memory_space<vmem>>, vector<1x128x128xbf16>
    %104 = vector.shape_cast %103 : vector<1x128x128xbf16> to vector<128x128xbf16>
    %cst_91 = arith.constant dense<0.000000e+00> : vector<64x128xf32>
    %105 = tpu.matmul %102, %104, %cst_91 {dimension_numbers = #tpu.dot_dimension_numbers<[1], [0], [0], [1], [0, 0, 1, 1], [], []>} : vector<64x128xbf16>, vector<128x128xbf16>, vector<64x128xf32> -> vector<64x128xf32>
    %106 = arith.addf %98, %105 : vector<64x128xf32>
    %c2_92 = arith.constant 2 : index
    %c0_93 = arith.constant 0 : index
    %c1_94 = arith.constant 1 : index
    %c0_95 = arith.constant 0 : index
    %107 = vector.load %arg10[%c2_92, %c0_93, %c1_94, %c0_95] : memref<4x9x9x128xf32, #tpu.memory_space<vmem>>, vector<1x8x8x128xf32>
    %108 = vector.shape_cast %107 : vector<1x8x8x128xf32> to vector<8x8x128xf32>
    %109 = vector.shape_cast %108 : vector<8x8x128xf32> to vector<64x128xf32>
    %110 = arith.truncf %109 : vector<64x128xf32> to vector<64x128xbf16>
    %c5 = arith.constant 5 : index
    %c0_96 = arith.constant 0 : index
    %c0_97 = arith.constant 0 : index
    %111 = vector.load %arg4[%c5, %c0_96, %c0_97] : memref<9x128x128xbf16, #tpu.memory_space<vmem>>, vector<1x128x128xbf16>
    %112 = vector.shape_cast %111 : vector<1x128x128xbf16> to vector<128x128xbf16>
    %cst_98 = arith.constant dense<0.000000e+00> : vector<64x128xf32>
    %113 = tpu.matmul %110, %112, %cst_98 {dimension_numbers = #tpu.dot_dimension_numbers<[1], [0], [0], [1], [0, 0, 1, 1], [], []>} : vector<64x128xbf16>, vector<128x128xbf16>, vector<64x128xf32> -> vector<64x128xf32>
    %114 = arith.addf %106, %113 : vector<64x128xf32>
    %c0_99 = arith.constant 0 : index
    %c1_100 = arith.constant 1 : index
    %c0_101 = arith.constant 0 : index
    %c0_102 = arith.constant 0 : index
    %115 = vector.load %arg10[%c0_99, %c1_100, %c0_101, %c0_102] : memref<4x9x9x128xf32, #tpu.memory_space<vmem>>, vector<1x8x8x128xf32>
    %116 = vector.shape_cast %115 : vector<1x8x8x128xf32> to vector<8x8x128xf32>
    %117 = vector.shape_cast %116 : vector<8x8x128xf32> to vector<64x128xf32>
    %118 = arith.truncf %117 : vector<64x128xf32> to vector<64x128xbf16>
    %c6 = arith.constant 6 : index
    %c0_103 = arith.constant 0 : index
    %c0_104 = arith.constant 0 : index
    %119 = vector.load %arg4[%c6, %c0_103, %c0_104] : memref<9x128x128xbf16, #tpu.memory_space<vmem>>, vector<1x128x128xbf16>
    %120 = vector.shape_cast %119 : vector<1x128x128xbf16> to vector<128x128xbf16>
    %cst_105 = arith.constant dense<0.000000e+00> : vector<64x128xf32>
    %121 = tpu.matmul %118, %120, %cst_105 {dimension_numbers = #tpu.dot_dimension_numbers<[1], [0], [0], [1], [0, 0, 1, 1], [], []>} : vector<64x128xbf16>, vector<128x128xbf16>, vector<64x128xf32> -> vector<64x128xf32>
    %122 = arith.addf %114, %121 : vector<64x128xf32>
    %c1_106 = arith.constant 1 : index
    %c1_107 = arith.constant 1 : index
    %c0_108 = arith.constant 0 : index
    %c0_109 = arith.constant 0 : index
    %123 = vector.load %arg10[%c1_106, %c1_107, %c0_108, %c0_109] : memref<4x9x9x128xf32, #tpu.memory_space<vmem>>, vector<1x8x8x128xf32>
    %124 = vector.shape_cast %123 : vector<1x8x8x128xf32> to vector<8x8x128xf32>
    %125 = vector.shape_cast %124 : vector<8x8x128xf32> to vector<64x128xf32>
    %126 = arith.truncf %125 : vector<64x128xf32> to vector<64x128xbf16>
    %c7 = arith.constant 7 : index
    %c0_110 = arith.constant 0 : index
    %c0_111 = arith.constant 0 : index
    %127 = vector.load %arg4[%c7, %c0_110, %c0_111] : memref<9x128x128xbf16, #tpu.memory_space<vmem>>, vector<1x128x128xbf16>
    %128 = vector.shape_cast %127 : vector<1x128x128xbf16> to vector<128x128xbf16>
    %cst_112 = arith.constant dense<0.000000e+00> : vector<64x128xf32>
    %129 = tpu.matmul %126, %128, %cst_112 {dimension_numbers = #tpu.dot_dimension_numbers<[1], [0], [0], [1], [0, 0, 1, 1], [], []>} : vector<64x128xbf16>, vector<128x128xbf16>, vector<64x128xf32> -> vector<64x128xf32>
    %130 = arith.addf %122, %129 : vector<64x128xf32>
    %c0_113 = arith.constant 0 : index
    %c1_114 = arith.constant 1 : index
    %c1_115 = arith.constant 1 : index
    %c0_116 = arith.constant 0 : index
    %131 = vector.load %arg10[%c0_113, %c1_114, %c1_115, %c0_116] : memref<4x9x9x128xf32, #tpu.memory_space<vmem>>, vector<1x8x8x128xf32>
    %132 = vector.shape_cast %131 : vector<1x8x8x128xf32> to vector<8x8x128xf32>
    %133 = vector.shape_cast %132 : vector<8x8x128xf32> to vector<64x128xf32>
    %134 = arith.truncf %133 : vector<64x128xf32> to vector<64x128xbf16>
    %c8 = arith.constant 8 : index
    %c0_117 = arith.constant 0 : index
    %c0_118 = arith.constant 0 : index
    %135 = vector.load %arg4[%c8, %c0_117, %c0_118] : memref<9x128x128xbf16, #tpu.memory_space<vmem>>, vector<1x128x128xbf16>
    %136 = vector.shape_cast %135 : vector<1x128x128xbf16> to vector<128x128xbf16>
    %cst_119 = arith.constant dense<0.000000e+00> : vector<64x128xf32>
    %137 = tpu.matmul %134, %136, %cst_119 {dimension_numbers = #tpu.dot_dimension_numbers<[1], [0], [0], [1], [0, 0, 1, 1], [], []>} : vector<64x128xbf16>, vector<128x128xbf16>, vector<64x128xf32> -> vector<64x128xf32>
    %138 = arith.addf %130, %137 : vector<64x128xf32>
    %cst_120 = arith.constant 0.000000e+00 : f32
    %139 = vector.broadcast %cst_120 : f32 to vector<10x10x128xf32>
    %c0_121 = arith.constant 0 : index
    %c0_122 = arith.constant 0 : index
    %c0_123 = arith.constant 0 : index
    %140 = vector.load %arg11[%c0_121, %c0_122, %c0_123] : memref<10x10x128xf32, #tpu.memory_space<vmem>>, vector<10x10x128xf32>
    tpu.vector_store %arg11[%c0_121, %c0_122, %c0_123], %139 {strides = array<i32>} : memref<10x10x128xf32, #tpu.memory_space<vmem>>, vector<10x10x128xf32>,
    %c0_124 = arith.constant 0 : index
    %c0_125 = arith.constant 0 : index
    %141 = vector.load %arg5[%c0_124, %c0_125] : memref<1x128xf32, #tpu.memory_space<vmem>>, vector<1x128xf32>
    %142 = vector.broadcast %141 : vector<1x128xf32> to vector<64x128xf32>
    %143 = arith.mulf %138, %142 : vector<64x128xf32>
    %c0_126 = arith.constant 0 : index
    %c0_127 = arith.constant 0 : index
    %144 = vector.load %arg6[%c0_126, %c0_127] : memref<1x128xf32, #tpu.memory_space<vmem>>, vector<1x128xf32>
    %145 = vector.broadcast %144 : vector<1x128xf32> to vector<64x128xf32>
    %146 = arith.addf %143, %145 : vector<64x128xf32>
    %cst_128 = arith.constant 0.000000e+00 : f32
    %147 = vector.broadcast %cst_128 : f32 to vector<64x128xf32>
    %148 = arith.maximumf %146, %147 : vector<64x128xf32>
    %149 = vector.shape_cast %148 : vector<64x128xf32> to vector<8x8x128xf32>
    %c1_129 = arith.constant 1 : index
    %c1_130 = arith.constant 1 : index
    %c0_131 = arith.constant 0 : index
    %150 = vector.load %arg11[%c1_129, %c1_130, %c0_131] : memref<10x10x128xf32, #tpu.memory_space<vmem>>, vector<8x8x128xf32>
    tpu.vector_store %arg11[%c1_129, %c1_130, %c0_131], %149 {strides = array<i32>} : memref<10x10x128xf32, #tpu.memory_space<vmem>>, vector<8x8x128xf32>,
    %cst_132 = arith.constant 0.000000e+00 : f32
    %151 = vector.broadcast %cst_132 : f32 to vector<64x128xf32>
    %c0_133 = arith.constant 0 : index
    %c0_134 = arith.constant 0 : index
    %c0_135 = arith.constant 0 : index
    %152 = vector.load %arg11[%c0_133, %c0_134, %c0_135] : memref<10x10x128xf32, #tpu.memory_space<vmem>>, vector<8x8x128xf32>
    %153 = vector.shape_cast %152 : vector<8x8x128xf32> to vector<64x128xf32>
    %154 = arith.truncf %153 : vector<64x128xf32> to vector<64x128xbf16>
    %c0_136 = arith.constant 0 : index
    %c0_137 = arith.constant 0 : index
    %c0_138 = arith.constant 0 : index
    %155 = vector.load %arg7[%c0_136, %c0_137, %c0_138] : memref<9x128x128xbf16, #tpu.memory_space<vmem>>, vector<1x128x128xbf16>
    %156 = vector.shape_cast %155 : vector<1x128x128xbf16> to vector<128x128xbf16>
    %cst_139 = arith.constant dense<0.000000e+00> : vector<64x128xf32>
    %157 = tpu.matmul %154, %156, %cst_139 {dimension_numbers = #tpu.dot_dimension_numbers<[1], [0], [0], [1], [0, 0, 1, 1], [], []>} : vector<64x128xbf16>, vector<128x128xbf16>, vector<64x128xf32> -> vector<64x128xf32>
    %158 = arith.addf %151, %157 : vector<64x128xf32>
    %c0_140 = arith.constant 0 : index
    %c1_141 = arith.constant 1 : index
    %c0_142 = arith.constant 0 : index
    %159 = vector.load %arg11[%c0_140, %c1_141, %c0_142] : memref<10x10x128xf32, #tpu.memory_space<vmem>>, vector<8x8x128xf32>
    %160 = vector.shape_cast %159 : vector<8x8x128xf32> to vector<64x128xf32>
    %161 = arith.truncf %160 : vector<64x128xf32> to vector<64x128xbf16>
    %c1_143 = arith.constant 1 : index
    %c0_144 = arith.constant 0 : index
    %c0_145 = arith.constant 0 : index
    %162 = vector.load %arg7[%c1_143, %c0_144, %c0_145] : memref<9x128x128xbf16, #tpu.memory_space<vmem>>, vector<1x128x128xbf16>
    %163 = vector.shape_cast %162 : vector<1x128x128xbf16> to vector<128x128xbf16>
    %cst_146 = arith.constant dense<0.000000e+00> : vector<64x128xf32>
    %164 = tpu.matmul %161, %163, %cst_146 {dimension_numbers = #tpu.dot_dimension_numbers<[1], [0], [0], [1], [0, 0, 1, 1], [], []>} : vector<64x128xbf16>, vector<128x128xbf16>, vector<64x128xf32> -> vector<64x128xf32>
    %165 = arith.addf %158, %164 : vector<64x128xf32>
    %c0_147 = arith.constant 0 : index
    %c2_148 = arith.constant 2 : index
    %c0_149 = arith.constant 0 : index
    %166 = vector.load %arg11[%c0_147, %c2_148, %c0_149] : memref<10x10x128xf32, #tpu.memory_space<vmem>>, vector<8x8x128xf32>
    %167 = vector.shape_cast %166 : vector<8x8x128xf32> to vector<64x128xf32>
    %168 = arith.truncf %167 : vector<64x128xf32> to vector<64x128xbf16>
    %c2_150 = arith.constant 2 : index
    %c0_151 = arith.constant 0 : index
    %c0_152 = arith.constant 0 : index
    %169 = vector.load %arg7[%c2_150, %c0_151, %c0_152] : memref<9x128x128xbf16, #tpu.memory_space<vmem>>, vector<1x128x128xbf16>
    %170 = vector.shape_cast %169 : vector<1x128x128xbf16> to vector<128x128xbf16>
    %cst_153 = arith.constant dense<0.000000e+00> : vector<64x128xf32>
    %171 = tpu.matmul %168, %170, %cst_153 {dimension_numbers = #tpu.dot_dimension_numbers<[1], [0], [0], [1], [0, 0, 1, 1], [], []>} : vector<64x128xbf16>, vector<128x128xbf16>, vector<64x128xf32> -> vector<64x128xf32>
    %172 = arith.addf %165, %171 : vector<64x128xf32>
    %c1_154 = arith.constant 1 : index
    %c0_155 = arith.constant 0 : index
    %c0_156 = arith.constant 0 : index
    %173 = vector.load %arg11[%c1_154, %c0_155, %c0_156] : memref<10x10x128xf32, #tpu.memory_space<vmem>>, vector<8x8x128xf32>
    %174 = vector.shape_cast %173 : vector<8x8x128xf32> to vector<64x128xf32>
    %175 = arith.truncf %174 : vector<64x128xf32> to vector<64x128xbf16>
    %c3_157 = arith.constant 3 : index
    %c0_158 = arith.constant 0 : index
    %c0_159 = arith.constant 0 : index
    %176 = vector.load %arg7[%c3_157, %c0_158, %c0_159] : memref<9x128x128xbf16, #tpu.memory_space<vmem>>, vector<1x128x128xbf16>
    %177 = vector.shape_cast %176 : vector<1x128x128xbf16> to vector<128x128xbf16>
    %cst_160 = arith.constant dense<0.000000e+00> : vector<64x128xf32>
    %178 = tpu.matmul %175, %177, %cst_160 {dimension_numbers = #tpu.dot_dimension_numbers<[1], [0], [0], [1], [0, 0, 1, 1], [], []>} : vector<64x128xbf16>, vector<128x128xbf16>, vector<64x128xf32> -> vector<64x128xf32>
    %179 = arith.addf %172, %178 : vector<64x128xf32>
    %c1_161 = arith.constant 1 : index
    %c1_162 = arith.constant 1 : index
    %c0_163 = arith.constant 0 : index
    %180 = vector.load %arg11[%c1_161, %c1_162, %c0_163] : memref<10x10x128xf32, #tpu.memory_space<vmem>>, vector<8x8x128xf32>
    %181 = vector.shape_cast %180 : vector<8x8x128xf32> to vector<64x128xf32>
    %182 = arith.truncf %181 : vector<64x128xf32> to vector<64x128xbf16>
    %c4_164 = arith.constant 4 : index
    %c0_165 = arith.constant 0 : index
    %c0_166 = arith.constant 0 : index
    %183 = vector.load %arg7[%c4_164, %c0_165, %c0_166] : memref<9x128x128xbf16, #tpu.memory_space<vmem>>, vector<1x128x128xbf16>
    %184 = vector.shape_cast %183 : vector<1x128x128xbf16> to vector<128x128xbf16>
    %cst_167 = arith.constant dense<0.000000e+00> : vector<64x128xf32>
    %185 = tpu.matmul %182, %184, %cst_167 {dimension_numbers = #tpu.dot_dimension_numbers<[1], [0], [0], [1], [0, 0, 1, 1], [], []>} : vector<64x128xbf16>, vector<128x128xbf16>, vector<64x128xf32> -> vector<64x128xf32>
    %186 = arith.addf %179, %185 : vector<64x128xf32>
    %c1_168 = arith.constant 1 : index
    %c2_169 = arith.constant 2 : index
    %c0_170 = arith.constant 0 : index
    %187 = vector.load %arg11[%c1_168, %c2_169, %c0_170] : memref<10x10x128xf32, #tpu.memory_space<vmem>>, vector<8x8x128xf32>
    %188 = vector.shape_cast %187 : vector<8x8x128xf32> to vector<64x128xf32>
    %189 = arith.truncf %188 : vector<64x128xf32> to vector<64x128xbf16>
    %c5_171 = arith.constant 5 : index
    %c0_172 = arith.constant 0 : index
    %c0_173 = arith.constant 0 : index
    %190 = vector.load %arg7[%c5_171, %c0_172, %c0_173] : memref<9x128x128xbf16, #tpu.memory_space<vmem>>, vector<1x128x128xbf16>
    %191 = vector.shape_cast %190 : vector<1x128x128xbf16> to vector<128x128xbf16>
    %cst_174 = arith.constant dense<0.000000e+00> : vector<64x128xf32>
    %192 = tpu.matmul %189, %191, %cst_174 {dimension_numbers = #tpu.dot_dimension_numbers<[1], [0], [0], [1], [0, 0, 1, 1], [], []>} : vector<64x128xbf16>, vector<128x128xbf16>, vector<64x128xf32> -> vector<64x128xf32>
    %193 = arith.addf %186, %192 : vector<64x128xf32>
    %c2_175 = arith.constant 2 : index
    %c0_176 = arith.constant 0 : index
    %c0_177 = arith.constant 0 : index
    %194 = vector.load %arg11[%c2_175, %c0_176, %c0_177] : memref<10x10x128xf32, #tpu.memory_space<vmem>>, vector<8x8x128xf32>
    %195 = vector.shape_cast %194 : vector<8x8x128xf32> to vector<64x128xf32>
    %196 = arith.truncf %195 : vector<64x128xf32> to vector<64x128xbf16>
    %c6_178 = arith.constant 6 : index
    %c0_179 = arith.constant 0 : index
    %c0_180 = arith.constant 0 : index
    %197 = vector.load %arg7[%c6_178, %c0_179, %c0_180] : memref<9x128x128xbf16, #tpu.memory_space<vmem>>, vector<1x128x128xbf16>
    %198 = vector.shape_cast %197 : vector<1x128x128xbf16> to vector<128x128xbf16>
    %cst_181 = arith.constant dense<0.000000e+00> : vector<64x128xf32>
    %199 = tpu.matmul %196, %198, %cst_181 {dimension_numbers = #tpu.dot_dimension_numbers<[1], [0], [0], [1], [0, 0, 1, 1], [], []>} : vector<64x128xbf16>, vector<128x128xbf16>, vector<64x128xf32> -> vector<64x128xf32>
    %200 = arith.addf %193, %199 : vector<64x128xf32>
    %c2_182 = arith.constant 2 : index
    %c1_183 = arith.constant 1 : index
    %c0_184 = arith.constant 0 : index
    %201 = vector.load %arg11[%c2_182, %c1_183, %c0_184] : memref<10x10x128xf32, #tpu.memory_space<vmem>>, vector<8x8x128xf32>
    %202 = vector.shape_cast %201 : vector<8x8x128xf32> to vector<64x128xf32>
    %203 = arith.truncf %202 : vector<64x128xf32> to vector<64x128xbf16>
    %c7_185 = arith.constant 7 : index
    %c0_186 = arith.constant 0 : index
    %c0_187 = arith.constant 0 : index
    %204 = vector.load %arg7[%c7_185, %c0_186, %c0_187] : memref<9x128x128xbf16, #tpu.memory_space<vmem>>, vector<1x128x128xbf16>
    %205 = vector.shape_cast %204 : vector<1x128x128xbf16> to vector<128x128xbf16>
    %cst_188 = arith.constant dense<0.000000e+00> : vector<64x128xf32>
    %206 = tpu.matmul %203, %205, %cst_188 {dimension_numbers = #tpu.dot_dimension_numbers<[1], [0], [0], [1], [0, 0, 1, 1], [], []>} : vector<64x128xbf16>, vector<128x128xbf16>, vector<64x128xf32> -> vector<64x128xf32>
    %207 = arith.addf %200, %206 : vector<64x128xf32>
    %c2_189 = arith.constant 2 : index
    %c2_190 = arith.constant 2 : index
    %c0_191 = arith.constant 0 : index
    %208 = vector.load %arg11[%c2_189, %c2_190, %c0_191] : memref<10x10x128xf32, #tpu.memory_space<vmem>>, vector<8x8x128xf32>
    %209 = vector.shape_cast %208 : vector<8x8x128xf32> to vector<64x128xf32>
    %210 = arith.truncf %209 : vector<64x128xf32> to vector<64x128xbf16>
    %c8_192 = arith.constant 8 : index
    %c0_193 = arith.constant 0 : index
    %c0_194 = arith.constant 0 : index
    %211 = vector.load %arg7[%c8_192, %c0_193, %c0_194] : memref<9x128x128xbf16, #tpu.memory_space<vmem>>, vector<1x128x128xbf16>
    %212 = vector.shape_cast %211 : vector<1x128x128xbf16> to vector<128x128xbf16>
    %cst_195 = arith.constant dense<0.000000e+00> : vector<64x128xf32>
    %213 = tpu.matmul %210, %212, %cst_195 {dimension_numbers = #tpu.dot_dimension_numbers<[1], [0], [0], [1], [0, 0, 1, 1], [], []>} : vector<64x128xbf16>, vector<128x128xbf16>, vector<64x128xf32> -> vector<64x128xf32>
    %214 = arith.addf %207, %213 : vector<64x128xf32>
    %c3_196 = arith.constant 3 : index
    %c0_197 = arith.constant 0 : index
    %c0_198 = arith.constant 0 : index
    %c0_199 = arith.constant 0 : index
    %215 = vector.load %arg10[%c3_196, %c0_197, %c0_198, %c0_199] : memref<4x9x9x128xf32, #tpu.memory_space<vmem>>, vector<1x8x8x128xf32>
    %216 = vector.shape_cast %215 : vector<1x8x8x128xf32> to vector<8x8x128xf32>
    %217 = vector.shape_cast %216 : vector<8x8x128xf32> to vector<64x128xf32>
    %218 = arith.truncf %217 : vector<64x128xf32> to vector<64x128xbf16>
    %c0_200 = arith.constant 0 : index
    %c0_201 = arith.constant 0 : index
    %219 = vector.load %arg8[%c0_200, %c0_201] : memref<128x128xbf16, #tpu.memory_space<vmem>>, vector<128x128xbf16>
    %cst_202 = arith.constant dense<0.000000e+00> : vector<64x128xf32>
    %220 = tpu.matmul %218, %219, %cst_202 {dimension_numbers = #tpu.dot_dimension_numbers<[1], [0], [0], [1], [0, 0, 1, 1], [], []>} : vector<64x128xbf16>, vector<128x128xbf16>, vector<64x128xf32> -> vector<64x128xf32>
    %221 = arith.addf %214, %220 : vector<64x128xf32>
    %222 = vector.shape_cast %221 : vector<64x128xf32> to vector<8x8x128xf32>
    %223 = arith.truncf %222 : vector<8x8x128xf32> to vector<8x8x128xbf16>
    %c0_203 = arith.constant 0 : index
    %c0_204 = arith.constant 0 : index
    %c0_205 = arith.constant 0 : index
    %c0_206 = arith.constant 0 : index
    %224 = vector.load %arg9[%c0_203, %c0_204, %c0_205, %c0_206] : memref<1x8x8x128xbf16, #tpu.memory_space<vmem>>, vector<1x8x8x128xbf16>
    %225 = vector.shape_cast %224 : vector<1x8x8x128xbf16> to vector<8x8x128xbf16>
    %226 = vector.shape_cast %223 : vector<8x8x128xbf16> to vector<1x8x8x128xbf16>
    tpu.vector_store %arg9[%c0_203, %c0_204, %c0_205, %c0_206], %226 {strides = array<i32>} : memref<1x8x8x128xbf16, #tpu.memory_space<vmem>>, vector<1x8x8x128xbf16>,
    return
  }
  func.func @transform_0(%arg0: i32) -> (i32, i32, i32, i32) {
    %c0_i32 = arith.constant 0 : i32
    %c0_i32_0 = arith.constant 0 : i32
    %c0_i32_1 = arith.constant 0 : i32
    %c0_i32_2 = arith.constant 0 : i32
    return %arg0, %c0_i32, %c0_i32_0, %c0_i32_1 : i32, i32, i32, i32
  }
  func.func @transform_1(%arg0: i32) -> (i32, i32) {
    %c0_i32 = arith.constant 0 : i32
    %c0_i32_0 = arith.constant 0 : i32
    %c0_i32_1 = arith.constant 0 : i32
    return %c0_i32, %c0_i32_0 : i32, i32
  }
  func.func @transform_2(%arg0: i32) -> (i32, i32) {
    %c0_i32 = arith.constant 0 : i32
    %c0_i32_0 = arith.constant 0 : i32
    %c0_i32_1 = arith.constant 0 : i32
    return %c0_i32, %c0_i32_0 : i32, i32
  }
  func.func @transform_3(%arg0: i32) -> (i32, i32, i32) {
    %c0_i32 = arith.constant 0 : i32
    %c0_i32_0 = arith.constant 0 : i32
    %c0_i32_1 = arith.constant 0 : i32
    %c0_i32_2 = arith.constant 0 : i32
    return %c0_i32, %c0_i32_0, %c0_i32_1 : i32, i32, i32
  }
  func.func @transform_4(%arg0: i32) -> (i32, i32) {
    %c0_i32 = arith.constant 0 : i32
    %c0_i32_0 = arith.constant 0 : i32
    %c0_i32_1 = arith.constant 0 : i32
    return %c0_i32, %c0_i32_0 : i32, i32
  }
  func.func @transform_5(%arg0: i32) -> (i32, i32) {
    %c0_i32 = arith.constant 0 : i32
    %c0_i32_0 = arith.constant 0 : i32
    %c0_i32_1 = arith.constant 0 : i32
    return %c0_i32, %c0_i32_0 : i32, i32
  }
  func.func @transform_6(%arg0: i32) -> (i32, i32, i32) {
    %c0_i32 = arith.constant 0 : i32
    %c0_i32_0 = arith.constant 0 : i32
    %c0_i32_1 = arith.constant 0 : i32
    %c0_i32_2 = arith.constant 0 : i32
    return %c0_i32, %c0_i32_0, %c0_i32_1 : i32, i32, i32
  }
  func.func @transform_7(%arg0: i32) -> (i32, i32) {
    %c0_i32 = arith.constant 0 : i32
    %c0_i32_0 = arith.constant 0 : i32
    %c0_i32_1 = arith.constant 0 : i32
    return %c0_i32, %c0_i32_0 : i32, i32
  }
  func.func @transform_8(%arg0: i32) -> (i32, i32, i32, i32) {
    %c0_i32 = arith.constant 0 : i32
    %c0_i32_0 = arith.constant 0 : i32
    %c0_i32_1 = arith.constant 0 : i32
    %c0_i32_2 = arith.constant 0 : i32
    return %arg0, %c0_i32, %c0_i32_0, %c0_i32_1 : i32, i32, i32, i32
  }
}

module attributes {stable_mosaic.version = 11 : i64} {
  func.func @kernel(%arg0: i32, %arg1: memref<1x8x8x128xbf16, #tpu.memory_space<vmem>>, %arg2: memref<1x128xf32, #tpu.memory_space<vmem>>, %arg3: memref<1x128xf32, #tpu.memory_space<vmem>>, %arg4: memref<9x128x128xbf16, #tpu.memory_space<vmem>>, %arg5: memref<1x128xf32, #tpu.memory_space<vmem>>, %arg6: memref<1x128xf32, #tpu.memory_space<vmem>>, %arg7: memref<9x128x128xbf16, #tpu.memory_space<vmem>>, %arg8: memref<1x8x8x128xbf16, #tpu.memory_space<vmem>>, %arg9: memref<1x10x10x128xf32, #tpu.memory_space<vmem>>, %arg10: memref<10x10x128xf32, #tpu.memory_space<vmem>>) attributes {dimension_semantics = [#tpu.dimension_semantics<parallel>], iteration_bounds = array<i64: 2>, scalar_prefetch = 0 : i64, scratch_operands = 2 : i64, tpu.core_type = #tpu.core_type<tc>, window_params = [{transform_indices = @transform_0, window_bounds = array<i64: 1, 8, 8, 128>}, {pipeline_mode = #tpu.pipeline_mode<synchronous>, transform_indices = @transform_1, window_bounds = array<i64: 1, 128>}, {pipeline_mode = #tpu.pipeline_mode<synchronous>, transform_indices = @transform_2, window_bounds = array<i64: 1, 128>}, {pipeline_mode = #tpu.pipeline_mode<synchronous>, transform_indices = @transform_3, window_bounds = array<i64: 9, 128, 128>}, {pipeline_mode = #tpu.pipeline_mode<synchronous>, transform_indices = @transform_4, window_bounds = array<i64: 1, 128>}, {pipeline_mode = #tpu.pipeline_mode<synchronous>, transform_indices = @transform_5, window_bounds = array<i64: 1, 128>}, {pipeline_mode = #tpu.pipeline_mode<synchronous>, transform_indices = @transform_6, window_bounds = array<i64: 9, 128, 128>}, {transform_indices = @transform_7, window_bounds = array<i64: 1, 8, 8, 128>}]} {
    %cst = arith.constant 0.000000e+00 : f32
    %0 = vector.broadcast %cst : f32 to vector<1x10x10x128xf32>
    %c0 = arith.constant 0 : index
    %c0_0 = arith.constant 0 : index
    %c0_1 = arith.constant 0 : index
    %c0_2 = arith.constant 0 : index
    %1 = vector.load %arg9[%c0, %c0_0, %c0_1, %c0_2] : memref<1x10x10x128xf32, #tpu.memory_space<vmem>>, vector<1x10x10x128xf32>
    tpu.vector_store %arg9[%c0, %c0_0, %c0_1, %c0_2], %0 {strides = array<i32>} : memref<1x10x10x128xf32, #tpu.memory_space<vmem>>, vector<1x10x10x128xf32>,
    %c0_3 = arith.constant 0 : index
    %c0_4 = arith.constant 0 : index
    %c0_5 = arith.constant 0 : index
    %c0_6 = arith.constant 0 : index
    %2 = vector.load %arg1[%c0_3, %c0_4, %c0_5, %c0_6] : memref<1x8x8x128xbf16, #tpu.memory_space<vmem>>, vector<1x8x8x128xbf16>
    %3 = vector.shape_cast %2 : vector<1x8x8x128xbf16> to vector<8x8x128xbf16>
    %4 = arith.extf %3 : vector<8x8x128xbf16> to vector<8x8x128xf32>
    %c0_7 = arith.constant 0 : index
    %c0_8 = arith.constant 0 : index
    %5 = vector.load %arg2[%c0_7, %c0_8] : memref<1x128xf32, #tpu.memory_space<vmem>>, vector<1x128xf32>
    %6 = vector.shape_cast %5 : vector<1x128xf32> to vector<1x1x128xf32>
    %7 = vector.broadcast %6 : vector<1x1x128xf32> to vector<8x8x128xf32>
    %8 = arith.mulf %4, %7 : vector<8x8x128xf32>
    %c0_9 = arith.constant 0 : index
    %c0_10 = arith.constant 0 : index
    %9 = vector.load %arg3[%c0_9, %c0_10] : memref<1x128xf32, #tpu.memory_space<vmem>>, vector<1x128xf32>
    %10 = vector.shape_cast %9 : vector<1x128xf32> to vector<1x1x128xf32>
    %11 = vector.broadcast %10 : vector<1x1x128xf32> to vector<8x8x128xf32>
    %12 = arith.addf %8, %11 : vector<8x8x128xf32>
    %cst_11 = arith.constant 0.000000e+00 : f32
    %13 = vector.broadcast %cst_11 : f32 to vector<8x8x128xf32>
    %14 = arith.maximumf %12, %13 : vector<8x8x128xf32>
    %c0_12 = arith.constant 0 : index
    %c1 = arith.constant 1 : index
    %c1_13 = arith.constant 1 : index
    %c0_14 = arith.constant 0 : index
    %15 = vector.load %arg9[%c0_12, %c1, %c1_13, %c0_14] : memref<1x10x10x128xf32, #tpu.memory_space<vmem>>, vector<1x8x8x128xf32>
    %16 = vector.shape_cast %15 : vector<1x8x8x128xf32> to vector<8x8x128xf32>
    %17 = vector.shape_cast %14 : vector<8x8x128xf32> to vector<1x8x8x128xf32>
    tpu.vector_store %arg9[%c0_12, %c1, %c1_13, %c0_14], %17 {strides = array<i32>} : memref<1x10x10x128xf32, #tpu.memory_space<vmem>>, vector<1x8x8x128xf32>,
    %cst_15 = arith.constant 0.000000e+00 : f32
    %18 = vector.broadcast %cst_15 : f32 to vector<64x128xf32>
    %c0_16 = arith.constant 0 : index
    %c0_17 = arith.constant 0 : index
    %c0_18 = arith.constant 0 : index
    %c0_19 = arith.constant 0 : index
    %19 = vector.load %arg9[%c0_16, %c0_17, %c0_18, %c0_19] : memref<1x10x10x128xf32, #tpu.memory_space<vmem>>, vector<1x8x8x128xf32>
    %20 = vector.shape_cast %19 : vector<1x8x8x128xf32> to vector<8x8x128xf32>
    %21 = vector.shape_cast %20 : vector<8x8x128xf32> to vector<64x128xf32>
    %22 = arith.truncf %21 : vector<64x128xf32> to vector<64x128xbf16>
    %c0_20 = arith.constant 0 : index
    %c0_21 = arith.constant 0 : index
    %c0_22 = arith.constant 0 : index
    %23 = vector.load %arg4[%c0_20, %c0_21, %c0_22] : memref<9x128x128xbf16, #tpu.memory_space<vmem>>, vector<1x128x128xbf16>
    %24 = vector.shape_cast %23 : vector<1x128x128xbf16> to vector<128x128xbf16>
    %cst_23 = arith.constant dense<0.000000e+00> : vector<64x128xf32>
    %25 = tpu.matmul %22, %24, %cst_23 {dimension_numbers = #tpu.dot_dimension_numbers<[1], [0], [0], [1], [0, 0, 1, 1], [], []>} : vector<64x128xbf16>, vector<128x128xbf16>, vector<64x128xf32> -> vector<64x128xf32>
    %26 = arith.addf %18, %25 : vector<64x128xf32>
    %c0_24 = arith.constant 0 : index
    %c0_25 = arith.constant 0 : index
    %c1_26 = arith.constant 1 : index
    %c0_27 = arith.constant 0 : index
    %27 = vector.load %arg9[%c0_24, %c0_25, %c1_26, %c0_27] : memref<1x10x10x128xf32, #tpu.memory_space<vmem>>, vector<1x8x8x128xf32>
    %28 = vector.shape_cast %27 : vector<1x8x8x128xf32> to vector<8x8x128xf32>
    %29 = vector.shape_cast %28 : vector<8x8x128xf32> to vector<64x128xf32>
    %30 = arith.truncf %29 : vector<64x128xf32> to vector<64x128xbf16>
    %c1_28 = arith.constant 1 : index
    %c0_29 = arith.constant 0 : index
    %c0_30 = arith.constant 0 : index
    %31 = vector.load %arg4[%c1_28, %c0_29, %c0_30] : memref<9x128x128xbf16, #tpu.memory_space<vmem>>, vector<1x128x128xbf16>
    %32 = vector.shape_cast %31 : vector<1x128x128xbf16> to vector<128x128xbf16>
    %cst_31 = arith.constant dense<0.000000e+00> : vector<64x128xf32>
    %33 = tpu.matmul %30, %32, %cst_31 {dimension_numbers = #tpu.dot_dimension_numbers<[1], [0], [0], [1], [0, 0, 1, 1], [], []>} : vector<64x128xbf16>, vector<128x128xbf16>, vector<64x128xf32> -> vector<64x128xf32>
    %34 = arith.addf %26, %33 : vector<64x128xf32>
    %c0_32 = arith.constant 0 : index
    %c0_33 = arith.constant 0 : index
    %c2 = arith.constant 2 : index
    %c0_34 = arith.constant 0 : index
    %35 = vector.load %arg9[%c0_32, %c0_33, %c2, %c0_34] : memref<1x10x10x128xf32, #tpu.memory_space<vmem>>, vector<1x8x8x128xf32>
    %36 = vector.shape_cast %35 : vector<1x8x8x128xf32> to vector<8x8x128xf32>
    %37 = vector.shape_cast %36 : vector<8x8x128xf32> to vector<64x128xf32>
    %38 = arith.truncf %37 : vector<64x128xf32> to vector<64x128xbf16>
    %c2_35 = arith.constant 2 : index
    %c0_36 = arith.constant 0 : index
    %c0_37 = arith.constant 0 : index
    %39 = vector.load %arg4[%c2_35, %c0_36, %c0_37] : memref<9x128x128xbf16, #tpu.memory_space<vmem>>, vector<1x128x128xbf16>
    %40 = vector.shape_cast %39 : vector<1x128x128xbf16> to vector<128x128xbf16>
    %cst_38 = arith.constant dense<0.000000e+00> : vector<64x128xf32>
    %41 = tpu.matmul %38, %40, %cst_38 {dimension_numbers = #tpu.dot_dimension_numbers<[1], [0], [0], [1], [0, 0, 1, 1], [], []>} : vector<64x128xbf16>, vector<128x128xbf16>, vector<64x128xf32> -> vector<64x128xf32>
    %42 = arith.addf %34, %41 : vector<64x128xf32>
    %c0_39 = arith.constant 0 : index
    %c1_40 = arith.constant 1 : index
    %c0_41 = arith.constant 0 : index
    %c0_42 = arith.constant 0 : index
    %43 = vector.load %arg9[%c0_39, %c1_40, %c0_41, %c0_42] : memref<1x10x10x128xf32, #tpu.memory_space<vmem>>, vector<1x8x8x128xf32>
    %44 = vector.shape_cast %43 : vector<1x8x8x128xf32> to vector<8x8x128xf32>
    %45 = vector.shape_cast %44 : vector<8x8x128xf32> to vector<64x128xf32>
    %46 = arith.truncf %45 : vector<64x128xf32> to vector<64x128xbf16>
    %c3 = arith.constant 3 : index
    %c0_43 = arith.constant 0 : index
    %c0_44 = arith.constant 0 : index
    %47 = vector.load %arg4[%c3, %c0_43, %c0_44] : memref<9x128x128xbf16, #tpu.memory_space<vmem>>, vector<1x128x128xbf16>
    %48 = vector.shape_cast %47 : vector<1x128x128xbf16> to vector<128x128xbf16>
    %cst_45 = arith.constant dense<0.000000e+00> : vector<64x128xf32>
    %49 = tpu.matmul %46, %48, %cst_45 {dimension_numbers = #tpu.dot_dimension_numbers<[1], [0], [0], [1], [0, 0, 1, 1], [], []>} : vector<64x128xbf16>, vector<128x128xbf16>, vector<64x128xf32> -> vector<64x128xf32>
    %50 = arith.addf %42, %49 : vector<64x128xf32>
    %c0_46 = arith.constant 0 : index
    %c1_47 = arith.constant 1 : index
    %c1_48 = arith.constant 1 : index
    %c0_49 = arith.constant 0 : index
    %51 = vector.load %arg9[%c0_46, %c1_47, %c1_48, %c0_49] : memref<1x10x10x128xf32, #tpu.memory_space<vmem>>, vector<1x8x8x128xf32>
    %52 = vector.shape_cast %51 : vector<1x8x8x128xf32> to vector<8x8x128xf32>
    %53 = vector.shape_cast %52 : vector<8x8x128xf32> to vector<64x128xf32>
    %54 = arith.truncf %53 : vector<64x128xf32> to vector<64x128xbf16>
    %c4 = arith.constant 4 : index
    %c0_50 = arith.constant 0 : index
    %c0_51 = arith.constant 0 : index
    %55 = vector.load %arg4[%c4, %c0_50, %c0_51] : memref<9x128x128xbf16, #tpu.memory_space<vmem>>, vector<1x128x128xbf16>
    %56 = vector.shape_cast %55 : vector<1x128x128xbf16> to vector<128x128xbf16>
    %cst_52 = arith.constant dense<0.000000e+00> : vector<64x128xf32>
    %57 = tpu.matmul %54, %56, %cst_52 {dimension_numbers = #tpu.dot_dimension_numbers<[1], [0], [0], [1], [0, 0, 1, 1], [], []>} : vector<64x128xbf16>, vector<128x128xbf16>, vector<64x128xf32> -> vector<64x128xf32>
    %58 = arith.addf %50, %57 : vector<64x128xf32>
    %c0_53 = arith.constant 0 : index
    %c1_54 = arith.constant 1 : index
    %c2_55 = arith.constant 2 : index
    %c0_56 = arith.constant 0 : index
    %59 = vector.load %arg9[%c0_53, %c1_54, %c2_55, %c0_56] : memref<1x10x10x128xf32, #tpu.memory_space<vmem>>, vector<1x8x8x128xf32>
    %60 = vector.shape_cast %59 : vector<1x8x8x128xf32> to vector<8x8x128xf32>
    %61 = vector.shape_cast %60 : vector<8x8x128xf32> to vector<64x128xf32>
    %62 = arith.truncf %61 : vector<64x128xf32> to vector<64x128xbf16>
    %c5 = arith.constant 5 : index
    %c0_57 = arith.constant 0 : index
    %c0_58 = arith.constant 0 : index
    %63 = vector.load %arg4[%c5, %c0_57, %c0_58] : memref<9x128x128xbf16, #tpu.memory_space<vmem>>, vector<1x128x128xbf16>
    %64 = vector.shape_cast %63 : vector<1x128x128xbf16> to vector<128x128xbf16>
    %cst_59 = arith.constant dense<0.000000e+00> : vector<64x128xf32>
    %65 = tpu.matmul %62, %64, %cst_59 {dimension_numbers = #tpu.dot_dimension_numbers<[1], [0], [0], [1], [0, 0, 1, 1], [], []>} : vector<64x128xbf16>, vector<128x128xbf16>, vector<64x128xf32> -> vector<64x128xf32>
    %66 = arith.addf %58, %65 : vector<64x128xf32>
    %c0_60 = arith.constant 0 : index
    %c2_61 = arith.constant 2 : index
    %c0_62 = arith.constant 0 : index
    %c0_63 = arith.constant 0 : index
    %67 = vector.load %arg9[%c0_60, %c2_61, %c0_62, %c0_63] : memref<1x10x10x128xf32, #tpu.memory_space<vmem>>, vector<1x8x8x128xf32>
    %68 = vector.shape_cast %67 : vector<1x8x8x128xf32> to vector<8x8x128xf32>
    %69 = vector.shape_cast %68 : vector<8x8x128xf32> to vector<64x128xf32>
    %70 = arith.truncf %69 : vector<64x128xf32> to vector<64x128xbf16>
    %c6 = arith.constant 6 : index
    %c0_64 = arith.constant 0 : index
    %c0_65 = arith.constant 0 : index
    %71 = vector.load %arg4[%c6, %c0_64, %c0_65] : memref<9x128x128xbf16, #tpu.memory_space<vmem>>, vector<1x128x128xbf16>
    %72 = vector.shape_cast %71 : vector<1x128x128xbf16> to vector<128x128xbf16>
    %cst_66 = arith.constant dense<0.000000e+00> : vector<64x128xf32>
    %73 = tpu.matmul %70, %72, %cst_66 {dimension_numbers = #tpu.dot_dimension_numbers<[1], [0], [0], [1], [0, 0, 1, 1], [], []>} : vector<64x128xbf16>, vector<128x128xbf16>, vector<64x128xf32> -> vector<64x128xf32>
    %74 = arith.addf %66, %73 : vector<64x128xf32>
    %c0_67 = arith.constant 0 : index
    %c2_68 = arith.constant 2 : index
    %c1_69 = arith.constant 1 : index
    %c0_70 = arith.constant 0 : index
    %75 = vector.load %arg9[%c0_67, %c2_68, %c1_69, %c0_70] : memref<1x10x10x128xf32, #tpu.memory_space<vmem>>, vector<1x8x8x128xf32>
    %76 = vector.shape_cast %75 : vector<1x8x8x128xf32> to vector<8x8x128xf32>
    %77 = vector.shape_cast %76 : vector<8x8x128xf32> to vector<64x128xf32>
    %78 = arith.truncf %77 : vector<64x128xf32> to vector<64x128xbf16>
    %c7 = arith.constant 7 : index
    %c0_71 = arith.constant 0 : index
    %c0_72 = arith.constant 0 : index
    %79 = vector.load %arg4[%c7, %c0_71, %c0_72] : memref<9x128x128xbf16, #tpu.memory_space<vmem>>, vector<1x128x128xbf16>
    %80 = vector.shape_cast %79 : vector<1x128x128xbf16> to vector<128x128xbf16>
    %cst_73 = arith.constant dense<0.000000e+00> : vector<64x128xf32>
    %81 = tpu.matmul %78, %80, %cst_73 {dimension_numbers = #tpu.dot_dimension_numbers<[1], [0], [0], [1], [0, 0, 1, 1], [], []>} : vector<64x128xbf16>, vector<128x128xbf16>, vector<64x128xf32> -> vector<64x128xf32>
    %82 = arith.addf %74, %81 : vector<64x128xf32>
    %c0_74 = arith.constant 0 : index
    %c2_75 = arith.constant 2 : index
    %c2_76 = arith.constant 2 : index
    %c0_77 = arith.constant 0 : index
    %83 = vector.load %arg9[%c0_74, %c2_75, %c2_76, %c0_77] : memref<1x10x10x128xf32, #tpu.memory_space<vmem>>, vector<1x8x8x128xf32>
    %84 = vector.shape_cast %83 : vector<1x8x8x128xf32> to vector<8x8x128xf32>
    %85 = vector.shape_cast %84 : vector<8x8x128xf32> to vector<64x128xf32>
    %86 = arith.truncf %85 : vector<64x128xf32> to vector<64x128xbf16>
    %c8 = arith.constant 8 : index
    %c0_78 = arith.constant 0 : index
    %c0_79 = arith.constant 0 : index
    %87 = vector.load %arg4[%c8, %c0_78, %c0_79] : memref<9x128x128xbf16, #tpu.memory_space<vmem>>, vector<1x128x128xbf16>
    %88 = vector.shape_cast %87 : vector<1x128x128xbf16> to vector<128x128xbf16>
    %cst_80 = arith.constant dense<0.000000e+00> : vector<64x128xf32>
    %89 = tpu.matmul %86, %88, %cst_80 {dimension_numbers = #tpu.dot_dimension_numbers<[1], [0], [0], [1], [0, 0, 1, 1], [], []>} : vector<64x128xbf16>, vector<128x128xbf16>, vector<64x128xf32> -> vector<64x128xf32>
    %90 = arith.addf %82, %89 : vector<64x128xf32>
    %cst_81 = arith.constant 0.000000e+00 : f32
    %91 = vector.broadcast %cst_81 : f32 to vector<10x10x128xf32>
    %c0_82 = arith.constant 0 : index
    %c0_83 = arith.constant 0 : index
    %c0_84 = arith.constant 0 : index
    %92 = vector.load %arg10[%c0_82, %c0_83, %c0_84] : memref<10x10x128xf32, #tpu.memory_space<vmem>>, vector<10x10x128xf32>
    tpu.vector_store %arg10[%c0_82, %c0_83, %c0_84], %91 {strides = array<i32>} : memref<10x10x128xf32, #tpu.memory_space<vmem>>, vector<10x10x128xf32>,
    %c0_85 = arith.constant 0 : index
    %c0_86 = arith.constant 0 : index
    %93 = vector.load %arg5[%c0_85, %c0_86] : memref<1x128xf32, #tpu.memory_space<vmem>>, vector<1x128xf32>
    %94 = vector.broadcast %93 : vector<1x128xf32> to vector<64x128xf32>
    %95 = arith.mulf %90, %94 : vector<64x128xf32>
    %c0_87 = arith.constant 0 : index
    %c0_88 = arith.constant 0 : index
    %96 = vector.load %arg6[%c0_87, %c0_88] : memref<1x128xf32, #tpu.memory_space<vmem>>, vector<1x128xf32>
    %97 = vector.broadcast %96 : vector<1x128xf32> to vector<64x128xf32>
    %98 = arith.addf %95, %97 : vector<64x128xf32>
    %cst_89 = arith.constant 0.000000e+00 : f32
    %99 = vector.broadcast %cst_89 : f32 to vector<64x128xf32>
    %100 = arith.maximumf %98, %99 : vector<64x128xf32>
    %101 = vector.shape_cast %100 : vector<64x128xf32> to vector<8x8x128xf32>
    %c1_90 = arith.constant 1 : index
    %c1_91 = arith.constant 1 : index
    %c0_92 = arith.constant 0 : index
    %102 = vector.load %arg10[%c1_90, %c1_91, %c0_92] : memref<10x10x128xf32, #tpu.memory_space<vmem>>, vector<8x8x128xf32>
    tpu.vector_store %arg10[%c1_90, %c1_91, %c0_92], %101 {strides = array<i32>} : memref<10x10x128xf32, #tpu.memory_space<vmem>>, vector<8x8x128xf32>,
    %cst_93 = arith.constant 0.000000e+00 : f32
    %103 = vector.broadcast %cst_93 : f32 to vector<64x128xf32>
    %c0_94 = arith.constant 0 : index
    %c0_95 = arith.constant 0 : index
    %c0_96 = arith.constant 0 : index
    %104 = vector.load %arg10[%c0_94, %c0_95, %c0_96] : memref<10x10x128xf32, #tpu.memory_space<vmem>>, vector<8x8x128xf32>
    %105 = vector.shape_cast %104 : vector<8x8x128xf32> to vector<64x128xf32>
    %106 = arith.truncf %105 : vector<64x128xf32> to vector<64x128xbf16>
    %c0_97 = arith.constant 0 : index
    %c0_98 = arith.constant 0 : index
    %c0_99 = arith.constant 0 : index
    %107 = vector.load %arg7[%c0_97, %c0_98, %c0_99] : memref<9x128x128xbf16, #tpu.memory_space<vmem>>, vector<1x128x128xbf16>
    %108 = vector.shape_cast %107 : vector<1x128x128xbf16> to vector<128x128xbf16>
    %cst_100 = arith.constant dense<0.000000e+00> : vector<64x128xf32>
    %109 = tpu.matmul %106, %108, %cst_100 {dimension_numbers = #tpu.dot_dimension_numbers<[1], [0], [0], [1], [0, 0, 1, 1], [], []>} : vector<64x128xbf16>, vector<128x128xbf16>, vector<64x128xf32> -> vector<64x128xf32>
    %110 = arith.addf %103, %109 : vector<64x128xf32>
    %c0_101 = arith.constant 0 : index
    %c1_102 = arith.constant 1 : index
    %c0_103 = arith.constant 0 : index
    %111 = vector.load %arg10[%c0_101, %c1_102, %c0_103] : memref<10x10x128xf32, #tpu.memory_space<vmem>>, vector<8x8x128xf32>
    %112 = vector.shape_cast %111 : vector<8x8x128xf32> to vector<64x128xf32>
    %113 = arith.truncf %112 : vector<64x128xf32> to vector<64x128xbf16>
    %c1_104 = arith.constant 1 : index
    %c0_105 = arith.constant 0 : index
    %c0_106 = arith.constant 0 : index
    %114 = vector.load %arg7[%c1_104, %c0_105, %c0_106] : memref<9x128x128xbf16, #tpu.memory_space<vmem>>, vector<1x128x128xbf16>
    %115 = vector.shape_cast %114 : vector<1x128x128xbf16> to vector<128x128xbf16>
    %cst_107 = arith.constant dense<0.000000e+00> : vector<64x128xf32>
    %116 = tpu.matmul %113, %115, %cst_107 {dimension_numbers = #tpu.dot_dimension_numbers<[1], [0], [0], [1], [0, 0, 1, 1], [], []>} : vector<64x128xbf16>, vector<128x128xbf16>, vector<64x128xf32> -> vector<64x128xf32>
    %117 = arith.addf %110, %116 : vector<64x128xf32>
    %c0_108 = arith.constant 0 : index
    %c2_109 = arith.constant 2 : index
    %c0_110 = arith.constant 0 : index
    %118 = vector.load %arg10[%c0_108, %c2_109, %c0_110] : memref<10x10x128xf32, #tpu.memory_space<vmem>>, vector<8x8x128xf32>
    %119 = vector.shape_cast %118 : vector<8x8x128xf32> to vector<64x128xf32>
    %120 = arith.truncf %119 : vector<64x128xf32> to vector<64x128xbf16>
    %c2_111 = arith.constant 2 : index
    %c0_112 = arith.constant 0 : index
    %c0_113 = arith.constant 0 : index
    %121 = vector.load %arg7[%c2_111, %c0_112, %c0_113] : memref<9x128x128xbf16, #tpu.memory_space<vmem>>, vector<1x128x128xbf16>
    %122 = vector.shape_cast %121 : vector<1x128x128xbf16> to vector<128x128xbf16>
    %cst_114 = arith.constant dense<0.000000e+00> : vector<64x128xf32>
    %123 = tpu.matmul %120, %122, %cst_114 {dimension_numbers = #tpu.dot_dimension_numbers<[1], [0], [0], [1], [0, 0, 1, 1], [], []>} : vector<64x128xbf16>, vector<128x128xbf16>, vector<64x128xf32> -> vector<64x128xf32>
    %124 = arith.addf %117, %123 : vector<64x128xf32>
    %c1_115 = arith.constant 1 : index
    %c0_116 = arith.constant 0 : index
    %c0_117 = arith.constant 0 : index
    %125 = vector.load %arg10[%c1_115, %c0_116, %c0_117] : memref<10x10x128xf32, #tpu.memory_space<vmem>>, vector<8x8x128xf32>
    %126 = vector.shape_cast %125 : vector<8x8x128xf32> to vector<64x128xf32>
    %127 = arith.truncf %126 : vector<64x128xf32> to vector<64x128xbf16>
    %c3_118 = arith.constant 3 : index
    %c0_119 = arith.constant 0 : index
    %c0_120 = arith.constant 0 : index
    %128 = vector.load %arg7[%c3_118, %c0_119, %c0_120] : memref<9x128x128xbf16, #tpu.memory_space<vmem>>, vector<1x128x128xbf16>
    %129 = vector.shape_cast %128 : vector<1x128x128xbf16> to vector<128x128xbf16>
    %cst_121 = arith.constant dense<0.000000e+00> : vector<64x128xf32>
    %130 = tpu.matmul %127, %129, %cst_121 {dimension_numbers = #tpu.dot_dimension_numbers<[1], [0], [0], [1], [0, 0, 1, 1], [], []>} : vector<64x128xbf16>, vector<128x128xbf16>, vector<64x128xf32> -> vector<64x128xf32>
    %131 = arith.addf %124, %130 : vector<64x128xf32>
    %c1_122 = arith.constant 1 : index
    %c1_123 = arith.constant 1 : index
    %c0_124 = arith.constant 0 : index
    %132 = vector.load %arg10[%c1_122, %c1_123, %c0_124] : memref<10x10x128xf32, #tpu.memory_space<vmem>>, vector<8x8x128xf32>
    %133 = vector.shape_cast %132 : vector<8x8x128xf32> to vector<64x128xf32>
    %134 = arith.truncf %133 : vector<64x128xf32> to vector<64x128xbf16>
    %c4_125 = arith.constant 4 : index
    %c0_126 = arith.constant 0 : index
    %c0_127 = arith.constant 0 : index
    %135 = vector.load %arg7[%c4_125, %c0_126, %c0_127] : memref<9x128x128xbf16, #tpu.memory_space<vmem>>, vector<1x128x128xbf16>
    %136 = vector.shape_cast %135 : vector<1x128x128xbf16> to vector<128x128xbf16>
    %cst_128 = arith.constant dense<0.000000e+00> : vector<64x128xf32>
    %137 = tpu.matmul %134, %136, %cst_128 {dimension_numbers = #tpu.dot_dimension_numbers<[1], [0], [0], [1], [0, 0, 1, 1], [], []>} : vector<64x128xbf16>, vector<128x128xbf16>, vector<64x128xf32> -> vector<64x128xf32>
    %138 = arith.addf %131, %137 : vector<64x128xf32>
    %c1_129 = arith.constant 1 : index
    %c2_130 = arith.constant 2 : index
    %c0_131 = arith.constant 0 : index
    %139 = vector.load %arg10[%c1_129, %c2_130, %c0_131] : memref<10x10x128xf32, #tpu.memory_space<vmem>>, vector<8x8x128xf32>
    %140 = vector.shape_cast %139 : vector<8x8x128xf32> to vector<64x128xf32>
    %141 = arith.truncf %140 : vector<64x128xf32> to vector<64x128xbf16>
    %c5_132 = arith.constant 5 : index
    %c0_133 = arith.constant 0 : index
    %c0_134 = arith.constant 0 : index
    %142 = vector.load %arg7[%c5_132, %c0_133, %c0_134] : memref<9x128x128xbf16, #tpu.memory_space<vmem>>, vector<1x128x128xbf16>
    %143 = vector.shape_cast %142 : vector<1x128x128xbf16> to vector<128x128xbf16>
    %cst_135 = arith.constant dense<0.000000e+00> : vector<64x128xf32>
    %144 = tpu.matmul %141, %143, %cst_135 {dimension_numbers = #tpu.dot_dimension_numbers<[1], [0], [0], [1], [0, 0, 1, 1], [], []>} : vector<64x128xbf16>, vector<128x128xbf16>, vector<64x128xf32> -> vector<64x128xf32>
    %145 = arith.addf %138, %144 : vector<64x128xf32>
    %c2_136 = arith.constant 2 : index
    %c0_137 = arith.constant 0 : index
    %c0_138 = arith.constant 0 : index
    %146 = vector.load %arg10[%c2_136, %c0_137, %c0_138] : memref<10x10x128xf32, #tpu.memory_space<vmem>>, vector<8x8x128xf32>
    %147 = vector.shape_cast %146 : vector<8x8x128xf32> to vector<64x128xf32>
    %148 = arith.truncf %147 : vector<64x128xf32> to vector<64x128xbf16>
    %c6_139 = arith.constant 6 : index
    %c0_140 = arith.constant 0 : index
    %c0_141 = arith.constant 0 : index
    %149 = vector.load %arg7[%c6_139, %c0_140, %c0_141] : memref<9x128x128xbf16, #tpu.memory_space<vmem>>, vector<1x128x128xbf16>
    %150 = vector.shape_cast %149 : vector<1x128x128xbf16> to vector<128x128xbf16>
    %cst_142 = arith.constant dense<0.000000e+00> : vector<64x128xf32>
    %151 = tpu.matmul %148, %150, %cst_142 {dimension_numbers = #tpu.dot_dimension_numbers<[1], [0], [0], [1], [0, 0, 1, 1], [], []>} : vector<64x128xbf16>, vector<128x128xbf16>, vector<64x128xf32> -> vector<64x128xf32>
    %152 = arith.addf %145, %151 : vector<64x128xf32>
    %c2_143 = arith.constant 2 : index
    %c1_144 = arith.constant 1 : index
    %c0_145 = arith.constant 0 : index
    %153 = vector.load %arg10[%c2_143, %c1_144, %c0_145] : memref<10x10x128xf32, #tpu.memory_space<vmem>>, vector<8x8x128xf32>
    %154 = vector.shape_cast %153 : vector<8x8x128xf32> to vector<64x128xf32>
    %155 = arith.truncf %154 : vector<64x128xf32> to vector<64x128xbf16>
    %c7_146 = arith.constant 7 : index
    %c0_147 = arith.constant 0 : index
    %c0_148 = arith.constant 0 : index
    %156 = vector.load %arg7[%c7_146, %c0_147, %c0_148] : memref<9x128x128xbf16, #tpu.memory_space<vmem>>, vector<1x128x128xbf16>
    %157 = vector.shape_cast %156 : vector<1x128x128xbf16> to vector<128x128xbf16>
    %cst_149 = arith.constant dense<0.000000e+00> : vector<64x128xf32>
    %158 = tpu.matmul %155, %157, %cst_149 {dimension_numbers = #tpu.dot_dimension_numbers<[1], [0], [0], [1], [0, 0, 1, 1], [], []>} : vector<64x128xbf16>, vector<128x128xbf16>, vector<64x128xf32> -> vector<64x128xf32>
    %159 = arith.addf %152, %158 : vector<64x128xf32>
    %c2_150 = arith.constant 2 : index
    %c2_151 = arith.constant 2 : index
    %c0_152 = arith.constant 0 : index
    %160 = vector.load %arg10[%c2_150, %c2_151, %c0_152] : memref<10x10x128xf32, #tpu.memory_space<vmem>>, vector<8x8x128xf32>
    %161 = vector.shape_cast %160 : vector<8x8x128xf32> to vector<64x128xf32>
    %162 = arith.truncf %161 : vector<64x128xf32> to vector<64x128xbf16>
    %c8_153 = arith.constant 8 : index
    %c0_154 = arith.constant 0 : index
    %c0_155 = arith.constant 0 : index
    %163 = vector.load %arg7[%c8_153, %c0_154, %c0_155] : memref<9x128x128xbf16, #tpu.memory_space<vmem>>, vector<1x128x128xbf16>
    %164 = vector.shape_cast %163 : vector<1x128x128xbf16> to vector<128x128xbf16>
    %cst_156 = arith.constant dense<0.000000e+00> : vector<64x128xf32>
    %165 = tpu.matmul %162, %164, %cst_156 {dimension_numbers = #tpu.dot_dimension_numbers<[1], [0], [0], [1], [0, 0, 1, 1], [], []>} : vector<64x128xbf16>, vector<128x128xbf16>, vector<64x128xf32> -> vector<64x128xf32>
    %166 = arith.addf %159, %165 : vector<64x128xf32>
    %c0_157 = arith.constant 0 : index
    %c0_158 = arith.constant 0 : index
    %c0_159 = arith.constant 0 : index
    %c0_160 = arith.constant 0 : index
    %167 = vector.load %arg1[%c0_157, %c0_158, %c0_159, %c0_160] : memref<1x8x8x128xbf16, #tpu.memory_space<vmem>>, vector<1x8x8x128xbf16>
    %168 = vector.shape_cast %167 : vector<1x8x8x128xbf16> to vector<8x8x128xbf16>
    %169 = arith.extf %168 : vector<8x8x128xbf16> to vector<8x8x128xf32>
    %170 = vector.shape_cast %169 : vector<8x8x128xf32> to vector<64x128xf32>
    %171 = arith.addf %166, %170 : vector<64x128xf32>
    %172 = vector.shape_cast %171 : vector<64x128xf32> to vector<8x8x128xf32>
    %173 = arith.truncf %172 : vector<8x8x128xf32> to vector<8x8x128xbf16>
    %c0_161 = arith.constant 0 : index
    %c0_162 = arith.constant 0 : index
    %c0_163 = arith.constant 0 : index
    %c0_164 = arith.constant 0 : index
    %174 = vector.load %arg8[%c0_161, %c0_162, %c0_163, %c0_164] : memref<1x8x8x128xbf16, #tpu.memory_space<vmem>>, vector<1x8x8x128xbf16>
    %175 = vector.shape_cast %174 : vector<1x8x8x128xbf16> to vector<8x8x128xbf16>
    %176 = vector.shape_cast %173 : vector<8x8x128xbf16> to vector<1x8x8x128xbf16>
    tpu.vector_store %arg8[%c0_161, %c0_162, %c0_163, %c0_164], %176 {strides = array<i32>} : memref<1x8x8x128xbf16, #tpu.memory_space<vmem>>, vector<1x8x8x128xbf16>,
    return
  }
  func.func @transform_0(%arg0: i32) -> (i32, i32, i32, i32) {
    %c0_i32 = arith.constant 0 : i32
    %c0_i32_0 = arith.constant 0 : i32
    %c0_i32_1 = arith.constant 0 : i32
    %c0_i32_2 = arith.constant 0 : i32
    return %arg0, %c0_i32, %c0_i32_0, %c0_i32_1 : i32, i32, i32, i32
  }
  func.func @transform_1(%arg0: i32) -> (i32, i32) {
    %c0_i32 = arith.constant 0 : i32
    %c0_i32_0 = arith.constant 0 : i32
    %c0_i32_1 = arith.constant 0 : i32
    return %c0_i32, %c0_i32_0 : i32, i32
  }
  func.func @transform_2(%arg0: i32) -> (i32, i32) {
    %c0_i32 = arith.constant 0 : i32
    %c0_i32_0 = arith.constant 0 : i32
    %c0_i32_1 = arith.constant 0 : i32
    return %c0_i32, %c0_i32_0 : i32, i32
  }
  func.func @transform_3(%arg0: i32) -> (i32, i32, i32) {
    %c0_i32 = arith.constant 0 : i32
    %c0_i32_0 = arith.constant 0 : i32
    %c0_i32_1 = arith.constant 0 : i32
    %c0_i32_2 = arith.constant 0 : i32
    return %c0_i32, %c0_i32_0, %c0_i32_1 : i32, i32, i32
  }
  func.func @transform_4(%arg0: i32) -> (i32, i32) {
    %c0_i32 = arith.constant 0 : i32
    %c0_i32_0 = arith.constant 0 : i32
    %c0_i32_1 = arith.constant 0 : i32
    return %c0_i32, %c0_i32_0 : i32, i32
  }
  func.func @transform_5(%arg0: i32) -> (i32, i32) {
    %c0_i32 = arith.constant 0 : i32
    %c0_i32_0 = arith.constant 0 : i32
    %c0_i32_1 = arith.constant 0 : i32
    return %c0_i32, %c0_i32_0 : i32, i32
  }
  func.func @transform_6(%arg0: i32) -> (i32, i32, i32) {
    %c0_i32 = arith.constant 0 : i32
    %c0_i32_0 = arith.constant 0 : i32
    %c0_i32_1 = arith.constant 0 : i32
    %c0_i32_2 = arith.constant 0 : i32
    return %c0_i32, %c0_i32_0, %c0_i32_1 : i32, i32, i32
  }
  func.func @transform_7(%arg0: i32) -> (i32, i32, i32, i32) {
    %c0_i32 = arith.constant 0 : i32
    %c0_i32_0 = arith.constant 0 : i32
    %c0_i32_1 = arith.constant 0 : i32
    %c0_i32_2 = arith.constant 0 : i32
    return %arg0, %c0_i32, %c0_i32_0, %c0_i32_1 : i32, i32, i32, i32
  }
}

</mosaic_0001>

<llo_original>
// kernel: network_block_forward.3
$region0: #{network_block_forward.3}
  #allocation0 [shape = 'u32[]', space=smem, size = 0x4, offset = 0x4, fixed_abs, tag = 'smem constant byte address 0x4 - core index']
  #allocation1 [shape = 'u32[72,128]{1,0:T(1,128)}', space=vmem, size = 0x9000, scoped, tag = 'internal scratch']
  #allocation2 [shape = 'f32[1,10,10,128]{3,2,1,0:T(8,128)}', space=vmem, size = 0x14000, scoped, tag = 'scratch operand']
  #allocation3 [shape = 'f32[10,10,128]{2,1,0:T(8,128)}', space=vmem, size = 0x14000, scoped, tag = 'scratch operand']
  %s0 = inlined_call_operand.vmem [shape: bf16[2,8,8,128], index: 0, kind: input, shape index: {}]
  %s1 = inlined_call_operand.vmem [shape: f32[1,128], index: 1, kind: input, shape index: {}]
  %s2 = inlined_call_operand.vmem [shape: f32[1,128], index: 2, kind: input, shape index: {}]
  %s3 = inlined_call_operand.vmem [shape: bf16[9,128,128], index: 3, kind: input, shape index: {}]
  %s4 = inlined_call_operand.vmem [shape: f32[1,128], index: 4, kind: input, shape index: {}]
  %s5 = inlined_call_operand.vmem [shape: f32[1,128], index: 5, kind: input, shape index: {}]
  %s6 = inlined_call_operand.vmem [shape: bf16[9,128,128], index: 6, kind: input, shape index: {}]
  %s7 = inlined_call_operand.vmem [shape: bf16[2,8,8,128], index: 7, kind: output, shape index: {}]
  %s8 = sld [smem:[#allocation0]]
  $region61: #{network_block_forward.3} parent=0
    _
  %s10 = ssub.s32 1, %s8
  %s11 = scalar_select 0, %s10, %s8
  loop: start=0, step=1, limit=4
  $region2: #{network_block_forward.3} parent=0 // loop_pre_header
    _
  $region3: #{network_block_forward.3} parent=0 // loop_header
    %s13 = sphi 0, %s17
    %p14 = scmp.ge.s32.totalorder %s13, 4
    %s23 = sphi 0, %s25
    %s26 = sphi 0, %s23
    %s27 = sphi 0, %s26
    %s43 = sphi 0, %s27
    %s47 = sphi 0, %s47
    %s49 = sphi 0, %s47
    %s50 = sphi 0, %s49
    %s64 = sphi 0, %s50
    %s68 = sphi 0, %s68
    %s70 = sphi 0, %s68
    %s71 = sphi 0, %s70
    %s85 = sphi 0, %s71
    %s89 = sphi 0, %s89
    %s91 = sphi 0, %s89
    %s92 = sphi 0, %s91
    %s106 = sphi 0, %s92
    %s110 = sphi 0, %s110
    %s112 = sphi 0, %s110
    %s113 = sphi 0, %s112
    %s127 = sphi 0, %s113
    %s131 = sphi 0, %s131
    %s133 = sphi 0, %s131
    %s134 = sphi 0, %s133
    %s148 = sphi 0, %s134
    %s152 = sphi 0, %s152
    %s154 = sphi 0, %s152
    %s155 = sphi 0, %s154
    %s169 = sphi 0, %s155
    %s175 = sphi 0, %s177
    %s178 = sphi 0, %s175
    %s179 = sphi 0, %s178
    %s195 = sphi 0, %s179
  $region4: #{network_block_forward.3} parent=0 // loop_header_branch
    %16 = sbr.rel (%p14) target = $region8
  $region5: #{network_block_forward.3} parent=0 // loop_body
    %s18 = ssub.s32 %s13, 1
    %s19 = ssub.s32 %s13, 2
    %s20 = sadd.s32 %s13, 1
    %s21 = ssub.s32 %s13, %s20
    %p22 = scmp.eq.s32.totalorder %s21, 0
    %s24 = sadd.s32 %s23, 1
    %s25 = scalar_select %p22, %s23, %s24
    %p28 = pneg %p22
    %p29 = scmp.eq.s32.totalorder %s13, 1
    %p30 = por %p28, %p29
    %p31 = scmp.ne.s32.totalorder %s23, %s26
    %p32 = scmp.eq.s32.totalorder %s13, 0
    %p33 = por %p31, %p32
    %p34 = scmp.ne.s32.totalorder %s23, %s26
    %p35 = scmp.eq.s32.totalorder %s18, 1
    %p36 = por %p34, %p35
    %p37 = scmp.ne.s32.totalorder %s26, %s27
    %p38 = scmp.eq.s32.totalorder %s18, 0
    %p39 = por %p37, %p38
    %p40 = scmp.ne.s32.totalorder %s26, %s27
    %p41 = scmp.eq.s32.totalorder %s19, 1
    %p42 = por %p40, %p41
    %p44 = scmp.ne.s32.totalorder %s27, %s43
    %p45 = scmp.eq.s32.totalorder %s19, 0
    %p46 = por %p44, %p45
    %s48 = sadd.s32 %s47, 1
    %p51 = scmp.eq.s32.totalorder %s13, 1
    %p52 = scmp.ne.s32.totalorder %s47, %s49
    %p53 = scmp.eq.s32.totalorder %s13, 0
    %p54 = por %p52, %p53
    %p55 = scmp.ne.s32.totalorder %s47, %s49
    %p56 = scmp.eq.s32.totalorder %s18, 1
    %p57 = por %p55, %p56
    %p58 = scmp.ne.s32.totalorder %s49, %s50
    %p59 = scmp.eq.s32.totalorder %s18, 0
    %p60 = por %p58, %p59
    %p61 = scmp.ne.s32.totalorder %s49, %s50
    %p62 = scmp.eq.s32.totalorder %s19, 1
    %p63 = por %p61, %p62
    %p65 = scmp.ne.s32.totalorder %s50, %s64
    %p66 = scmp.eq.s32.totalorder %s19, 0
    %p67 = por %p65, %p66
    %s69 = sadd.s32 %s68, 1
    %p72 = scmp.eq.s32.totalorder %s13, 1
    %p73 = scmp.ne.s32.totalorder %s68, %s70
    %p74 = scmp.eq.s32.totalorder %s13, 0
    %p75 = por %p73, %p74
    %p76 = scmp.ne.s32.totalorder %s68, %s70
    %p77 = scmp.eq.s32.totalorder %s18, 1
    %p78 = por %p76, %p77
    %p79 = scmp.ne.s32.totalorder %s70, %s71
    %p80 = scmp.eq.s32.totalorder %s18, 0
    %p81 = por %p79, %p80
    %p82 = scmp.ne.s32.totalorder %s70, %s71
    %p83 = scmp.eq.s32.totalorder %s19, 1
    %p84 = por %p82, %p83
    %p86 = scmp.ne.s32.totalorder %s71, %s85
    %p87 = scmp.eq.s32.totalorder %s19, 0
    %p88 = por %p86, %p87
    %s90 = sadd.s32 %s89, 1
    %p93 = scmp.eq.s32.totalorder %s13, 1
    %p94 = scmp.ne.s32.totalorder %s89, %s91
    %p95 = scmp.eq.s32.totalorder %s13, 0
    %p96 = por %p94, %p95
    %p97 = scmp.ne.s32.totalorder %s89, %s91
    %p98 = scmp.eq.s32.totalorder %s18, 1
    %p99 = por %p97, %p98
    %p100 = scmp.ne.s32.totalorder %s91, %s92
    %p101 = scmp.eq.s32.totalorder %s18, 0
    %p102 = por %p100, %p101
    %p103 = scmp.ne.s32.totalorder %s91, %s92
    %p104 = scmp.eq.s32.totalorder %s19, 1
    %p105 = por %p103, %p104
    %p107 = scmp.ne.s32.totalorder %s92, %s106
    %p108 = scmp.eq.s32.totalorder %s19, 0
    %p109 = por %p107, %p108
    %s111 = sadd.s32 %s110, 1
    %p114 = scmp.eq.s32.totalorder %s13, 1
    %p115 = scmp.ne.s32.totalorder %s110, %s112
    %p116 = scmp.eq.s32.totalorder %s13, 0
    %p117 = por %p115, %p116
    %p118 = scmp.ne.s32.totalorder %s110, %s112
    %p119 = scmp.eq.s32.totalorder %s18, 1
    %p120 = por %p118, %p119
    %p121 = scmp.ne.s32.totalorder %s112, %s113
    %p122 = scmp.eq.s32.totalorder %s18, 0
    %p123 = por %p121, %p122
    %p124 = scmp.ne.s32.totalorder %s112, %s113
    %p125 = scmp.eq.s32.totalorder %s19, 1
    %p126 = por %p124, %p125
    %p128 = scmp.ne.s32.totalorder %s113, %s127
    %p129 = scmp.eq.s32.totalorder %s19, 0
    %p130 = por %p128, %p129
    %s132 = sadd.s32 %s131, 1
    %p135 = scmp.eq.s32.totalorder %s13, 1
    %p136 = scmp.ne.s32.totalorder %s131, %s133
    %p137 = scmp.eq.s32.totalorder %s13, 0
    %p138 = por %p136, %p137
    %p139 = scmp.ne.s32.totalorder %s131, %s133
    %p140 = scmp.eq.s32.totalorder %s18, 1
    %p141 = por %p139, %p140
    %p142 = scmp.ne.s32.totalorder %s133, %s134
    %p143 = scmp.eq.s32.totalorder %s18, 0
    %p144 = por %p142, %p143
    %p145 = scmp.ne.s32.totalorder %s133, %s134
    %p146 = scmp.eq.s32.totalorder %s19, 1
    %p147 = por %p145, %p146
    %p149 = scmp.ne.s32.totalorder %s134, %s148
    %p150 = scmp.eq.s32.totalorder %s19, 0
    %p151 = por %p149, %p150
    %s153 = sadd.s32 %s152, 1
    %p156 = scmp.eq.s32.totalorder %s13, 1
    %p157 = scmp.ne.s32.totalorder %s152, %s154
    %p158 = scmp.eq.s32.totalorder %s13, 0
    %p159 = por %p157, %p158
    %p160 = scmp.ne.s32.totalorder %s152, %s154
    %p161 = scmp.eq.s32.totalorder %s18, 1
    %p162 = por %p160, %p161
    %p163 = scmp.ne.s32.totalorder %s154, %s155
    %p164 = scmp.eq.s32.totalorder %s18, 0
    %p165 = por %p163, %p164
    %p166 = scmp.ne.s32.totalorder %s154, %s155
    %p167 = scmp.eq.s32.totalorder %s19, 1
    %p168 = por %p166, %p167
    %p170 = scmp.ne.s32.totalorder %s155, %s169
    %p171 = scmp.eq.s32.totalorder %s19, 0
    %p172 = por %p170, %p171
    %s173 = ssub.s32 %s13, %s20
    %p174 = scmp.eq.s32.totalorder %s173, 0
    %s176 = sadd.s32 %s175, 1
    %s177 = scalar_select %p174, %s175, %s176
    %p180 = pneg %p174
    %p181 = scmp.eq.s32.totalorder %s13, 1
    %p182 = por %p180, %p181
    %p183 = scmp.ne.s32.totalorder %s175, %s178
    %p184 = scmp.eq.s32.totalorder %s13, 0
    %p185 = por %p183, %p184
    %p186 = scmp.ne.s32.totalorder %s175, %s178
    %p187 = scmp.eq.s32.totalorder %s18, 1
    %p188 = por %p186, %p187
    %p189 = scmp.ne.s32.totalorder %s178, %s179
    %p190 = scmp.eq.s32.totalorder %s18, 0
    %p191 = por %p189, %p190
    %p192 = scmp.ne.s32.totalorder %s178, %s179
    %p193 = scmp.eq.s32.totalorder %s19, 1
    %p194 = por %p192, %p193
    %p196 = scmp.ne.s32.totalorder %s179, %s195
    %p197 = scmp.eq.s32.totalorder %s19, 0
    %p198 = por %p196, %p197
    %p199 = scmp.le.s32.totalorder 1, %s13
    %p200 = scmp.lt.s32.totalorder %s13, 3
    %p201 = pnand %p199, %p200
    %p202 = pneg %p201
    // Predicated region
    $region9: #{network_block_forward.3} parent=5 // pred_check
      _
    $region10: #{network_block_forward.3} parent=5 // pred_check_branch
      %204 = sbr.rel (%p201) target = $region12
    $region11: #{network_block_forward.3} parent=5 // pred_region
      %s205 = ssub.s32 %s13, 1
      // Predicated region
      $region13: #{network_block_forward.3} parent=11 // pred_check
        %p206 = pneg %p60
      $region14: #{network_block_forward.3} parent=11 // pred_check_branch
        %208 = sbr.rel (%p206) target = $region16
      $region15: #{network_block_forward.3} parent=11 // pred_region
        _
      $region16: #{network_block_forward.3} parent=11 // pred_fallthru
        _
      // Predicated region
      $region17: #{network_block_forward.3} parent=11 // pred_check
        %p209 = pneg %p81
      $region18: #{network_block_forward.3} parent=11 // pred_check_branch
        %211 = sbr.rel (%p209) target = $region20
      $region19: #{network_block_forward.3} parent=11 // pred_region
        _
      $region20: #{network_block_forward.3} parent=11 // pred_fallthru
        _
      // Predicated region
      $region21: #{network_block_forward.3} parent=11 // pred_check
        %p212 = pneg %p102
      $region22: #{network_block_forward.3} parent=11 // pred_check_branch
        %214 = sbr.rel (%p212) target = $region24
      $region23: #{network_block_forward.3} parent=11 // pred_region
        _
      $region24: #{network_block_forward.3} parent=11 // pred_fallthru
        _
      // Predicated region
      $region25: #{network_block_forward.3} parent=11 // pred_check
        %p215 = pneg %p123
      $region26: #{network_block_forward.3} parent=11 // pred_check_branch
        %217 = sbr.rel (%p215) target = $region28
      $region27: #{network_block_forward.3} parent=11 // pred_region
        _
      $region28: #{network_block_forward.3} parent=11 // pred_fallthru
        _
      // Predicated region
      $region29: #{network_block_forward.3} parent=11 // pred_check
        %p218 = pneg %p144
      $region30: #{network_block_forward.3} parent=11 // pred_check_branch
        %220 = sbr.rel (%p218) target = $region32
      $region31: #{network_block_forward.3} parent=11 // pred_region
        _
      $region32: #{network_block_forward.3} parent=11 // pred_fallthru
        _
      // Predicated region
      $region33: #{network_block_forward.3} parent=11 // pred_check
        %p221 = pneg %p165
      $region34: #{network_block_forward.3} parent=11 // pred_check_branch
        %223 = sbr.rel (%p221) target = $region36
      $region35: #{network_block_forward.3} parent=11 // pred_region
        _
      $region36: #{network_block_forward.3} parent=11 // pred_fallthru
        _
    $region12: #{network_block_forward.3} parent=5 // pred_fallthru
      _
    %p224 = scmp.lt.s32.totalorder %s13, 2
    // Predicated region
    $region37: #{network_block_forward.3} parent=5 // pred_check
      %p225 = pneg %p224
    $region38: #{network_block_forward.3} parent=5 // pred_check_branch
      %227 = sbr.rel (%p225) target = $region40
    $region39: #{network_block_forward.3} parent=5 // pred_region
      // Predicated region
      $region41: #{network_block_forward.3} parent=39 // pred_check
        %p228 = pneg %p33
      $region42: #{network_block_forward.3} parent=39 // pred_check_branch
        %230 = sbr.rel (%p228) target = $region44
      $region43: #{network_block_forward.3} parent=39 // pred_region
        %p231 = scmp.lt.s32.totalorder %s13, 1
        %s232 = scalar_select %p231, %s13, 1
        %s233 = smul.addr %s232, 8
        %s234 = smul.addr %s233, 4
        %s235 = scalar_lea.vmem %s0, %s234
      $region44: #{network_block_forward.3} parent=39 // pred_fallthru
        _
    $region40: #{network_block_forward.3} parent=5 // pred_fallthru
      _
    %p236 = scmp.le.s32.totalorder 1, %s13
    %p237 = scmp.lt.s32.totalorder %s13, 3
    %p238 = pnand %p236, %p237
    %p239 = pneg %p238
    // Predicated region
    $region45: #{network_block_forward.3} parent=5 // pred_check
      _
    $region46: #{network_block_forward.3} parent=5 // pred_check_branch
      %241 = sbr.rel (%p238) target = $region48
    $region47: #{network_block_forward.3} parent=5 // pred_region
      %s242 = ssub.s32 %s13, 1
      %p243 = scmp.lt.s32.totalorder %s18, 1
      %s244 = scalar_select %p243, %s18, 1
      %s245 = smul.addr %s244, 8
      %s246 = smul.addr %s245, 4
      %s247 = scalar_lea.vmem %s0, %s246
      %p248 = pneg %p39
      %p249 = pneg %p36
      %p250 = pneg %p60
      %p251 = pneg %p57
      %p252 = pneg %p81
      %p253 = pneg %p78
      %p254 = pneg %p102
      %p255 = pneg %p99
      %p256 = pneg %p123
      %p257 = pneg %p120
      %p258 = pneg %p144
      %p259 = pneg %p141
      %p260 = pneg %p165
      %p261 = pneg %p162
      %p262 = pneg %p191
      %p263 = pneg %p188
      %p264 = scmp.lt.s32.totalorder %s18, 1
      %s265 = scalar_select %p264, %s18, 1
      %s266 = smul.addr %s265, 8
      %s267 = smul.addr %s266, 4
      %s268 = scalar_lea.vmem %s7, %s267
      %p269 = scmp.lt.s32.totalorder %s18, 1
      %s270 = scalar_select %p269, %s18, 1
      %s271 = smul.addr %s270, 8
      %s272 = smul.addr %s271, 4
      %s273 = scalar_lea.vmem %s0, %s272
      %p274 = scmp.lt.s32.totalorder %s18, 1
      %s275 = scalar_select %p274, %s18, 1
      %s276 = smul.addr %s275, 8
      %s277 = smul.addr %s276, 4
      %s278 = scalar_lea.vmem %s7, %s277
      %279 = vst [vmem:[#allocation2] sm:$0xff] 0.0
      %280 = vst [vmem:[#allocation2 + $0x8] sm:$0x3] 0.0
      %281 = vst [vmem:[#allocation2 + $0x10] sm:$0xff] 0.0
      %282 = vst [vmem:[#allocation2 + $0x18] sm:$0x3] 0.0
      %283 = vst [vmem:[#allocation2 + $0x20] sm:$0xff] 0.0
      %284 = vst [vmem:[#allocation2 + $0x28] sm:$0x3] 0.0
      %285 = vst [vmem:[#allocation2 + $0x30] sm:$0xff] 0.0
      %286 = vst [vmem:[#allocation2 + $0x38] sm:$0x3] 0.0
      %287 = vst [vmem:[#allocation2 + $0x40] sm:$0xff] 0.0
      %288 = vst [vmem:[#allocation2 + $0x48] sm:$0x3] 0.0
      %289 = vst [vmem:[#allocation2 + $0x50] sm:$0xff] 0.0
      %290 = vst [vmem:[#allocation2 + $0x58] sm:$0x3] 0.0
      %291 = vst [vmem:[#allocation2 + $0x60] sm:$0xff] 0.0
      %292 = vst [vmem:[#allocation2 + $0x68] sm:$0x3] 0.0
      %293 = vst [vmem:[#allocation2 + $0x70] sm:$0xff] 0.0
      %294 = vst [vmem:[#allocation2 + $0x78] sm:$0x3] 0.0
      %295 = vst [vmem:[#allocation2 + $0x80] sm:$0xff] 0.0
      %296 = vst [vmem:[#allocation2 + $0x88] sm:$0x3] 0.0
      %297 = vst [vmem:[#allocation2 + $0x90] sm:$0xff] 0.0
      %298 = vst [vmem:[#allocation2 + $0x98] sm:$0x3] 0.0
      %v299 = vld [vmem:[%s273] sm:$0xf]
      %v300 = vld [vmem:[%s273 + $0x4] sm:$0xf]
      %v301 = vld [vmem:[%s273 + $0x8] sm:$0xf]
      %v302 = vld [vmem:[%s273 + $0xc] sm:$0xf]
      %v303 = vld [vmem:[%s273 + $0x10] sm:$0xf]
      %v304 = vld [vmem:[%s273 + $0x14] sm:$0xf]
      %v305 = vld [vmem:[%s273 + $0x18] sm:$0xf]
      %v306 = vld [vmem:[%s273 + $0x1c] sm:$0xf]
      %v307 = vunpack.c.l.bf16 %v299
      %v308 = vunpack.c.l.bf16 %v300
      %v309 = vunpack.c.l.bf16 %v301
      %v310 = vunpack.c.l.bf16 %v302
      %v311 = vunpack.c.l.bf16 %v303
      %v312 = vunpack.c.l.bf16 %v304
      %v313 = vunpack.c.l.bf16 %v305
      %v314 = vunpack.c.l.bf16 %v306
      %v315 = vld [vmem:[%s1] sm:$0x1]
      %v317 = vperm.slane %v315, 0
      %v319 = vmul.f32 %v307, %v317
      %v320 = vmul.f32 %v308, %v317
      %v321 = vmul.f32 %v309, %v317
      %v322 = vmul.f32 %v310, %v317
      %v323 = vmul.f32 %v311, %v317
      %v324 = vmul.f32 %v312, %v317
      %v325 = vmul.f32 %v313, %v317
      %v326 = vmul.f32 %v314, %v317
      %v327 = vld [vmem:[%s2] sm:$0x1]
      %v329 = vperm.slane %v327, 0
      %v331 = vadd.f32 %v319, %v329
      %v332 = vadd.f32 %v320, %v329
      %v333 = vadd.f32 %v321, %v329
      %v334 = vadd.f32 %v322, %v329
      %v335 = vadd.f32 %v323, %v329
      %v336 = vadd.f32 %v324, %v329
      %v337 = vadd.f32 %v325, %v329
      %v338 = vadd.f32 %v326, %v329
      %v339 = vmax.f32 %v331, 0.0
      %v340 = vmax.f32 %v332, 0.0
      %v341 = vmax.f32 %v333, 0.0
      %v342 = vmax.f32 %v334, 0.0
      %v343 = vmax.f32 %v335, 0.0
      %v344 = vmax.f32 %v336, 0.0
      %v345 = vmax.f32 %v337, 0.0
      %v346 = vmax.f32 %v338, 0.0
      %s347 = scalar_lea.vmem [#allocation2], 16
      %348 = vst [vmem:[%s347 + $0x1] sm:$0xff] %v339
      %349 = vst [vmem:[%s347 + $0x11] sm:$0xff] %v340
      %350 = vst [vmem:[%s347 + $0x21] sm:$0xff] %v341
      %351 = vst [vmem:[%s347 + $0x31] sm:$0xff] %v342
      %352 = vst [vmem:[%s347 + $0x41] sm:$0xff] %v343
      %353 = vst [vmem:[%s347 + $0x51] sm:$0xff] %v344
      %354 = vst [vmem:[%s347 + $0x61] sm:$0xff] %v345
      %355 = vst [vmem:[%s347 + $0x71] sm:$0xff] %v346
      %v356 = vld [vmem:[#allocation2] sm:$0xff]
      %v357 = vld [vmem:[#allocation2 + $0x10] sm:$0xff]
      %v358 = vld [vmem:[#allocation2 + $0x20] sm:$0xff]
      %v359 = vld [vmem:[#allocation2 + $0x30] sm:$0xff]
      %v360 = vld [vmem:[#allocation2 + $0x40] sm:$0xff]
      %v361 = vld [vmem:[#allocation2 + $0x50] sm:$0xff]
      %v362 = vld [vmem:[#allocation2 + $0x60] sm:$0xff]
      %v363 = vld [vmem:[#allocation2 + $0x70] sm:$0xff]
      %v364 = vpack.c.bf16 %v357, %v356
      %v365 = vpack.c.bf16 %v359, %v358
      %v366 = vpack.c.bf16 %v361, %v360
      %v367 = vpack.c.bf16 %v363, %v362
      %v368 = vld [vmem:[%s3] sm:$0xf]
      %v369 = vld [vmem:[%s3 + $0x4] sm:$0xf]
      %v370 = vld [vmem:[%s3 + $0x8] sm:$0xf]
      %v371 = vld [vmem:[%s3 + $0xc] sm:$0xf]
      %v372 = vld [vmem:[%s3 + $0x10] sm:$0xf]
      %v373 = vld [vmem:[%s3 + $0x14] sm:$0xf]
      %v374 = vld [vmem:[%s3 + $0x18] sm:$0xf]
      %v375 = vld [vmem:[%s3 + $0x1c] sm:$0xf]
      %v376 = vld [vmem:[%s3 + $0x20] sm:$0xf]
      %v377 = vld [vmem:[%s3 + $0x24] sm:$0xf]
      %v378 = vld [vmem:[%s3 + $0x28] sm:$0xf]
      %v379 = vld [vmem:[%s3 + $0x2c] sm:$0xf]
      %v380 = vld [vmem:[%s3 + $0x30] sm:$0xf]
      %v381 = vld [vmem:[%s3 + $0x34] sm:$0xf]
      %v382 = vld [vmem:[%s3 + $0x38] sm:$0xf]
      %v383 = vld [vmem:[%s3 + $0x3c] sm:$0xf]
      %v384 = vld [vmem:[#allocation2 + $0x1] sm:$0xff]
      %v385 = vld [vmem:[#allocation2 + $0x11] sm:$0xff]
      %v386 = vld [vmem:[#allocation2 + $0x21] sm:$0xff]
      %v387 = vld [vmem:[#allocation2 + $0x31] sm:$0xff]
      %v388 = vld [vmem:[#allocation2 + $0x41] sm:$0xff]
      %v389 = vld [vmem:[#allocation2 + $0x51] sm:$0xff]
      %v390 = vld [vmem:[#allocation2 + $0x61] sm:$0xff]
      %v391 = vld [vmem:[#allocation2 + $0x71] sm:$0xff]
      %v392 = vpack.c.bf16 %v385, %v384
      %v393 = vpack.c.bf16 %v387, %v386
      %v394 = vpack.c.bf16 %v389, %v388
      %v395 = vpack.c.bf16 %v391, %v390
      %s396 = scalar_lea.vmem %s3, 64
      %v397 = vld [vmem:[%s396] sm:$0xf]
      %v398 = vld [vmem:[%s396 + $0x4] sm:$0xf]
      %v399 = vld [vmem:[%s396 + $0x8] sm:$0xf]
      %v400 = vld [vmem:[%s396 + $0xc] sm:$0xf]
      %v401 = vld [vmem:[%s396 + $0x10] sm:$0xf]
      %v402 = vld [vmem:[%s396 + $0x14] sm:$0xf]
      %v403 = vld [vmem:[%s396 + $0x18] sm:$0xf]
      %v404 = vld [vmem:[%s396 + $0x1c] sm:$0xf]
      %v405 = vld [vmem:[%s396 + $0x20] sm:$0xf]
      %v406 = vld [vmem:[%s396 + $0x24] sm:$0xf]
      %v407 = vld [vmem:[%s396 + $0x28] sm:$0xf]
      %v408 = vld [vmem:[%s396 + $0x2c] sm:$0xf]
      %v409 = vld [vmem:[%s396 + $0x30] sm:$0xf]
      %v410 = vld [vmem:[%s396 + $0x34] sm:$0xf]
      %v411 = vld [vmem:[%s396 + $0x38] sm:$0xf]
      %v412 = vld [vmem:[%s396 + $0x3c] sm:$0xf]
      %v429 = vunpack.c.l.b16 %v397
      %v430 = vunpack.c.l.b16 %v398
      %v431 = vunpack.c.l.b16 %v399
      %v432 = vunpack.c.l.b16 %v400
      %v433 = vunpack.c.l.b16 %v401
      %v434 = vunpack.c.l.b16 %v402
      %v435 = vunpack.c.l.b16 %v403
      %v436 = vunpack.c.l.b16 %v404
      %v437 = vunpack.c.l.b16 %v405
      %v438 = vunpack.c.l.b16 %v406
      %v439 = vunpack.c.l.b16 %v407
      %v440 = vunpack.c.l.b16 %v408
      %v441 = vunpack.c.l.b16 %v409
      %v442 = vunpack.c.l.b16 %v410
      %v443 = vunpack.c.l.b16 %v411
      %v444 = vunpack.c.l.b16 %v412
      %v445 = vpack.c.b16 %v430, %v429
      %v446 = vpack.c.b16 %v432, %v431
      %v447 = vpack.c.b16 %v434, %v433
      %v448 = vpack.c.b16 %v436, %v435
      %v449 = vpack.c.b16 %v438, %v437
      %v450 = vpack.c.b16 %v440, %v439
      %v451 = vpack.c.b16 %v442, %v441
      %v452 = vpack.c.b16 %v444, %v443
      %461 = vmatpush.bf16.msra.mxu0 %v452
      %462 = vmatpush.bf16.msra.mxu0 %v451
      %463 = vmatpush.bf16.msra.mxu0 %v450
      %464 = vmatpush.bf16.msra.mxu0 %v449
      %465 = vmatpush.bf16.msra.mxu0 %v448
      %466 = vmatpush.bf16.msra.mxu0 %v447
      %467 = vmatpush.bf16.msra.mxu0 %v446
      %468 = vmatpush.bf16.msra.mxu0 %v445
      %469 = vmatmul.bf16.gmra.mxu0 %v392
      %v470 = vpop.f32.mrf.mxu0
      %v471 = vadd.f32 0.0, %v470
      %v472 = vpop.f32.mrf.mxu0
      %v473 = vadd.f32 0.0, %v472
      %474 = vmatmul.bf16.gmra.mxu0 %v393
      %v475 = vpop.f32.mrf.mxu0
      %v476 = vadd.f32 0.0, %v475
      %v477 = vpop.f32.mrf.mxu0
      %v478 = vadd.f32 0.0, %v477
      %479 = vmatmul.bf16.gmra.mxu0 %v394
      %v480 = vpop.f32.mrf.mxu0
      %v481 = vadd.f32 0.0, %v480
      %v482 = vpop.f32.mrf.mxu0
      %v483 = vadd.f32 0.0, %v482
      %484 = vmatmul.bf16.gmra.mxu0 %v395
      %v485 = vpop.f32.mrf.mxu0
      %v486 = vadd.f32 0.0, %v485
      %v487 = vpop.f32.mrf.mxu0
      %v488 = vadd.f32 0.0, %v487
      %489 = vdwg.mxu0
      %v506 = vunpack.c.l.b16 %v368
      %v507 = vunpack.c.l.b16 %v369
      %v508 = vunpack.c.l.b16 %v370
      %v509 = vunpack.c.l.b16 %v371
      %v510 = vunpack.c.l.b16 %v372
      %v511 = vunpack.c.l.b16 %v373
      %v512 = vunpack.c.l.b16 %v374
      %v513 = vunpack.c.l.b16 %v375
      %v514 = vunpack.c.l.b16 %v376
      %v515 = vunpack.c.l.b16 %v377
      %v516 = vunpack.c.l.b16 %v378
      %v517 = vunpack.c.l.b16 %v379
      %v518 = vunpack.c.l.b16 %v380
      %v519 = vunpack.c.l.b16 %v381
      %v520 = vunpack.c.l.b16 %v382
      %v521 = vunpack.c.l.b16 %v383
      %v522 = vpack.c.b16 %v507, %v506
      %v523 = vpack.c.b16 %v509, %v508
      %v524 = vpack.c.b16 %v511, %v510
      %v525 = vpack.c.b16 %v513, %v512
      %v526 = vpack.c.b16 %v515, %v514
      %v527 = vpack.c.b16 %v517, %v516
      %v528 = vpack.c.b16 %v519, %v518
      %v529 = vpack.c.b16 %v521, %v520
      %538 = vmatpush.bf16.msra.mxu0 %v529
      %539 = vmatpush.bf16.msra.mxu0 %v528
      %540 = vmatpush.bf16.msra.mxu0 %v527
      %541 = vmatpush.bf16.msra.mxu0 %v526
      %542 = vmatpush.bf16.msra.mxu0 %v525
      %543 = vmatpush.bf16.msra.mxu0 %v524
      %544 = vmatpush.bf16.msra.mxu0 %v523
      %545 = vmatpush.bf16.msra.mxu0 %v522
      %546 = vmatmul.bf16.gmra.mxu0 %v364
      %v547 = vpop.f32.mrf.mxu0
      %v548 = vadd.f32 %v471, %v547
      %v549 = vpop.f32.mrf.mxu0
      %v550 = vadd.f32 %v473, %v549
      %551 = vmatmul.bf16.gmra.mxu0 %v365
      %v552 = vpop.f32.mrf.mxu0
      %v553 = vadd.f32 %v476, %v552
      %v554 = vpop.f32.mrf.mxu0
      %v555 = vadd.f32 %v478, %v554
      %556 = vmatmul.bf16.gmra.mxu0 %v366
      %v557 = vpop.f32.mrf.mxu0
      %v558 = vadd.f32 %v481, %v557
      %v559 = vpop.f32.mrf.mxu0
      %v560 = vadd.f32 %v483, %v559
      %561 = vmatmul.bf16.gmra.mxu0 %v367
      %v562 = vpop.f32.mrf.mxu0
      %v563 = vadd.f32 %v486, %v562
      %v564 = vpop.f32.mrf.mxu0
      %v565 = vadd.f32 %v488, %v564
      %566 = vdwg.mxu0
      %v567 = vld [vmem:[#allocation2 + $0x2] sm:$0xff]
      %v568 = vld [vmem:[#allocation2 + $0x12] sm:$0xff]
      %v569 = vld [vmem:[#allocation2 + $0x22] sm:$0xff]
      %v570 = vld [vmem:[#allocation2 + $0x32] sm:$0xff]
      %v571 = vld [vmem:[#allocation2 + $0x42] sm:$0xff]
      %v572 = vld [vmem:[#allocation2 + $0x52] sm:$0xff]
      %v573 = vld [vmem:[#allocation2 + $0x62] sm:$0xff]
      %v574 = vld [vmem:[#allocation2 + $0x72] sm:$0xff]
      %v575 = vpack.c.bf16 %v568, %v567
      %v576 = vpack.c.bf16 %v570, %v569
      %v577 = vpack.c.bf16 %v572, %v571
      %v578 = vpack.c.bf16 %v574, %v573
      %s579 = scalar_lea.vmem %s3, 128
      %v580 = vld [vmem:[%s579] sm:$0xf]
      %v581 = vld [vmem:[%s579 + $0x4] sm:$0xf]
      %v582 = vld [vmem:[%s579 + $0x8] sm:$0xf]
      %v583 = vld [vmem:[%s579 + $0xc] sm:$0xf]
      %v584 = vld [vmem:[%s579 + $0x10] sm:$0xf]
      %v585 = vld [vmem:[%s579 + $0x14] sm:$0xf]
      %v586 = vld [vmem:[%s579 + $0x18] sm:$0xf]
      %v587 = vld [vmem:[%s579 + $0x1c] sm:$0xf]
      %v588 = vld [vmem:[%s579 + $0x20] sm:$0xf]
      %v589 = vld [vmem:[%s579 + $0x24] sm:$0xf]
      %v590 = vld [vmem:[%s579 + $0x28] sm:$0xf]
      %v591 = vld [vmem:[%s579 + $0x2c] sm:$0xf]
      %v592 = vld [vmem:[%s579 + $0x30] sm:$0xf]
      %v593 = vld [vmem:[%s579 + $0x34] sm:$0xf]
      %v594 = vld [vmem:[%s579 + $0x38] sm:$0xf]
      %v595 = vld [vmem:[%s579 + $0x3c] sm:$0xf]
      %v612 = vunpack.c.l.b16 %v580
      %v613 = vunpack.c.l.b16 %v581
      %v614 = vunpack.c.l.b16 %v582
      %v615 = vunpack.c.l.b16 %v583
      %v616 = vunpack.c.l.b16 %v584
      %v617 = vunpack.c.l.b16 %v585
      %v618 = vunpack.c.l.b16 %v586
      %v619 = vunpack.c.l.b16 %v587
      %v620 = vunpack.c.l.b16 %v588
      %v621 = vunpack.c.l.b16 %v589
      %v622 = vunpack.c.l.b16 %v590
      %v623 = vunpack.c.l.b16 %v591
      %v624 = vunpack.c.l.b16 %v592
      %v625 = vunpack.c.l.b16 %v593
      %v626 = vunpack.c.l.b16 %v594
      %v627 = vunpack.c.l.b16 %v595
      %v628 = vpack.c.b16 %v613, %v612
      %v629 = vpack.c.b16 %v615, %v614
      %v630 = vpack.c.b16 %v617, %v616
      %v631 = vpack.c.b16 %v619, %v618
      %v632 = vpack.c.b16 %v621, %v620
      %v633 = vpack.c.b16 %v623, %v622
      %v634 = vpack.c.b16 %v625, %v624
      %v635 = vpack.c.b16 %v627, %v626
      %644 = vmatpush.bf16.msra.mxu0 %v635
      %645 = vmatpush.bf16.msra.mxu0 %v634
      %646 = vmatpush.bf16.msra.mxu0 %v633
      %647 = vmatpush.bf16.msra.mxu0 %v632
      %648 = vmatpush.bf16.msra.mxu0 %v631
      %649 = vmatpush.bf16.msra.mxu0 %v630
      %650 = vmatpush.bf16.msra.mxu0 %v629
      %651 = vmatpush.bf16.msra.mxu0 %v628
      %652 = vmatmul.bf16.gmra.mxu0 %v575
      %v653 = vpop.f32.mrf.mxu0
      %v654 = vadd.f32 0.0, %v653
      %v655 = vpop.f32.mrf.mxu0
      %v656 = vadd.f32 0.0, %v655
      %657 = vmatmul.bf16.gmra.mxu0 %v576
      %v658 = vpop.f32.mrf.mxu0
      %v659 = vadd.f32 0.0, %v658
      %v660 = vpop.f32.mrf.mxu0
      %v661 = vadd.f32 0.0, %v660
      %662 = vmatmul.bf16.gmra.mxu0 %v577
      %v663 = vpop.f32.mrf.mxu0
      %v664 = vadd.f32 0.0, %v663
      %v665 = vpop.f32.mrf.mxu0
      %v666 = vadd.f32 0.0, %v665
      %667 = vmatmul.bf16.gmra.mxu0 %v578
      %v668 = vpop.f32.mrf.mxu0
      %v669 = vadd.f32 0.0, %v668
      %v670 = vpop.f32.mrf.mxu0
      %v671 = vadd.f32 0.0, %v670
      %672 = vdwg.mxu0
      %v673 = vadd.f32 %v548, %v654
      %v674 = vadd.f32 %v550, %v656
      %v675 = vadd.f32 %v553, %v659
      %v676 = vadd.f32 %v555, %v661
      %v677 = vadd.f32 %v558, %v664
      %v678 = vadd.f32 %v560, %v666
      %v679 = vadd.f32 %v563, %v669
      %v680 = vadd.f32 %v565, %v671
      %v681 = vld [vmem:[%s347] sm:$0xff]
      %v682 = vld [vmem:[%s347 + $0x10] sm:$0xff]
      %v683 = vld [vmem:[%s347 + $0x20] sm:$0xff]
      %v684 = vld [vmem:[%s347 + $0x30] sm:$0xff]
      %v685 = vld [vmem:[%s347 + $0x40] sm:$0xff]
      %v686 = vld [vmem:[%s347 + $0x50] sm:$0xff]
      %v687 = vld [vmem:[%s347 + $0x60] sm:$0xff]
      %v688 = vld [vmem:[%s347 + $0x70] sm:$0xff]
      %v689 = vpack.c.bf16 %v682, %v681
      %v690 = vpack.c.bf16 %v684, %v683
      %v691 = vpack.c.bf16 %v686, %v685
      %v692 = vpack.c.bf16 %v688, %v687
      %s693 = scalar_lea.vmem %s3, 192
      %v694 = vld [vmem:[%s693] sm:$0xf]
      %v695 = vld [vmem:[%s693 + $0x4] sm:$0xf]
      %v696 = vld [vmem:[%s693 + $0x8] sm:$0xf]
      %v697 = vld [vmem:[%s693 + $0xc] sm:$0xf]
      %v698 = vld [vmem:[%s693 + $0x10] sm:$0xf]
      %v699 = vld [vmem:[%s693 + $0x14] sm:$0xf]
      %v700 = vld [vmem:[%s693 + $0x18] sm:$0xf]
      %v701 = vld [vmem:[%s693 + $0x1c] sm:$0xf]
      %v702 = vld [vmem:[%s693 + $0x20] sm:$0xf]
      %v703 = vld [vmem:[%s693 + $0x24] sm:$0xf]
      %v704 = vld [vmem:[%s693 + $0x28] sm:$0xf]
      %v705 = vld [vmem:[%s693 + $0x2c] sm:$0xf]
      %v706 = vld [vmem:[%s693 + $0x30] sm:$0xf]
      %v707 = vld [vmem:[%s693 + $0x34] sm:$0xf]
      %v708 = vld [vmem:[%s693 + $0x38] sm:$0xf]
      %v709 = vld [vmem:[%s693 + $0x3c] sm:$0xf]
      %v726 = vunpack.c.l.b16 %v694
      %v727 = vunpack.c.l.b16 %v695
      %v728 = vunpack.c.l.b16 %v696
      %v729 = vunpack.c.l.b16 %v697
      %v730 = vunpack.c.l.b16 %v698
      %v731 = vunpack.c.l.b16 %v699
      %v732 = vunpack.c.l.b16 %v700
      %v733 = vunpack.c.l.b16 %v701
      %v734 = vunpack.c.l.b16 %v702
      %v735 = vunpack.c.l.b16 %v703
      %v736 = vunpack.c.l.b16 %v704
      %v737 = vunpack.c.l.b16 %v705
      %v738 = vunpack.c.l.b16 %v706
      %v739 = vunpack.c.l.b16 %v707
      %v740 = vunpack.c.l.b16 %v708
      %v741 = vunpack.c.l.b16 %v709
      %v742 = vpack.c.b16 %v727, %v726
      %v743 = vpack.c.b16 %v729, %v728
      %v744 = vpack.c.b16 %v731, %v730
      %v745 = vpack.c.b16 %v733, %v732
      %v746 = vpack.c.b16 %v735, %v734
      %v747 = vpack.c.b16 %v737, %v736
      %v748 = vpack.c.b16 %v739, %v738
      %v749 = vpack.c.b16 %v741, %v740
      %758 = vmatpush.bf16.msra.mxu0 %v749
      %759 = vmatpush.bf16.msra.mxu0 %v748
      %760 = vmatpush.bf16.msra.mxu0 %v747
      %761 = vmatpush.bf16.msra.mxu0 %v746
      %762 = vmatpush.bf16.msra.mxu0 %v745
      %763 = vmatpush.bf16.msra.mxu0 %v744
      %764 = vmatpush.bf16.msra.mxu0 %v743
      %765 = vmatpush.bf16.msra.mxu0 %v742
      %766 = vmatmul.bf16.gmra.mxu0 %v689
      %v767 = vpop.f32.mrf.mxu0
      %v768 = vadd.f32 0.0, %v767
      %v769 = vpop.f32.mrf.mxu0
      %v770 = vadd.f32 0.0, %v769
      %771 = vmatmul.bf16.gmra.mxu0 %v690
      %v772 = vpop.f32.mrf.mxu0
      %v773 = vadd.f32 0.0, %v772
      %v774 = vpop.f32.mrf.mxu0
      %v775 = vadd.f32 0.0, %v774
      %776 = vmatmul.bf16.gmra.mxu0 %v691
      %v777 = vpop.f32.mrf.mxu0
      %v778 = vadd.f32 0.0, %v777
      %v779 = vpop.f32.mrf.mxu0
      %v780 = vadd.f32 0.0, %v779
      %781 = vmatmul.bf16.gmra.mxu0 %v692
      %v782 = vpop.f32.mrf.mxu0
      %v783 = vadd.f32 0.0, %v782
      %v784 = vpop.f32.mrf.mxu0
      %v785 = vadd.f32 0.0, %v784
      %786 = vdwg.mxu0
      %v787 = vadd.f32 %v673, %v768
      %v788 = vadd.f32 %v674, %v770
      %v789 = vadd.f32 %v675, %v773
      %v790 = vadd.f32 %v676, %v775
      %v791 = vadd.f32 %v677, %v778
      %v792 = vadd.f32 %v678, %v780
      %v793 = vadd.f32 %v679, %v783
      %v794 = vadd.f32 %v680, %v785
      %v795 = vld [vmem:[%s347 + $0x1] sm:$0xff]
      %v796 = vld [vmem:[%s347 + $0x11] sm:$0xff]
      %v797 = vld [vmem:[%s347 + $0x21] sm:$0xff]
      %v798 = vld [vmem:[%s347 + $0x31] sm:$0xff]
      %v799 = vld [vmem:[%s347 + $0x41] sm:$0xff]
      %v800 = vld [vmem:[%s347 + $0x51] sm:$0xff]
      %v801 = vld [vmem:[%s347 + $0x61] sm:$0xff]
      %v802 = vld [vmem:[%s347 + $0x71] sm:$0xff]
      %v803 = vpack.c.bf16 %v796, %v795
      %v804 = vpack.c.bf16 %v798, %v797
      %v805 = vpack.c.bf16 %v800, %v799
      %v806 = vpack.c.bf16 %v802, %v801
      %s807 = scalar_lea.vmem %s3, 256
      %v808 = vld [vmem:[%s807] sm:$0xf]
      %v809 = vld [vmem:[%s807 + $0x4] sm:$0xf]
      %v810 = vld [vmem:[%s807 + $0x8] sm:$0xf]
      %v811 = vld [vmem:[%s807 + $0xc] sm:$0xf]
      %v812 = vld [vmem:[%s807 + $0x10] sm:$0xf]
      %v813 = vld [vmem:[%s807 + $0x14] sm:$0xf]
      %v814 = vld [vmem:[%s807 + $0x18] sm:$0xf]
      %v815 = vld [vmem:[%s807 + $0x1c] sm:$0xf]
      %v816 = vld [vmem:[%s807 + $0x20] sm:$0xf]
      %v817 = vld [vmem:[%s807 + $0x24] sm:$0xf]
      %v818 = vld [vmem:[%s807 + $0x28] sm:$0xf]
      %v819 = vld [vmem:[%s807 + $0x2c] sm:$0xf]
      %v820 = vld [vmem:[%s807 + $0x30] sm:$0xf]
      %v821 = vld [vmem:[%s807 + $0x34] sm:$0xf]
      %v822 = vld [vmem:[%s807 + $0x38] sm:$0xf]
      %v823 = vld [vmem:[%s807 + $0x3c] sm:$0xf]
      %v840 = vunpack.c.l.b16 %v808
      %v841 = vunpack.c.l.b16 %v809
      %v842 = vunpack.c.l.b16 %v810
      %v843 = vunpack.c.l.b16 %v811
      %v844 = vunpack.c.l.b16 %v812
      %v845 = vunpack.c.l.b16 %v813
      %v846 = vunpack.c.l.b16 %v814
      %v847 = vunpack.c.l.b16 %v815
      %v848 = vunpack.c.l.b16 %v816
      %v849 = vunpack.c.l.b16 %v817
      %v850 = vunpack.c.l.b16 %v818
      %v851 = vunpack.c.l.b16 %v819
      %v852 = vunpack.c.l.b16 %v820
      %v853 = vunpack.c.l.b16 %v821
      %v854 = vunpack.c.l.b16 %v822
      %v855 = vunpack.c.l.b16 %v823
      %v856 = vpack.c.b16 %v841, %v840
      %v857 = vpack.c.b16 %v843, %v842
      %v858 = vpack.c.b16 %v845, %v844
      %v859 = vpack.c.b16 %v847, %v846
      %v860 = vpack.c.b16 %v849, %v848
      %v861 = vpack.c.b16 %v851, %v850
      %v862 = vpack.c.b16 %v853, %v852
      %v863 = vpack.c.b16 %v855, %v854
      %872 = vmatpush.bf16.msra.mxu0 %v863
      %873 = vmatpush.bf16.msra.mxu0 %v862
      %874 = vmatpush.bf16.msra.mxu0 %v861
      %875 = vmatpush.bf16.msra.mxu0 %v860
      %876 = vmatpush.bf16.msra.mxu0 %v859
      %877 = vmatpush.bf16.msra.mxu0 %v858
      %878 = vmatpush.bf16.msra.mxu0 %v857
      %879 = vmatpush.bf16.msra.mxu0 %v856
      %880 = vmatmul.bf16.gmra.mxu0 %v803
      %v881 = vpop.f32.mrf.mxu0
      %v882 = vadd.f32 0.0, %v881
      %v883 = vpop.f32.mrf.mxu0
      %v884 = vadd.f32 0.0, %v883
      %885 = vmatmul.bf16.gmra.mxu0 %v804
      %v886 = vpop.f32.mrf.mxu0
      %v887 = vadd.f32 0.0, %v886
      %v888 = vpop.f32.mrf.mxu0
      %v889 = vadd.f32 0.0, %v888
      %890 = vmatmul.bf16.gmra.mxu0 %v805
      %v891 = vpop.f32.mrf.mxu0
      %v892 = vadd.f32 0.0, %v891
      %v893 = vpop.f32.mrf.mxu0
      %v894 = vadd.f32 0.0, %v893
      %895 = vmatmul.bf16.gmra.mxu0 %v806
      %v896 = vpop.f32.mrf.mxu0
      %v897 = vadd.f32 0.0, %v896
      %v898 = vpop.f32.mrf.mxu0
      %v899 = vadd.f32 0.0, %v898
      %900 = vdwg.mxu0
      %v901 = vadd.f32 %v787, %v882
      %v902 = vadd.f32 %v788, %v884
      %v903 = vadd.f32 %v789, %v887
      %v904 = vadd.f32 %v790, %v889
      %v905 = vadd.f32 %v791, %v892
      %v906 = vadd.f32 %v792, %v894
      %v907 = vadd.f32 %v793, %v897
      %v908 = vadd.f32 %v794, %v899
      %v909 = vld [vmem:[%s347 + $0x2] sm:$0xff]
      %v910 = vld [vmem:[%s347 + $0x12] sm:$0xff]
      %v911 = vld [vmem:[%s347 + $0x22] sm:$0xff]
      %v912 = vld [vmem:[%s347 + $0x32] sm:$0xff]
      %v913 = vld [vmem:[%s347 + $0x42] sm:$0xff]
      %v914 = vld [vmem:[%s347 + $0x52] sm:$0xff]
      %v915 = vld [vmem:[%s347 + $0x62] sm:$0xff]
      %v916 = vld [vmem:[%s347 + $0x72] sm:$0xff]
      %v917 = vpack.c.bf16 %v910, %v909
      %v918 = vpack.c.bf16 %v912, %v911
      %v919 = vpack.c.bf16 %v914, %v913
      %v920 = vpack.c.bf16 %v916, %v915
      %s921 = scalar_lea.vmem %s3, 320
      %v922 = vld [vmem:[%s921] sm:$0xf]
      %v923 = vld [vmem:[%s921 + $0x4] sm:$0xf]
      %v924 = vld [vmem:[%s921 + $0x8] sm:$0xf]
      %v925 = vld [vmem:[%s921 + $0xc] sm:$0xf]
      %v926 = vld [vmem:[%s921 + $0x10] sm:$0xf]
      %v927 = vld [vmem:[%s921 + $0x14] sm:$0xf]
      %v928 = vld [vmem:[%s921 + $0x18] sm:$0xf]
      %v929 = vld [vmem:[%s921 + $0x1c] sm:$0xf]
      %v930 = vld [vmem:[%s921 + $0x20] sm:$0xf]
      %v931 = vld [vmem:[%s921 + $0x24] sm:$0xf]
      %v932 = vld [vmem:[%s921 + $0x28] sm:$0xf]
      %v933 = vld [vmem:[%s921 + $0x2c] sm:$0xf]
      %v934 = vld [vmem:[%s921 + $0x30] sm:$0xf]
      %v935 = vld [vmem:[%s921 + $0x34] sm:$0xf]
      %v936 = vld [vmem:[%s921 + $0x38] sm:$0xf]
      %v937 = vld [vmem:[%s921 + $0x3c] sm:$0xf]
      %v954 = vunpack.c.l.b16 %v922
      %v955 = vunpack.c.l.b16 %v923
      %v956 = vunpack.c.l.b16 %v924
      %v957 = vunpack.c.l.b16 %v925
      %v958 = vunpack.c.l.b16 %v926
      %v959 = vunpack.c.l.b16 %v927
      %v960 = vunpack.c.l.b16 %v928
      %v961 = vunpack.c.l.b16 %v929
      %v962 = vunpack.c.l.b16 %v930
      %v963 = vunpack.c.l.b16 %v931
      %v964 = vunpack.c.l.b16 %v932
      %v965 = vunpack.c.l.b16 %v933
      %v966 = vunpack.c.l.b16 %v934
      %v967 = vunpack.c.l.b16 %v935
      %v968 = vunpack.c.l.b16 %v936
      %v969 = vunpack.c.l.b16 %v937
      %v970 = vpack.c.b16 %v955, %v954
      %v971 = vpack.c.b16 %v957, %v956
      %v972 = vpack.c.b16 %v959, %v958
      %v973 = vpack.c.b16 %v961, %v960
      %v974 = vpack.c.b16 %v963, %v962
      %v975 = vpack.c.b16 %v965, %v964
      %v976 = vpack.c.b16 %v967, %v966
      %v977 = vpack.c.b16 %v969, %v968
      %986 = vmatpush.bf16.msra.mxu0 %v977
      %987 = vmatpush.bf16.msra.mxu0 %v976
      %988 = vmatpush.bf16.msra.mxu0 %v975
      %989 = vmatpush.bf16.msra.mxu0 %v974
      %990 = vmatpush.bf16.msra.mxu0 %v973
      %991 = vmatpush.bf16.msra.mxu0 %v972
      %992 = vmatpush.bf16.msra.mxu0 %v971
      %993 = vmatpush.bf16.msra.mxu0 %v970
      %994 = vmatmul.bf16.gmra.mxu0 %v917
      %v995 = vpop.f32.mrf.mxu0
      %v996 = vadd.f32 0.0, %v995
      %v997 = vpop.f32.mrf.mxu0
      %v998 = vadd.f32 0.0, %v997
      %999 = vmatmul.bf16.gmra.mxu0 %v918
      %v1000 = vpop.f32.mrf.mxu0
      %v1001 = vadd.f32 0.0, %v1000
      %v1002 = vpop.f32.mrf.mxu0
      %v1003 = vadd.f32 0.0, %v1002
      %1004 = vmatmul.bf16.gmra.mxu0 %v919
      %v1005 = vpop.f32.mrf.mxu0
      %v1006 = vadd.f32 0.0, %v1005
      %v1007 = vpop.f32.mrf.mxu0
      %v1008 = vadd.f32 0.0, %v1007
      %1009 = vmatmul.bf16.gmra.mxu0 %v920
      %v1010 = vpop.f32.mrf.mxu0
      %v1011 = vadd.f32 0.0, %v1010
      %v1012 = vpop.f32.mrf.mxu0
      %v1013 = vadd.f32 0.0, %v1012
      %1014 = vdwg.mxu0
      %v1015 = vadd.f32 %v901, %v996
      %v1016 = vadd.f32 %v902, %v998
      %v1017 = vadd.f32 %v903, %v1001
      %v1018 = vadd.f32 %v904, %v1003
      %v1019 = vadd.f32 %v905, %v1006
      %v1020 = vadd.f32 %v906, %v1008
      %v1021 = vadd.f32 %v907, %v1011
      %v1022 = vadd.f32 %v908, %v1013
      %s1023 = scalar_lea.vmem [#allocation2], 32
      %v1024 = vld [vmem:[%s1023] sm:$0xff]
      %v1025 = vld [vmem:[%s1023 + $0x10] sm:$0xff]
      %v1026 = vld [vmem:[%s1023 + $0x20] sm:$0xff]
      %v1027 = vld [vmem:[%s1023 + $0x30] sm:$0xff]
      %v1028 = vld [vmem:[%s1023 + $0x40] sm:$0xff]
      %v1029 = vld [vmem:[%s1023 + $0x50] sm:$0xff]
      %v1030 = vld [vmem:[%s1023 + $0x60] sm:$0xff]
      %v1031 = vld [vmem:[%s1023 + $0x70] sm:$0xff]
      %v1032 = vpack.c.bf16 %v1025, %v1024
      %v1033 = vpack.c.bf16 %v1027, %v1026
      %v1034 = vpack.c.bf16 %v1029, %v1028
      %v1035 = vpack.c.bf16 %v1031, %v1030
      %s1036 = scalar_lea.vmem %s3, 384
      %v1037 = vld [vmem:[%s1036] sm:$0xf]
      %v1038 = vld [vmem:[%s1036 + $0x4] sm:$0xf]
      %v1039 = vld [vmem:[%s1036 + $0x8] sm:$0xf]
      %v1040 = vld [vmem:[%s1036 + $0xc] sm:$0xf]
      %v1041 = vld [vmem:[%s1036 + $0x10] sm:$0xf]
      %v1042 = vld [vmem:[%s1036 + $0x14] sm:$0xf]
      %v1043 = vld [vmem:[%s1036 + $0x18] sm:$0xf]
      %v1044 = vld [vmem:[%s1036 + $0x1c] sm:$0xf]
      %v1045 = vld [vmem:[%s1036 + $0x20] sm:$0xf]
      %v1046 = vld [vmem:[%s1036 + $0x24] sm:$0xf]
      %v1047 = vld [vmem:[%s1036 + $0x28] sm:$0xf]
      %v1048 = vld [vmem:[%s1036 + $0x2c] sm:$0xf]
      %v1049 = vld [vmem:[%s1036 + $0x30] sm:$0xf]
      %v1050 = vld [vmem:[%s1036 + $0x34] sm:$0xf]
      %v1051 = vld [vmem:[%s1036 + $0x38] sm:$0xf]
      %v1052 = vld [vmem:[%s1036 + $0x3c] sm:$0xf]
      %v1069 = vunpack.c.l.b16 %v1037
      %v1070 = vunpack.c.l.b16 %v1038
      %v1071 = vunpack.c.l.b16 %v1039
      %v1072 = vunpack.c.l.b16 %v1040
      %v1073 = vunpack.c.l.b16 %v1041
      %v1074 = vunpack.c.l.b16 %v1042
      %v1075 = vunpack.c.l.b16 %v1043
      %v1076 = vunpack.c.l.b16 %v1044
      %v1077 = vunpack.c.l.b16 %v1045
      %v1078 = vunpack.c.l.b16 %v1046
      %v1079 = vunpack.c.l.b16 %v1047
      %v1080 = vunpack.c.l.b16 %v1048
      %v1081 = vunpack.c.l.b16 %v1049
      %v1082 = vunpack.c.l.b16 %v1050
      %v1083 = vunpack.c.l.b16 %v1051
      %v1084 = vunpack.c.l.b16 %v1052
      %v1085 = vpack.c.b16 %v1070, %v1069
      %v1086 = vpack.c.b16 %v1072, %v1071
      %v1087 = vpack.c.b16 %v1074, %v1073
      %v1088 = vpack.c.b16 %v1076, %v1075
      %v1089 = vpack.c.b16 %v1078, %v1077
      %v1090 = vpack.c.b16 %v1080, %v1079
      %v1091 = vpack.c.b16 %v1082, %v1081
      %v1092 = vpack.c.b16 %v1084, %v1083
      %1101 = vmatpush.bf16.msra.mxu0 %v1092
      %1102 = vmatpush.bf16.msra.mxu0 %v1091
      %1103 = vmatpush.bf16.msra.mxu0 %v1090
      %1104 = vmatpush.bf16.msra.mxu0 %v1089
      %1105 = vmatpush.bf16.msra.mxu0 %v1088
      %1106 = vmatpush.bf16.msra.mxu0 %v1087
      %1107 = vmatpush.bf16.msra.mxu0 %v1086
      %1108 = vmatpush.bf16.msra.mxu0 %v1085
      %1109 = vmatmul.bf16.gmra.mxu0 %v1032
      %v1110 = vpop.f32.mrf.mxu0
      %v1111 = vadd.f32 0.0, %v1110
      %v1112 = vpop.f32.mrf.mxu0
      %v1113 = vadd.f32 0.0, %v1112
      %1114 = vmatmul.bf16.gmra.mxu0 %v1033
      %v1115 = vpop.f32.mrf.mxu0
      %v1116 = vadd.f32 0.0, %v1115
      %v1117 = vpop.f32.mrf.mxu0
      %v1118 = vadd.f32 0.0, %v1117
      %1119 = vmatmul.bf16.gmra.mxu0 %v1034
      %v1120 = vpop.f32.mrf.mxu0
      %v1121 = vadd.f32 0.0, %v1120
      %v1122 = vpop.f32.mrf.mxu0
      %v1123 = vadd.f32 0.0, %v1122
      %1124 = vmatmul.bf16.gmra.mxu0 %v1035
      %v1125 = vpop.f32.mrf.mxu0
      %v1126 = vadd.f32 0.0, %v1125
      %v1127 = vpop.f32.mrf.mxu0
      %v1128 = vadd.f32 0.0, %v1127
      %1129 = vdwg.mxu0
      %v1130 = vadd.f32 %v1015, %v1111
      %v1131 = vadd.f32 %v1016, %v1113
      %v1132 = vadd.f32 %v1017, %v1116
      %v1133 = vadd.f32 %v1018, %v1118
      %v1134 = vadd.f32 %v1019, %v1121
      %v1135 = vadd.f32 %v1020, %v1123
      %v1136 = vadd.f32 %v1021, %v1126
      %v1137 = vadd.f32 %v1022, %v1128
      %v1138 = vld [vmem:[%s1023 + $0x1] sm:$0xff]
      %v1139 = vld [vmem:[%s1023 + $0x11] sm:$0xff]
      %v1140 = vld [vmem:[%s1023 + $0x21] sm:$0xff]
      %v1141 = vld [vmem:[%s1023 + $0x31] sm:$0xff]
      %v1142 = vld [vmem:[%s1023 + $0x41] sm:$0xff]
      %v1143 = vld [vmem:[%s1023 + $0x51] sm:$0xff]
      %v1144 = vld [vmem:[%s1023 + $0x61] sm:$0xff]
      %v1145 = vld [vmem:[%s1023 + $0x71] sm:$0xff]
      %v1146 = vpack.c.bf16 %v1139, %v1138
      %v1147 = vpack.c.bf16 %v1141, %v1140
      %v1148 = vpack.c.bf16 %v1143, %v1142
      %v1149 = vpack.c.bf16 %v1145, %v1144
      %s1150 = scalar_lea.vmem %s3, 448
      %v1151 = vld [vmem:[%s1150] sm:$0xf]
      %v1152 = vld [vmem:[%s1150 + $0x4] sm:$0xf]
      %v1153 = vld [vmem:[%s1150 + $0x8] sm:$0xf]
      %v1154 = vld [vmem:[%s1150 + $0xc] sm:$0xf]
      %v1155 = vld [vmem:[%s1150 + $0x10] sm:$0xf]
      %v1156 = vld [vmem:[%s1150 + $0x14] sm:$0xf]
      %v1157 = vld [vmem:[%s1150 + $0x18] sm:$0xf]
      %v1158 = vld [vmem:[%s1150 + $0x1c] sm:$0xf]
      %v1159 = vld [vmem:[%s1150 + $0x20] sm:$0xf]
      %v1160 = vld [vmem:[%s1150 + $0x24] sm:$0xf]
      %v1161 = vld [vmem:[%s1150 + $0x28] sm:$0xf]
      %v1162 = vld [vmem:[%s1150 + $0x2c] sm:$0xf]
      %v1163 = vld [vmem:[%s1150 + $0x30] sm:$0xf]
      %v1164 = vld [vmem:[%s1150 + $0x34] sm:$0xf]
      %v1165 = vld [vmem:[%s1150 + $0x38] sm:$0xf]
      %v1166 = vld [vmem:[%s1150 + $0x3c] sm:$0xf]
      %v1183 = vunpack.c.l.b16 %v1151
      %v1184 = vunpack.c.l.b16 %v1152
      %v1185 = vunpack.c.l.b16 %v1153
      %v1186 = vunpack.c.l.b16 %v1154
      %v1187 = vunpack.c.l.b16 %v1155
      %v1188 = vunpack.c.l.b16 %v1156
      %v1189 = vunpack.c.l.b16 %v1157
      %v1190 = vunpack.c.l.b16 %v1158
      %v1191 = vunpack.c.l.b16 %v1159
      %v1192 = vunpack.c.l.b16 %v1160
      %v1193 = vunpack.c.l.b16 %v1161
      %v1194 = vunpack.c.l.b16 %v1162
      %v1195 = vunpack.c.l.b16 %v1163
      %v1196 = vunpack.c.l.b16 %v1164
      %v1197 = vunpack.c.l.b16 %v1165
      %v1198 = vunpack.c.l.b16 %v1166
      %v1199 = vpack.c.b16 %v1184, %v1183
      %v1200 = vpack.c.b16 %v1186, %v1185
      %v1201 = vpack.c.b16 %v1188, %v1187
      %v1202 = vpack.c.b16 %v1190, %v1189
      %v1203 = vpack.c.b16 %v1192, %v1191
      %v1204 = vpack.c.b16 %v1194, %v1193
      %v1205 = vpack.c.b16 %v1196, %v1195
      %v1206 = vpack.c.b16 %v1198, %v1197
      %1215 = vmatpush.bf16.msra.mxu0 %v1206
      %1216 = vmatpush.bf16.msra.mxu0 %v1205
      %1217 = vmatpush.bf16.msra.mxu0 %v1204
      %1218 = vmatpush.bf16.msra.mxu0 %v1203
      %1219 = vmatpush.bf16.msra.mxu0 %v1202
      %1220 = vmatpush.bf16.msra.mxu0 %v1201
      %1221 = vmatpush.bf16.msra.mxu0 %v1200
      %1222 = vmatpush.bf16.msra.mxu0 %v1199
      %1223 = vmatmul.bf16.gmra.mxu0 %v1146
      %v1224 = vpop.f32.mrf.mxu0
      %v1225 = vadd.f32 0.0, %v1224
      %v1226 = vpop.f32.mrf.mxu0
      %v1227 = vadd.f32 0.0, %v1226
      %1228 = vmatmul.bf16.gmra.mxu0 %v1147
      %v1229 = vpop.f32.mrf.mxu0
      %v1230 = vadd.f32 0.0, %v1229
      %v1231 = vpop.f32.mrf.mxu0
      %v1232 = vadd.f32 0.0, %v1231
      %1233 = vmatmul.bf16.gmra.mxu0 %v1148
      %v1234 = vpop.f32.mrf.mxu0
      %v1235 = vadd.f32 0.0, %v1234
      %v1236 = vpop.f32.mrf.mxu0
      %v1237 = vadd.f32 0.0, %v1236
      %1238 = vmatmul.bf16.gmra.mxu0 %v1149
      %v1239 = vpop.f32.mrf.mxu0
      %v1240 = vadd.f32 0.0, %v1239
      %v1241 = vpop.f32.mrf.mxu0
      %v1242 = vadd.f32 0.0, %v1241
      %1243 = vdwg.mxu0
      %v1244 = vadd.f32 %v1130, %v1225
      %v1245 = vadd.f32 %v1131, %v1227
      %v1246 = vadd.f32 %v1132, %v1230
      %v1247 = vadd.f32 %v1133, %v1232
      %v1248 = vadd.f32 %v1134, %v1235
      %v1249 = vadd.f32 %v1135, %v1237
      %v1250 = vadd.f32 %v1136, %v1240
      %v1251 = vadd.f32 %v1137, %v1242
      %v1252 = vld [vmem:[%s1023 + $0x2] sm:$0xff]
      %v1253 = vld [vmem:[%s1023 + $0x12] sm:$0xff]
      %v1254 = vld [vmem:[%s1023 + $0x22] sm:$0xff]
      %v1255 = vld [vmem:[%s1023 + $0x32] sm:$0xff]
      %v1256 = vld [vmem:[%s1023 + $0x42] sm:$0xff]
      %v1257 = vld [vmem:[%s1023 + $0x52] sm:$0xff]
      %v1258 = vld [vmem:[%s1023 + $0x62] sm:$0xff]
      %v1259 = vld [vmem:[%s1023 + $0x72] sm:$0xff]
      %v1260 = vpack.c.bf16 %v1253, %v1252
      %v1261 = vpack.c.bf16 %v1255, %v1254
      %v1262 = vpack.c.bf16 %v1257, %v1256
      %v1263 = vpack.c.bf16 %v1259, %v1258
      %s1264 = scalar_lea.vmem %s3, 512
      %v1265 = vld [vmem:[%s1264] sm:$0xf]
      %v1266 = vld [vmem:[%s1264 + $0x4] sm:$0xf]
      %v1267 = vld [vmem:[%s1264 + $0x8] sm:$0xf]
      %v1268 = vld [vmem:[%s1264 + $0xc] sm:$0xf]
      %v1269 = vld [vmem:[%s1264 + $0x10] sm:$0xf]
      %v1270 = vld [vmem:[%s1264 + $0x14] sm:$0xf]
      %v1271 = vld [vmem:[%s1264 + $0x18] sm:$0xf]
      %v1272 = vld [vmem:[%s1264 + $0x1c] sm:$0xf]
      %v1273 = vld [vmem:[%s1264 + $0x20] sm:$0xf]
      %v1274 = vld [vmem:[%s1264 + $0x24] sm:$0xf]
      %v1275 = vld [vmem:[%s1264 + $0x28] sm:$0xf]
      %v1276 = vld [vmem:[%s1264 + $0x2c] sm:$0xf]
      %v1277 = vld [vmem:[%s1264 + $0x30] sm:$0xf]
      %v1278 = vld [vmem:[%s1264 + $0x34] sm:$0xf]
      %v1279 = vld [vmem:[%s1264 + $0x38] sm:$0xf]
      %v1280 = vld [vmem:[%s1264 + $0x3c] sm:$0xf]
      %v1297 = vunpack.c.l.b16 %v1265
      %v1298 = vunpack.c.l.b16 %v1266
      %v1299 = vunpack.c.l.b16 %v1267
      %v1300 = vunpack.c.l.b16 %v1268
      %v1301 = vunpack.c.l.b16 %v1269
      %v1302 = vunpack.c.l.b16 %v1270
      %v1303 = vunpack.c.l.b16 %v1271
      %v1304 = vunpack.c.l.b16 %v1272
      %v1305 = vunpack.c.l.b16 %v1273
      %v1306 = vunpack.c.l.b16 %v1274
      %v1307 = vunpack.c.l.b16 %v1275
      %v1308 = vunpack.c.l.b16 %v1276
      %v1309 = vunpack.c.l.b16 %v1277
      %v1310 = vunpack.c.l.b16 %v1278
      %v1311 = vunpack.c.l.b16 %v1279
      %v1312 = vunpack.c.l.b16 %v1280
      %v1313 = vpack.c.b16 %v1298, %v1297
      %v1314 = vpack.c.b16 %v1300, %v1299
      %v1315 = vpack.c.b16 %v1302, %v1301
      %v1316 = vpack.c.b16 %v1304, %v1303
      %v1317 = vpack.c.b16 %v1306, %v1305
      %v1318 = vpack.c.b16 %v1308, %v1307
      %v1319 = vpack.c.b16 %v1310, %v1309
      %v1320 = vpack.c.b16 %v1312, %v1311
      %1329 = vmatpush.bf16.msra.mxu0 %v1320
      %1330 = vmatpush.bf16.msra.mxu0 %v1319
      %1331 = vmatpush.bf16.msra.mxu0 %v1318
      %1332 = vmatpush.bf16.msra.mxu0 %v1317
      %1333 = vmatpush.bf16.msra.mxu0 %v1316
      %1334 = vmatpush.bf16.msra.mxu0 %v1315
      %1335 = vmatpush.bf16.msra.mxu0 %v1314
      %1336 = vmatpush.bf16.msra.mxu0 %v1313
      %1337 = vmatmul.bf16.gmra.mxu0 %v1260
      %v1338 = vpop.f32.mrf.mxu0
      %v1339 = vadd.f32 0.0, %v1338
      %v1340 = vpop.f32.mrf.mxu0
      %v1341 = vadd.f32 0.0, %v1340
      %1342 = vmatmul.bf16.gmra.mxu0 %v1261
      %v1343 = vpop.f32.mrf.mxu0
      %v1344 = vadd.f32 0.0, %v1343
      %v1345 = vpop.f32.mrf.mxu0
      %v1346 = vadd.f32 0.0, %v1345
      %1347 = vmatmul.bf16.gmra.mxu0 %v1262
      %v1348 = vpop.f32.mrf.mxu0
      %v1349 = vadd.f32 0.0, %v1348
      %v1350 = vpop.f32.mrf.mxu0
      %v1351 = vadd.f32 0.0, %v1350
      %1352 = vmatmul.bf16.gmra.mxu0 %v1263
      %v1353 = vpop.f32.mrf.mxu0
      %v1354 = vadd.f32 0.0, %v1353
      %v1355 = vpop.f32.mrf.mxu0
      %v1356 = vadd.f32 0.0, %v1355
      %1357 = vdwg.mxu0
      %v1358 = vadd.f32 %v1244, %v1339
      %v1359 = vadd.f32 %v1245, %v1341
      %v1360 = vadd.f32 %v1246, %v1344
      %v1361 = vadd.f32 %v1247, %v1346
      %v1362 = vadd.f32 %v1248, %v1349
      %v1363 = vadd.f32 %v1249, %v1351
      %v1364 = vadd.f32 %v1250, %v1354
      %v1365 = vadd.f32 %v1251, %v1356
      %1366 = vst [vmem:[#allocation3] sm:$0xff] 0.0
      %1367 = vst [vmem:[#allocation3 + $0x8] sm:$0x3] 0.0
      %1368 = vst [vmem:[#allocation3 + $0x10] sm:$0xff] 0.0
      %1369 = vst [vmem:[#allocation3 + $0x18] sm:$0x3] 0.0
      %1370 = vst [vmem:[#allocation3 + $0x20] sm:$0xff] 0.0
      %1371 = vst [vmem:[#allocation3 + $0x28] sm:$0x3] 0.0
      %1372 = vst [vmem:[#allocation3 + $0x30] sm:$0xff] 0.0
      %1373 = vst [vmem:[#allocation3 + $0x38] sm:$0x3] 0.0
      %1374 = vst [vmem:[#allocation3 + $0x40] sm:$0xff] 0.0
      %1375 = vst [vmem:[#allocation3 + $0x48] sm:$0x3] 0.0
      %1376 = vst [vmem:[#allocation3 + $0x50] sm:$0xff] 0.0
      %1377 = vst [vmem:[#allocation3 + $0x58] sm:$0x3] 0.0
      %1378 = vst [vmem:[#allocation3 + $0x60] sm:$0xff] 0.0
      %1379 = vst [vmem:[#allocation3 + $0x68] sm:$0x3] 0.0
      %1380 = vst [vmem:[#allocation3 + $0x70] sm:$0xff] 0.0
      %1381 = vst [vmem:[#allocation3 + $0x78] sm:$0x3] 0.0
      %1382 = vst [vmem:[#allocation3 + $0x80] sm:$0xff] 0.0
      %1383 = vst [vmem:[#allocation3 + $0x88] sm:$0x3] 0.0
      %1384 = vst [vmem:[#allocation3 + $0x90] sm:$0xff] 0.0
      %1385 = vst [vmem:[#allocation3 + $0x98] sm:$0x3] 0.0
      %v1386 = vld [vmem:[%s4] sm:$0x1]
      %v1388 = vperm.slane %v1386, 0
      %v1390 = vmul.f32 %v1358, %v1388
      %v1391 = vmul.f32 %v1359, %v1388
      %v1392 = vmul.f32 %v1360, %v1388
      %v1393 = vmul.f32 %v1361, %v1388
      %v1394 = vmul.f32 %v1362, %v1388
      %v1395 = vmul.f32 %v1363, %v1388
      %v1396 = vmul.f32 %v1364, %v1388
      %v1397 = vmul.f32 %v1365, %v1388
      %v1398 = vld [vmem:[%s5] sm:$0x1]
      %v1400 = vperm.slane %v1398, 0
      %v1402 = vadd.f32 %v1390, %v1400
      %v1403 = vadd.f32 %v1391, %v1400
      %v1404 = vadd.f32 %v1392, %v1400
      %v1405 = vadd.f32 %v1393, %v1400
      %v1406 = vadd.f32 %v1394, %v1400
      %v1407 = vadd.f32 %v1395, %v1400
      %v1408 = vadd.f32 %v1396, %v1400
      %v1409 = vadd.f32 %v1397, %v1400
      %v1410 = vmax.f32 %v1402, 0.0
      %v1411 = vmax.f32 %v1403, 0.0
      %v1412 = vmax.f32 %v1404, 0.0
      %v1413 = vmax.f32 %v1405, 0.0
      %v1414 = vmax.f32 %v1406, 0.0
      %v1415 = vmax.f32 %v1407, 0.0
      %v1416 = vmax.f32 %v1408, 0.0
      %v1417 = vmax.f32 %v1409, 0.0
      %s1418 = scalar_lea.vmem [#allocation3], 16
      %1419 = vst [vmem:[%s1418 + $0x1] sm:$0xff] %v1410
      %1420 = vst [vmem:[%s1418 + $0x11] sm:$0xff] %v1411
      %1421 = vst [vmem:[%s1418 + $0x21] sm:$0xff] %v1412
      %1422 = vst [vmem:[%s1418 + $0x31] sm:$0xff] %v1413
      %1423 = vst [vmem:[%s1418 + $0x41] sm:$0xff] %v1414
      %1424 = vst [vmem:[%s1418 + $0x51] sm:$0xff] %v1415
      %1425 = vst [vmem:[%s1418 + $0x61] sm:$0xff] %v1416
      %1426 = vst [vmem:[%s1418 + $0x71] sm:$0xff] %v1417
      %v1427 = vld [vmem:[#allocation3] sm:$0xff]
      %v1428 = vld [vmem:[#allocation3 + $0x10] sm:$0xff]
      %v1429 = vld [vmem:[#allocation3 + $0x20] sm:$0xff]
      %v1430 = vld [vmem:[#allocation3 + $0x30] sm:$0xff]
      %v1431 = vld [vmem:[#allocation3 + $0x40] sm:$0xff]
      %v1432 = vld [vmem:[#allocation3 + $0x50] sm:$0xff]
      %v1433 = vld [vmem:[#allocation3 + $0x60] sm:$0xff]
      %v1434 = vld [vmem:[#allocation3 + $0x70] sm:$0xff]
      %v1435 = vpack.c.bf16 %v1428, %v1427
      %v1436 = vpack.c.bf16 %v1430, %v1429
      %v1437 = vpack.c.bf16 %v1432, %v1431
      %v1438 = vpack.c.bf16 %v1434, %v1433
      %v1439 = vld [vmem:[%s6] sm:$0xf]
      %v1440 = vld [vmem:[%s6 + $0x4] sm:$0xf]
      %v1441 = vld [vmem:[%s6 + $0x8] sm:$0xf]
      %v1442 = vld [vmem:[%s6 + $0xc] sm:$0xf]
      %v1443 = vld [vmem:[%s6 + $0x10] sm:$0xf]
      %v1444 = vld [vmem:[%s6 + $0x14] sm:$0xf]
      %v1445 = vld [vmem:[%s6 + $0x18] sm:$0xf]
      %v1446 = vld [vmem:[%s6 + $0x1c] sm:$0xf]
      %v1447 = vld [vmem:[%s6 + $0x20] sm:$0xf]
      %v1448 = vld [vmem:[%s6 + $0x24] sm:$0xf]
      %v1449 = vld [vmem:[%s6 + $0x28] sm:$0xf]
      %v1450 = vld [vmem:[%s6 + $0x2c] sm:$0xf]
      %v1451 = vld [vmem:[%s6 + $0x30] sm:$0xf]
      %v1452 = vld [vmem:[%s6 + $0x34] sm:$0xf]
      %v1453 = vld [vmem:[%s6 + $0x38] sm:$0xf]
      %v1454 = vld [vmem:[%s6 + $0x3c] sm:$0xf]
      %v1455 = vld [vmem:[#allocation3 + $0x1] sm:$0xff]
      %v1456 = vld [vmem:[#allocation3 + $0x11] sm:$0xff]
      %v1457 = vld [vmem:[#allocation3 + $0x21] sm:$0xff]
      %v1458 = vld [vmem:[#allocation3 + $0x31] sm:$0xff]
      %v1459 = vld [vmem:[#allocation3 + $0x41] sm:$0xff]
      %v1460 = vld [vmem:[#allocation3 + $0x51] sm:$0xff]
      %v1461 = vld [vmem:[#allocation3 + $0x61] sm:$0xff]
      %v1462 = vld [vmem:[#allocation3 + $0x71] sm:$0xff]
      %v1463 = vpack.c.bf16 %v1456, %v1455
      %v1464 = vpack.c.bf16 %v1458, %v1457
      %v1465 = vpack.c.bf16 %v1460, %v1459
      %v1466 = vpack.c.bf16 %v1462, %v1461
      %s1467 = scalar_lea.vmem %s6, 64
      %v1468 = vld [vmem:[%s1467] sm:$0xf]
      %v1469 = vld [vmem:[%s1467 + $0x4] sm:$0xf]
      %v1470 = vld [vmem:[%s1467 + $0x8] sm:$0xf]
      %v1471 = vld [vmem:[%s1467 + $0xc] sm:$0xf]
      %v1472 = vld [vmem:[%s1467 + $0x10] sm:$0xf]
      %v1473 = vld [vmem:[%s1467 + $0x14] sm:$0xf]
      %v1474 = vld [vmem:[%s1467 + $0x18] sm:$0xf]
      %v1475 = vld [vmem:[%s1467 + $0x1c] sm:$0xf]
      %v1476 = vld [vmem:[%s1467 + $0x20] sm:$0xf]
      %v1477 = vld [vmem:[%s1467 + $0x24] sm:$0xf]
      %v1478 = vld [vmem:[%s1467 + $0x28] sm:$0xf]
      %v1479 = vld [vmem:[%s1467 + $0x2c] sm:$0xf]
      %v1480 = vld [vmem:[%s1467 + $0x30] sm:$0xf]
      %v1481 = vld [vmem:[%s1467 + $0x34] sm:$0xf]
      %v1482 = vld [vmem:[%s1467 + $0x38] sm:$0xf]
      %v1483 = vld [vmem:[%s1467 + $0x3c] sm:$0xf]
      %v1500 = vunpack.c.l.b16 %v1468
      %v1501 = vunpack.c.l.b16 %v1469
      %v1502 = vunpack.c.l.b16 %v1470
      %v1503 = vunpack.c.l.b16 %v1471
      %v1504 = vunpack.c.l.b16 %v1472
      %v1505 = vunpack.c.l.b16 %v1473
      %v1506 = vunpack.c.l.b16 %v1474
      %v1507 = vunpack.c.l.b16 %v1475
      %v1508 = vunpack.c.l.b16 %v1476
      %v1509 = vunpack.c.l.b16 %v1477
      %v1510 = vunpack.c.l.b16 %v1478
      %v1511 = vunpack.c.l.b16 %v1479
      %v1512 = vunpack.c.l.b16 %v1480
      %v1513 = vunpack.c.l.b16 %v1481
      %v1514 = vunpack.c.l.b16 %v1482
      %v1515 = vunpack.c.l.b16 %v1483
      %v1516 = vpack.c.b16 %v1501, %v1500
      %v1517 = vpack.c.b16 %v1503, %v1502
      %v1518 = vpack.c.b16 %v1505, %v1504
      %v1519 = vpack.c.b16 %v1507, %v1506
      %v1520 = vpack.c.b16 %v1509, %v1508
      %v1521 = vpack.c.b16 %v1511, %v1510
      %v1522 = vpack.c.b16 %v1513, %v1512
      %v1523 = vpack.c.b16 %v1515, %v1514
      %1532 = vmatpush.bf16.msra.mxu0 %v1523
      %1533 = vmatpush.bf16.msra.mxu0 %v1522
      %1534 = vmatpush.bf16.msra.mxu0 %v1521
      %1535 = vmatpush.bf16.msra.mxu0 %v1520
      %1536 = vmatpush.bf16.msra.mxu0 %v1519
      %1537 = vmatpush.bf16.msra.mxu0 %v1518
      %1538 = vmatpush.bf16.msra.mxu0 %v1517
      %1539 = vmatpush.bf16.msra.mxu0 %v1516
      %1540 = vmatmul.bf16.gmra.mxu0 %v1463
      %v1541 = vpop.f32.mrf.mxu0
      %v1542 = vadd.f32 0.0, %v1541
      %v1543 = vpop.f32.mrf.mxu0
      %v1544 = vadd.f32 0.0, %v1543
      %1545 = vmatmul.bf16.gmra.mxu0 %v1464
      %v1546 = vpop.f32.mrf.mxu0
      %v1547 = vadd.f32 0.0, %v1546
      %v1548 = vpop.f32.mrf.mxu0
      %v1549 = vadd.f32 0.0, %v1548
      %1550 = vmatmul.bf16.gmra.mxu0 %v1465
      %v1551 = vpop.f32.mrf.mxu0
      %v1552 = vadd.f32 0.0, %v1551
      %v1553 = vpop.f32.mrf.mxu0
      %v1554 = vadd.f32 0.0, %v1553
      %1555 = vmatmul.bf16.gmra.mxu0 %v1466
      %v1556 = vpop.f32.mrf.mxu0
      %v1557 = vadd.f32 0.0, %v1556
      %v1558 = vpop.f32.mrf.mxu0
      %v1559 = vadd.f32 0.0, %v1558
      %1560 = vdwg.mxu0
      %v1577 = vunpack.c.l.b16 %v1439
      %v1578 = vunpack.c.l.b16 %v1440
      %v1579 = vunpack.c.l.b16 %v1441
      %v1580 = vunpack.c.l.b16 %v1442
      %v1581 = vunpack.c.l.b16 %v1443
      %v1582 = vunpack.c.l.b16 %v1444
      %v1583 = vunpack.c.l.b16 %v1445
      %v1584 = vunpack.c.l.b16 %v1446
      %v1585 = vunpack.c.l.b16 %v1447
      %v1586 = vunpack.c.l.b16 %v1448
      %v1587 = vunpack.c.l.b16 %v1449
      %v1588 = vunpack.c.l.b16 %v1450
      %v1589 = vunpack.c.l.b16 %v1451
      %v1590 = vunpack.c.l.b16 %v1452
      %v1591 = vunpack.c.l.b16 %v1453
      %v1592 = vunpack.c.l.b16 %v1454
      %v1593 = vpack.c.b16 %v1578, %v1577
      %v1594 = vpack.c.b16 %v1580, %v1579
      %v1595 = vpack.c.b16 %v1582, %v1581
      %v1596 = vpack.c.b16 %v1584, %v1583
      %v1597 = vpack.c.b16 %v1586, %v1585
      %v1598 = vpack.c.b16 %v1588, %v1587
      %v1599 = vpack.c.b16 %v1590, %v1589
      %v1600 = vpack.c.b16 %v1592, %v1591
      %1609 = vmatpush.bf16.msra.mxu0 %v1600
      %1610 = vmatpush.bf16.msra.mxu0 %v1599
      %1611 = vmatpush.bf16.msra.mxu0 %v1598
      %1612 = vmatpush.bf16.msra.mxu0 %v1597
      %1613 = vmatpush.bf16.msra.mxu0 %v1596
      %1614 = vmatpush.bf16.msra.mxu0 %v1595
      %1615 = vmatpush.bf16.msra.mxu0 %v1594
      %1616 = vmatpush.bf16.msra.mxu0 %v1593
      %1617 = vmatmul.bf16.gmra.mxu0 %v1435
      %v1618 = vpop.f32.mrf.mxu0
      %v1619 = vadd.f32 %v1542, %v1618
      %v1620 = vpop.f32.mrf.mxu0
      %v1621 = vadd.f32 %v1544, %v1620
      %1622 = vmatmul.bf16.gmra.mxu0 %v1436
      %v1623 = vpop.f32.mrf.mxu0
      %v1624 = vadd.f32 %v1547, %v1623
      %v1625 = vpop.f32.mrf.mxu0
      %v1626 = vadd.f32 %v1549, %v1625
      %1627 = vmatmul.bf16.gmra.mxu0 %v1437
      %v1628 = vpop.f32.mrf.mxu0
      %v1629 = vadd.f32 %v1552, %v1628
      %v1630 = vpop.f32.mrf.mxu0
      %v1631 = vadd.f32 %v1554, %v1630
      %1632 = vmatmul.bf16.gmra.mxu0 %v1438
      %v1633 = vpop.f32.mrf.mxu0
      %v1634 = vadd.f32 %v1557, %v1633
      %v1635 = vpop.f32.mrf.mxu0
      %v1636 = vadd.f32 %v1559, %v1635
      %1637 = vdwg.mxu0
      %v1638 = vld [vmem:[#allocation3 + $0x2] sm:$0xff]
      %v1639 = vld [vmem:[#allocation3 + $0x12] sm:$0xff]
      %v1640 = vld [vmem:[#allocation3 + $0x22] sm:$0xff]
      %v1641 = vld [vmem:[#allocation3 + $0x32] sm:$0xff]
      %v1642 = vld [vmem:[#allocation3 + $0x42] sm:$0xff]
      %v1643 = vld [vmem:[#allocation3 + $0x52] sm:$0xff]
      %v1644 = vld [vmem:[#allocation3 + $0x62] sm:$0xff]
      %v1645 = vld [vmem:[#allocation3 + $0x72] sm:$0xff]
      %v1646 = vpack.c.bf16 %v1639, %v1638
      %v1647 = vpack.c.bf16 %v1641, %v1640
      %v1648 = vpack.c.bf16 %v1643, %v1642
      %v1649 = vpack.c.bf16 %v1645, %v1644
      %s1650 = scalar_lea.vmem %s6, 128
      %v1651 = vld [vmem:[%s1650] sm:$0xf]
      %v1652 = vld [vmem:[%s1650 + $0x4] sm:$0xf]
      %v1653 = vld [vmem:[%s1650 + $0x8] sm:$0xf]
      %v1654 = vld [vmem:[%s1650 + $0xc] sm:$0xf]
      %v1655 = vld [vmem:[%s1650 + $0x10] sm:$0xf]
      %v1656 = vld [vmem:[%s1650 + $0x14] sm:$0xf]
      %v1657 = vld [vmem:[%s1650 + $0x18] sm:$0xf]
      %v1658 = vld [vmem:[%s1650 + $0x1c] sm:$0xf]
      %v1659 = vld [vmem:[%s1650 + $0x20] sm:$0xf]
      %v1660 = vld [vmem:[%s1650 + $0x24] sm:$0xf]
      %v1661 = vld [vmem:[%s1650 + $0x28] sm:$0xf]
      %v1662 = vld [vmem:[%s1650 + $0x2c] sm:$0xf]
      %v1663 = vld [vmem:[%s1650 + $0x30] sm:$0xf]
      %v1664 = vld [vmem:[%s1650 + $0x34] sm:$0xf]
      %v1665 = vld [vmem:[%s1650 + $0x38] sm:$0xf]
      %v1666 = vld [vmem:[%s1650 + $0x3c] sm:$0xf]
      %v1683 = vunpack.c.l.b16 %v1651
      %v1684 = vunpack.c.l.b16 %v1652
      %v1685 = vunpack.c.l.b16 %v1653
      %v1686 = vunpack.c.l.b16 %v1654
      %v1687 = vunpack.c.l.b16 %v1655
      %v1688 = vunpack.c.l.b16 %v1656
      %v1689 = vunpack.c.l.b16 %v1657
      %v1690 = vunpack.c.l.b16 %v1658
      %v1691 = vunpack.c.l.b16 %v1659
      %v1692 = vunpack.c.l.b16 %v1660
      %v1693 = vunpack.c.l.b16 %v1661
      %v1694 = vunpack.c.l.b16 %v1662
      %v1695 = vunpack.c.l.b16 %v1663
      %v1696 = vunpack.c.l.b16 %v1664
      %v1697 = vunpack.c.l.b16 %v1665
      %v1698 = vunpack.c.l.b16 %v1666
      %v1699 = vpack.c.b16 %v1684, %v1683
      %v1700 = vpack.c.b16 %v1686, %v1685
      %v1701 = vpack.c.b16 %v1688, %v1687
      %v1702 = vpack.c.b16 %v1690, %v1689
      %v1703 = vpack.c.b16 %v1692, %v1691
      %v1704 = vpack.c.b16 %v1694, %v1693
      %v1705 = vpack.c.b16 %v1696, %v1695
      %v1706 = vpack.c.b16 %v1698, %v1697
      %1715 = vmatpush.bf16.msra.mxu0 %v1706
      %1716 = vmatpush.bf16.msra.mxu0 %v1705
      %1717 = vmatpush.bf16.msra.mxu0 %v1704
      %1718 = vmatpush.bf16.msra.mxu0 %v1703
      %1719 = vmatpush.bf16.msra.mxu0 %v1702
      %1720 = vmatpush.bf16.msra.mxu0 %v1701
      %1721 = vmatpush.bf16.msra.mxu0 %v1700
      %1722 = vmatpush.bf16.msra.mxu0 %v1699
      %1723 = vmatmul.bf16.gmra.mxu0 %v1646
      %v1724 = vpop.f32.mrf.mxu0
      %v1725 = vadd.f32 0.0, %v1724
      %v1726 = vpop.f32.mrf.mxu0
      %v1727 = vadd.f32 0.0, %v1726
      %1728 = vmatmul.bf16.gmra.mxu0 %v1647
      %v1729 = vpop.f32.mrf.mxu0
      %v1730 = vadd.f32 0.0, %v1729
      %v1731 = vpop.f32.mrf.mxu0
      %v1732 = vadd.f32 0.0, %v1731
      %1733 = vmatmul.bf16.gmra.mxu0 %v1648
      %v1734 = vpop.f32.mrf.mxu0
      %v1735 = vadd.f32 0.0, %v1734
      %v1736 = vpop.f32.mrf.mxu0
      %v1737 = vadd.f32 0.0, %v1736
      %1738 = vmatmul.bf16.gmra.mxu0 %v1649
      %v1739 = vpop.f32.mrf.mxu0
      %v1740 = vadd.f32 0.0, %v1739
      %v1741 = vpop.f32.mrf.mxu0
      %v1742 = vadd.f32 0.0, %v1741
      %1743 = vdwg.mxu0
      %v1744 = vadd.f32 %v1619, %v1725
      %v1745 = vadd.f32 %v1621, %v1727
      %v1746 = vadd.f32 %v1624, %v1730
      %v1747 = vadd.f32 %v1626, %v1732
      %v1748 = vadd.f32 %v1629, %v1735
      %v1749 = vadd.f32 %v1631, %v1737
      %v1750 = vadd.f32 %v1634, %v1740
      %v1751 = vadd.f32 %v1636, %v1742
      %v1752 = vld [vmem:[%s1418] sm:$0xff]
      %v1753 = vld [vmem:[%s1418 + $0x10] sm:$0xff]
      %v1754 = vld [vmem:[%s1418 + $0x20] sm:$0xff]
      %v1755 = vld [vmem:[%s1418 + $0x30] sm:$0xff]
      %v1756 = vld [vmem:[%s1418 + $0x40] sm:$0xff]
      %v1757 = vld [vmem:[%s1418 + $0x50] sm:$0xff]
      %v1758 = vld [vmem:[%s1418 + $0x60] sm:$0xff]
      %v1759 = vld [vmem:[%s1418 + $0x70] sm:$0xff]
      %v1760 = vpack.c.bf16 %v1753, %v1752
      %v1761 = vpack.c.bf16 %v1755, %v1754
      %v1762 = vpack.c.bf16 %v1757, %v1756
      %v1763 = vpack.c.bf16 %v1759, %v1758
      %s1764 = scalar_lea.vmem %s6, 192
      %v1765 = vld [vmem:[%s1764] sm:$0xf]
      %v1766 = vld [vmem:[%s1764 + $0x4] sm:$0xf]
      %v1767 = vld [vmem:[%s1764 + $0x8] sm:$0xf]
      %v1768 = vld [vmem:[%s1764 + $0xc] sm:$0xf]
      %v1769 = vld [vmem:[%s1764 + $0x10] sm:$0xf]
      %v1770 = vld [vmem:[%s1764 + $0x14] sm:$0xf]
      %v1771 = vld [vmem:[%s1764 + $0x18] sm:$0xf]
      %v1772 = vld [vmem:[%s1764 + $0x1c] sm:$0xf]
      %v1773 = vld [vmem:[%s1764 + $0x20] sm:$0xf]
      %v1774 = vld [vmem:[%s1764 + $0x24] sm:$0xf]
      %v1775 = vld [vmem:[%s1764 + $0x28] sm:$0xf]
      %v1776 = vld [vmem:[%s1764 + $0x2c] sm:$0xf]
      %v1777 = vld [vmem:[%s1764 + $0x30] sm:$0xf]
      %v1778 = vld [vmem:[%s1764 + $0x34] sm:$0xf]
      %v1779 = vld [vmem:[%s1764 + $0x38] sm:$0xf]
      %v1780 = vld [vmem:[%s1764 + $0x3c] sm:$0xf]
      %v1797 = vunpack.c.l.b16 %v1765
      %v1798 = vunpack.c.l.b16 %v1766
      %v1799 = vunpack.c.l.b16 %v1767
      %v1800 = vunpack.c.l.b16 %v1768
      %v1801 = vunpack.c.l.b16 %v1769
      %v1802 = vunpack.c.l.b16 %v1770
      %v1803 = vunpack.c.l.b16 %v1771
      %v1804 = vunpack.c.l.b16 %v1772
      %v1805 = vunpack.c.l.b16 %v1773
      %v1806 = vunpack.c.l.b16 %v1774
      %v1807 = vunpack.c.l.b16 %v1775
      %v1808 = vunpack.c.l.b16 %v1776
      %v1809 = vunpack.c.l.b16 %v1777
      %v1810 = vunpack.c.l.b16 %v1778
      %v1811 = vunpack.c.l.b16 %v1779
      %v1812 = vunpack.c.l.b16 %v1780
      %v1813 = vpack.c.b16 %v1798, %v1797
      %v1814 = vpack.c.b16 %v1800, %v1799
      %v1815 = vpack.c.b16 %v1802, %v1801
      %v1816 = vpack.c.b16 %v1804, %v1803
      %v1817 = vpack.c.b16 %v1806, %v1805
      %v1818 = vpack.c.b16 %v1808, %v1807
      %v1819 = vpack.c.b16 %v1810, %v1809
      %v1820 = vpack.c.b16 %v1812, %v1811
      %1829 = vmatpush.bf16.msra.mxu0 %v1820
      %1830 = vmatpush.bf16.msra.mxu0 %v1819
      %1831 = vmatpush.bf16.msra.mxu0 %v1818
      %1832 = vmatpush.bf16.msra.mxu0 %v1817
      %1833 = vmatpush.bf16.msra.mxu0 %v1816
      %1834 = vmatpush.bf16.msra.mxu0 %v1815
      %1835 = vmatpush.bf16.msra.mxu0 %v1814
      %1836 = vmatpush.bf16.msra.mxu0 %v1813
      %1837 = vmatmul.bf16.gmra.mxu0 %v1760
      %v1838 = vpop.f32.mrf.mxu0
      %v1839 = vadd.f32 0.0, %v1838
      %v1840 = vpop.f32.mrf.mxu0
      %v1841 = vadd.f32 0.0, %v1840
      %1842 = vmatmul.bf16.gmra.mxu0 %v1761
      %v1843 = vpop.f32.mrf.mxu0
      %v1844 = vadd.f32 0.0, %v1843
      %v1845 = vpop.f32.mrf.mxu0
      %v1846 = vadd.f32 0.0, %v1845
      %1847 = vmatmul.bf16.gmra.mxu0 %v1762
      %v1848 = vpop.f32.mrf.mxu0
      %v1849 = vadd.f32 0.0, %v1848
      %v1850 = vpop.f32.mrf.mxu0
      %v1851 = vadd.f32 0.0, %v1850
      %1852 = vmatmul.bf16.gmra.mxu0 %v1763
      %v1853 = vpop.f32.mrf.mxu0
      %v1854 = vadd.f32 0.0, %v1853
      %v1855 = vpop.f32.mrf.mxu0
      %v1856 = vadd.f32 0.0, %v1855
      %1857 = vdwg.mxu0
      %v1858 = vadd.f32 %v1744, %v1839
      %v1859 = vadd.f32 %v1745, %v1841
      %v1860 = vadd.f32 %v1746, %v1844
      %v1861 = vadd.f32 %v1747, %v1846
      %v1862 = vadd.f32 %v1748, %v1849
      %v1863 = vadd.f32 %v1749, %v1851
      %v1864 = vadd.f32 %v1750, %v1854
      %v1865 = vadd.f32 %v1751, %v1856
      %v1866 = vld [vmem:[%s1418 + $0x1] sm:$0xff]
      %v1867 = vld [vmem:[%s1418 + $0x11] sm:$0xff]
      %v1868 = vld [vmem:[%s1418 + $0x21] sm:$0xff]
      %v1869 = vld [vmem:[%s1418 + $0x31] sm:$0xff]
      %v1870 = vld [vmem:[%s1418 + $0x41] sm:$0xff]
      %v1871 = vld [vmem:[%s1418 + $0x51] sm:$0xff]
      %v1872 = vld [vmem:[%s1418 + $0x61] sm:$0xff]
      %v1873 = vld [vmem:[%s1418 + $0x71] sm:$0xff]
      %v1874 = vpack.c.bf16 %v1867, %v1866
      %v1875 = vpack.c.bf16 %v1869, %v1868
      %v1876 = vpack.c.bf16 %v1871, %v1870
      %v1877 = vpack.c.bf16 %v1873, %v1872
      %s1878 = scalar_lea.vmem %s6, 256
      %v1879 = vld [vmem:[%s1878] sm:$0xf]
      %v1880 = vld [vmem:[%s1878 + $0x4] sm:$0xf]
      %v1881 = vld [vmem:[%s1878 + $0x8] sm:$0xf]
      %v1882 = vld [vmem:[%s1878 + $0xc] sm:$0xf]
      %v1883 = vld [vmem:[%s1878 + $0x10] sm:$0xf]
      %v1884 = vld [vmem:[%s1878 + $0x14] sm:$0xf]
      %v1885 = vld [vmem:[%s1878 + $0x18] sm:$0xf]
      %v1886 = vld [vmem:[%s1878 + $0x1c] sm:$0xf]
      %v1887 = vld [vmem:[%s1878 + $0x20] sm:$0xf]
      %v1888 = vld [vmem:[%s1878 + $0x24] sm:$0xf]
      %v1889 = vld [vmem:[%s1878 + $0x28] sm:$0xf]
      %v1890 = vld [vmem:[%s1878 + $0x2c] sm:$0xf]
      %v1891 = vld [vmem:[%s1878 + $0x30] sm:$0xf]
      %v1892 = vld [vmem:[%s1878 + $0x34] sm:$0xf]
      %v1893 = vld [vmem:[%s1878 + $0x38] sm:$0xf]
      %v1894 = vld [vmem:[%s1878 + $0x3c] sm:$0xf]
      %v1911 = vunpack.c.l.b16 %v1879
      %v1912 = vunpack.c.l.b16 %v1880
      %v1913 = vunpack.c.l.b16 %v1881
      %v1914 = vunpack.c.l.b16 %v1882
      %v1915 = vunpack.c.l.b16 %v1883
      %v1916 = vunpack.c.l.b16 %v1884
      %v1917 = vunpack.c.l.b16 %v1885
      %v1918 = vunpack.c.l.b16 %v1886
      %v1919 = vunpack.c.l.b16 %v1887
      %v1920 = vunpack.c.l.b16 %v1888
      %v1921 = vunpack.c.l.b16 %v1889
      %v1922 = vunpack.c.l.b16 %v1890
      %v1923 = vunpack.c.l.b16 %v1891
      %v1924 = vunpack.c.l.b16 %v1892
      %v1925 = vunpack.c.l.b16 %v1893
      %v1926 = vunpack.c.l.b16 %v1894
      %v1927 = vpack.c.b16 %v1912, %v1911
      %v1928 = vpack.c.b16 %v1914, %v1913
      %v1929 = vpack.c.b16 %v1916, %v1915
      %v1930 = vpack.c.b16 %v1918, %v1917
      %v1931 = vpack.c.b16 %v1920, %v1919
      %v1932 = vpack.c.b16 %v1922, %v1921
      %v1933 = vpack.c.b16 %v1924, %v1923
      %v1934 = vpack.c.b16 %v1926, %v1925
      %1943 = vmatpush.bf16.msra.mxu0 %v1934
      %1944 = vmatpush.bf16.msra.mxu0 %v1933
      %1945 = vmatpush.bf16.msra.mxu0 %v1932
      %1946 = vmatpush.bf16.msra.mxu0 %v1931
      %1947 = vmatpush.bf16.msra.mxu0 %v1930
      %1948 = vmatpush.bf16.msra.mxu0 %v1929
      %1949 = vmatpush.bf16.msra.mxu0 %v1928
      %1950 = vmatpush.bf16.msra.mxu0 %v1927
      %1951 = vmatmul.bf16.gmra.mxu0 %v1874
      %v1952 = vpop.f32.mrf.mxu0
      %v1953 = vadd.f32 0.0, %v1952
      %v1954 = vpop.f32.mrf.mxu0
      %v1955 = vadd.f32 0.0, %v1954
      %1956 = vmatmul.bf16.gmra.mxu0 %v1875
      %v1957 = vpop.f32.mrf.mxu0
      %v1958 = vadd.f32 0.0, %v1957
      %v1959 = vpop.f32.mrf.mxu0
      %v1960 = vadd.f32 0.0, %v1959
      %1961 = vmatmul.bf16.gmra.mxu0 %v1876
      %v1962 = vpop.f32.mrf.mxu0
      %v1963 = vadd.f32 0.0, %v1962
      %v1964 = vpop.f32.mrf.mxu0
      %v1965 = vadd.f32 0.0, %v1964
      %1966 = vmatmul.bf16.gmra.mxu0 %v1877
      %v1967 = vpop.f32.mrf.mxu0
      %v1968 = vadd.f32 0.0, %v1967
      %v1969 = vpop.f32.mrf.mxu0
      %v1970 = vadd.f32 0.0, %v1969
      %1971 = vdwg.mxu0
      %v1972 = vadd.f32 %v1858, %v1953
      %v1973 = vadd.f32 %v1859, %v1955
      %v1974 = vadd.f32 %v1860, %v1958
      %v1975 = vadd.f32 %v1861, %v1960
      %v1976 = vadd.f32 %v1862, %v1963
      %v1977 = vadd.f32 %v1863, %v1965
      %v1978 = vadd.f32 %v1864, %v1968
      %v1979 = vadd.f32 %v1865, %v1970
      %v1980 = vld [vmem:[%s1418 + $0x2] sm:$0xff]
      %v1981 = vld [vmem:[%s1418 + $0x12] sm:$0xff]
      %v1982 = vld [vmem:[%s1418 + $0x22] sm:$0xff]
      %v1983 = vld [vmem:[%s1418 + $0x32] sm:$0xff]
      %v1984 = vld [vmem:[%s1418 + $0x42] sm:$0xff]
      %v1985 = vld [vmem:[%s1418 + $0x52] sm:$0xff]
      %v1986 = vld [vmem:[%s1418 + $0x62] sm:$0xff]
      %v1987 = vld [vmem:[%s1418 + $0x72] sm:$0xff]
      %v1988 = vpack.c.bf16 %v1981, %v1980
      %v1989 = vpack.c.bf16 %v1983, %v1982
      %v1990 = vpack.c.bf16 %v1985, %v1984
      %v1991 = vpack.c.bf16 %v1987, %v1986
      %s1992 = scalar_lea.vmem %s6, 320
      %v1993 = vld [vmem:[%s1992] sm:$0xf]
      %v1994 = vld [vmem:[%s1992 + $0x4] sm:$0xf]
      %v1995 = vld [vmem:[%s1992 + $0x8] sm:$0xf]
      %v1996 = vld [vmem:[%s1992 + $0xc] sm:$0xf]
      %v1997 = vld [vmem:[%s1992 + $0x10] sm:$0xf]
      %v1998 = vld [vmem:[%s1992 + $0x14] sm:$0xf]
      %v1999 = vld [vmem:[%s1992 + $0x18] sm:$0xf]
      %v2000 = vld [vmem:[%s1992 + $0x1c] sm:$0xf]
      %v2001 = vld [vmem:[%s1992 + $0x20] sm:$0xf]
      %v2002 = vld [vmem:[%s1992 + $0x24] sm:$0xf]
      %v2003 = vld [vmem:[%s1992 + $0x28] sm:$0xf]
      %v2004 = vld [vmem:[%s1992 + $0x2c] sm:$0xf]
      %v2005 = vld [vmem:[%s1992 + $0x30] sm:$0xf]
      %v2006 = vld [vmem:[%s1992 + $0x34] sm:$0xf]
      %v2007 = vld [vmem:[%s1992 + $0x38] sm:$0xf]
      %v2008 = vld [vmem:[%s1992 + $0x3c] sm:$0xf]
      %v2025 = vunpack.c.l.b16 %v1993
      %v2026 = vunpack.c.l.b16 %v1994
      %v2027 = vunpack.c.l.b16 %v1995
      %v2028 = vunpack.c.l.b16 %v1996
      %v2029 = vunpack.c.l.b16 %v1997
      %v2030 = vunpack.c.l.b16 %v1998
      %v2031 = vunpack.c.l.b16 %v1999
      %v2032 = vunpack.c.l.b16 %v2000
      %v2033 = vunpack.c.l.b16 %v2001
      %v2034 = vunpack.c.l.b16 %v2002
      %v2035 = vunpack.c.l.b16 %v2003
      %v2036 = vunpack.c.l.b16 %v2004
      %v2037 = vunpack.c.l.b16 %v2005
      %v2038 = vunpack.c.l.b16 %v2006
      %v2039 = vunpack.c.l.b16 %v2007
      %v2040 = vunpack.c.l.b16 %v2008
      %v2041 = vpack.c.b16 %v2026, %v2025
      %v2042 = vpack.c.b16 %v2028, %v2027
      %v2043 = vpack.c.b16 %v2030, %v2029
      %v2044 = vpack.c.b16 %v2032, %v2031
      %v2045 = vpack.c.b16 %v2034, %v2033
      %v2046 = vpack.c.b16 %v2036, %v2035
      %v2047 = vpack.c.b16 %v2038, %v2037
      %v2048 = vpack.c.b16 %v2040, %v2039
      %2057 = vmatpush.bf16.msra.mxu0 %v2048
      %2058 = vmatpush.bf16.msra.mxu0 %v2047
      %2059 = vmatpush.bf16.msra.mxu0 %v2046
      %2060 = vmatpush.bf16.msra.mxu0 %v2045
      %2061 = vmatpush.bf16.msra.mxu0 %v2044
      %2062 = vmatpush.bf16.msra.mxu0 %v2043
      %2063 = vmatpush.bf16.msra.mxu0 %v2042
      %2064 = vmatpush.bf16.msra.mxu0 %v2041
      %2065 = vmatmul.bf16.gmra.mxu0 %v1988
      %v2066 = vpop.f32.mrf.mxu0
      %v2067 = vadd.f32 0.0, %v2066
      %v2068 = vpop.f32.mrf.mxu0
      %v2069 = vadd.f32 0.0, %v2068
      %2070 = vmatmul.bf16.gmra.mxu0 %v1989
      %v2071 = vpop.f32.mrf.mxu0
      %v2072 = vadd.f32 0.0, %v2071
      %v2073 = vpop.f32.mrf.mxu0
      %v2074 = vadd.f32 0.0, %v2073
      %2075 = vmatmul.bf16.gmra.mxu0 %v1990
      %v2076 = vpop.f32.mrf.mxu0
      %v2077 = vadd.f32 0.0, %v2076
      %v2078 = vpop.f32.mrf.mxu0
      %v2079 = vadd.f32 0.0, %v2078
      %2080 = vmatmul.bf16.gmra.mxu0 %v1991
      %v2081 = vpop.f32.mrf.mxu0
      %v2082 = vadd.f32 0.0, %v2081
      %v2083 = vpop.f32.mrf.mxu0
      %v2084 = vadd.f32 0.0, %v2083
      %2085 = vdwg.mxu0
      %v2086 = vadd.f32 %v1972, %v2067
      %v2087 = vadd.f32 %v1973, %v2069
      %v2088 = vadd.f32 %v1974, %v2072
      %v2089 = vadd.f32 %v1975, %v2074
      %v2090 = vadd.f32 %v1976, %v2077
      %v2091 = vadd.f32 %v1977, %v2079
      %v2092 = vadd.f32 %v1978, %v2082
      %v2093 = vadd.f32 %v1979, %v2084
      %s2094 = scalar_lea.vmem [#allocation3], 32
      %v2095 = vld [vmem:[%s2094] sm:$0xff]
      %v2096 = vld [vmem:[%s2094 + $0x10] sm:$0xff]
      %v2097 = vld [vmem:[%s2094 + $0x20] sm:$0xff]
      %v2098 = vld [vmem:[%s2094 + $0x30] sm:$0xff]
      %v2099 = vld [vmem:[%s2094 + $0x40] sm:$0xff]
      %v2100 = vld [vmem:[%s2094 + $0x50] sm:$0xff]
      %v2101 = vld [vmem:[%s2094 + $0x60] sm:$0xff]
      %v2102 = vld [vmem:[%s2094 + $0x70] sm:$0xff]
      %v2103 = vpack.c.bf16 %v2096, %v2095
      %v2104 = vpack.c.bf16 %v2098, %v2097
      %v2105 = vpack.c.bf16 %v2100, %v2099
      %v2106 = vpack.c.bf16 %v2102, %v2101
      %s2107 = scalar_lea.vmem %s6, 384
      %v2108 = vld [vmem:[%s2107] sm:$0xf]
      %v2109 = vld [vmem:[%s2107 + $0x4] sm:$0xf]
      %v2110 = vld [vmem:[%s2107 + $0x8] sm:$0xf]
      %v2111 = vld [vmem:[%s2107 + $0xc] sm:$0xf]
      %v2112 = vld [vmem:[%s2107 + $0x10] sm:$0xf]
      %v2113 = vld [vmem:[%s2107 + $0x14] sm:$0xf]
      %v2114 = vld [vmem:[%s2107 + $0x18] sm:$0xf]
      %v2115 = vld [vmem:[%s2107 + $0x1c] sm:$0xf]
      %v2116 = vld [vmem:[%s2107 + $0x20] sm:$0xf]
      %v2117 = vld [vmem:[%s2107 + $0x24] sm:$0xf]
      %v2118 = vld [vmem:[%s2107 + $0x28] sm:$0xf]
      %v2119 = vld [vmem:[%s2107 + $0x2c] sm:$0xf]
      %v2120 = vld [vmem:[%s2107 + $0x30] sm:$0xf]
      %v2121 = vld [vmem:[%s2107 + $0x34] sm:$0xf]
      %v2122 = vld [vmem:[%s2107 + $0x38] sm:$0xf]
      %v2123 = vld [vmem:[%s2107 + $0x3c] sm:$0xf]
      %v2140 = vunpack.c.l.b16 %v2108
      %v2141 = vunpack.c.l.b16 %v2109
      %v2142 = vunpack.c.l.b16 %v2110
      %v2143 = vunpack.c.l.b16 %v2111
      %v2144 = vunpack.c.l.b16 %v2112
      %v2145 = vunpack.c.l.b16 %v2113
      %v2146 = vunpack.c.l.b16 %v2114
      %v2147 = vunpack.c.l.b16 %v2115
      %v2148 = vunpack.c.l.b16 %v2116
      %v2149 = vunpack.c.l.b16 %v2117
      %v2150 = vunpack.c.l.b16 %v2118
      %v2151 = vunpack.c.l.b16 %v2119
      %v2152 = vunpack.c.l.b16 %v2120
      %v2153 = vunpack.c.l.b16 %v2121
      %v2154 = vunpack.c.l.b16 %v2122
      %v2155 = vunpack.c.l.b16 %v2123
      %v2156 = vpack.c.b16 %v2141, %v2140
      %v2157 = vpack.c.b16 %v2143, %v2142
      %v2158 = vpack.c.b16 %v2145, %v2144
      %v2159 = vpack.c.b16 %v2147, %v2146
      %v2160 = vpack.c.b16 %v2149, %v2148
      %v2161 = vpack.c.b16 %v2151, %v2150
      %v2162 = vpack.c.b16 %v2153, %v2152
      %v2163 = vpack.c.b16 %v2155, %v2154
      %2172 = vmatpush.bf16.msra.mxu0 %v2163
      %2173 = vmatpush.bf16.msra.mxu0 %v2162
      %2174 = vmatpush.bf16.msra.mxu0 %v2161
      %2175 = vmatpush.bf16.msra.mxu0 %v2160
      %2176 = vmatpush.bf16.msra.mxu0 %v2159
      %2177 = vmatpush.bf16.msra.mxu0 %v2158
      %2178 = vmatpush.bf16.msra.mxu0 %v2157
      %2179 = vmatpush.bf16.msra.mxu0 %v2156
      %2180 = vmatmul.bf16.gmra.mxu0 %v2103
      %v2181 = vpop.f32.mrf.mxu0
      %v2182 = vadd.f32 0.0, %v2181
      %v2183 = vpop.f32.mrf.mxu0
      %v2184 = vadd.f32 0.0, %v2183
      %2185 = vmatmul.bf16.gmra.mxu0 %v2104
      %v2186 = vpop.f32.mrf.mxu0
      %v2187 = vadd.f32 0.0, %v2186
      %v2188 = vpop.f32.mrf.mxu0
      %v2189 = vadd.f32 0.0, %v2188
      %2190 = vmatmul.bf16.gmra.mxu0 %v2105
      %v2191 = vpop.f32.mrf.mxu0
      %v2192 = vadd.f32 0.0, %v2191
      %v2193 = vpop.f32.mrf.mxu0
      %v2194 = vadd.f32 0.0, %v2193
      %2195 = vmatmul.bf16.gmra.mxu0 %v2106
      %v2196 = vpop.f32.mrf.mxu0
      %v2197 = vadd.f32 0.0, %v2196
      %v2198 = vpop.f32.mrf.mxu0
      %v2199 = vadd.f32 0.0, %v2198
      %2200 = vdwg.mxu0
      %v2201 = vadd.f32 %v2086, %v2182
      %v2202 = vadd.f32 %v2087, %v2184
      %v2203 = vadd.f32 %v2088, %v2187
      %v2204 = vadd.f32 %v2089, %v2189
      %v2205 = vadd.f32 %v2090, %v2192
      %v2206 = vadd.f32 %v2091, %v2194
      %v2207 = vadd.f32 %v2092, %v2197
      %v2208 = vadd.f32 %v2093, %v2199
      %v2209 = vld [vmem:[%s2094 + $0x1] sm:$0xff]
      %v2210 = vld [vmem:[%s2094 + $0x11] sm:$0xff]
      %v2211 = vld [vmem:[%s2094 + $0x21] sm:$0xff]
      %v2212 = vld [vmem:[%s2094 + $0x31] sm:$0xff]
      %v2213 = vld [vmem:[%s2094 + $0x41] sm:$0xff]
      %v2214 = vld [vmem:[%s2094 + $0x51] sm:$0xff]
      %v2215 = vld [vmem:[%s2094 + $0x61] sm:$0xff]
      %v2216 = vld [vmem:[%s2094 + $0x71] sm:$0xff]
      %v2217 = vpack.c.bf16 %v2210, %v2209
      %v2218 = vpack.c.bf16 %v2212, %v2211
      %v2219 = vpack.c.bf16 %v2214, %v2213
      %v2220 = vpack.c.bf16 %v2216, %v2215
      %s2221 = scalar_lea.vmem %s6, 448
      %v2222 = vld [vmem:[%s2221] sm:$0xf]
      %v2223 = vld [vmem:[%s2221 + $0x4] sm:$0xf]
      %v2224 = vld [vmem:[%s2221 + $0x8] sm:$0xf]
      %v2225 = vld [vmem:[%s2221 + $0xc] sm:$0xf]
      %v2226 = vld [vmem:[%s2221 + $0x10] sm:$0xf]
      %v2227 = vld [vmem:[%s2221 + $0x14] sm:$0xf]
      %v2228 = vld [vmem:[%s2221 + $0x18] sm:$0xf]
      %v2229 = vld [vmem:[%s2221 + $0x1c] sm:$0xf]
      %v2230 = vld [vmem:[%s2221 + $0x20] sm:$0xf]
      %v2231 = vld [vmem:[%s2221 + $0x24] sm:$0xf]
      %v2232 = vld [vmem:[%s2221 + $0x28] sm:$0xf]
      %v2233 = vld [vmem:[%s2221 + $0x2c] sm:$0xf]
      %v2234 = vld [vmem:[%s2221 + $0x30] sm:$0xf]
      %v2235 = vld [vmem:[%s2221 + $0x34] sm:$0xf]
      %v2236 = vld [vmem:[%s2221 + $0x38] sm:$0xf]
      %v2237 = vld [vmem:[%s2221 + $0x3c] sm:$0xf]
      %v2254 = vunpack.c.l.b16 %v2222
      %v2255 = vunpack.c.l.b16 %v2223
      %v2256 = vunpack.c.l.b16 %v2224
      %v2257 = vunpack.c.l.b16 %v2225
      %v2258 = vunpack.c.l.b16 %v2226
      %v2259 = vunpack.c.l.b16 %v2227
      %v2260 = vunpack.c.l.b16 %v2228
      %v2261 = vunpack.c.l.b16 %v2229
      %v2262 = vunpack.c.l.b16 %v2230
      %v2263 = vunpack.c.l.b16 %v2231
      %v2264 = vunpack.c.l.b16 %v2232
      %v2265 = vunpack.c.l.b16 %v2233
      %v2266 = vunpack.c.l.b16 %v2234
      %v2267 = vunpack.c.l.b16 %v2235
      %v2268 = vunpack.c.l.b16 %v2236
      %v2269 = vunpack.c.l.b16 %v2237
      %v2270 = vpack.c.b16 %v2255, %v2254
      %v2271 = vpack.c.b16 %v2257, %v2256
      %v2272 = vpack.c.b16 %v2259, %v2258
      %v2273 = vpack.c.b16 %v2261, %v2260
      %v2274 = vpack.c.b16 %v2263, %v2262
      %v2275 = vpack.c.b16 %v2265, %v2264
      %v2276 = vpack.c.b16 %v2267, %v2266
      %v2277 = vpack.c.b16 %v2269, %v2268
      %2286 = vmatpush.bf16.msra.mxu0 %v2277
      %2287 = vmatpush.bf16.msra.mxu0 %v2276
      %2288 = vmatpush.bf16.msra.mxu0 %v2275
      %2289 = vmatpush.bf16.msra.mxu0 %v2274
      %2290 = vmatpush.bf16.msra.mxu0 %v2273
      %2291 = vmatpush.bf16.msra.mxu0 %v2272
      %2292 = vmatpush.bf16.msra.mxu0 %v2271
      %2293 = vmatpush.bf16.msra.mxu0 %v2270
      %2294 = vmatmul.bf16.gmra.mxu0 %v2217
      %v2295 = vpop.f32.mrf.mxu0
      %v2296 = vadd.f32 0.0, %v2295
      %v2297 = vpop.f32.mrf.mxu0
      %v2298 = vadd.f32 0.0, %v2297
      %2299 = vmatmul.bf16.gmra.mxu0 %v2218
      %v2300 = vpop.f32.mrf.mxu0
      %v2301 = vadd.f32 0.0, %v2300
      %v2302 = vpop.f32.mrf.mxu0
      %v2303 = vadd.f32 0.0, %v2302
      %2304 = vmatmul.bf16.gmra.mxu0 %v2219
      %v2305 = vpop.f32.mrf.mxu0
      %v2306 = vadd.f32 0.0, %v2305
      %v2307 = vpop.f32.mrf.mxu0
      %v2308 = vadd.f32 0.0, %v2307
      %2309 = vmatmul.bf16.gmra.mxu0 %v2220
      %v2310 = vpop.f32.mrf.mxu0
      %v2311 = vadd.f32 0.0, %v2310
      %v2312 = vpop.f32.mrf.mxu0
      %v2313 = vadd.f32 0.0, %v2312
      %2314 = vdwg.mxu0
      %v2315 = vadd.f32 %v2201, %v2296
      %v2316 = vadd.f32 %v2202, %v2298
      %v2317 = vadd.f32 %v2203, %v2301
      %v2318 = vadd.f32 %v2204, %v2303
      %v2319 = vadd.f32 %v2205, %v2306
      %v2320 = vadd.f32 %v2206, %v2308
      %v2321 = vadd.f32 %v2207, %v2311
      %v2322 = vadd.f32 %v2208, %v2313
      %v2323 = vld [vmem:[%s2094 + $0x2] sm:$0xff]
      %v2324 = vld [vmem:[%s2094 + $0x12] sm:$0xff]
      %v2325 = vld [vmem:[%s2094 + $0x22] sm:$0xff]
      %v2326 = vld [vmem:[%s2094 + $0x32] sm:$0xff]
      %v2327 = vld [vmem:[%s2094 + $0x42] sm:$0xff]
      %v2328 = vld [vmem:[%s2094 + $0x52] sm:$0xff]
      %v2329 = vld [vmem:[%s2094 + $0x62] sm:$0xff]
      %v2330 = vld [vmem:[%s2094 + $0x72] sm:$0xff]
      %v2331 = vpack.c.bf16 %v2324, %v2323
      %v2332 = vpack.c.bf16 %v2326, %v2325
      %v2333 = vpack.c.bf16 %v2328, %v2327
      %v2334 = vpack.c.bf16 %v2330, %v2329
      %s2335 = scalar_lea.vmem %s6, 512
      %v2336 = vld [vmem:[%s2335] sm:$0xf]
      %v2337 = vld [vmem:[%s2335 + $0x4] sm:$0xf]
      %v2338 = vld [vmem:[%s2335 + $0x8] sm:$0xf]
      %v2339 = vld [vmem:[%s2335 + $0xc] sm:$0xf]
      %v2340 = vld [vmem:[%s2335 + $0x10] sm:$0xf]
      %v2341 = vld [vmem:[%s2335 + $0x14] sm:$0xf]
      %v2342 = vld [vmem:[%s2335 + $0x18] sm:$0xf]
      %v2343 = vld [vmem:[%s2335 + $0x1c] sm:$0xf]
      %v2344 = vld [vmem:[%s2335 + $0x20] sm:$0xf]
      %v2345 = vld [vmem:[%s2335 + $0x24] sm:$0xf]
      %v2346 = vld [vmem:[%s2335 + $0x28] sm:$0xf]
      %v2347 = vld [vmem:[%s2335 + $0x2c] sm:$0xf]
      %v2348 = vld [vmem:[%s2335 + $0x30] sm:$0xf]
      %v2349 = vld [vmem:[%s2335 + $0x34] sm:$0xf]
      %v2350 = vld [vmem:[%s2335 + $0x38] sm:$0xf]
      %v2351 = vld [vmem:[%s2335 + $0x3c] sm:$0xf]
      %v2368 = vunpack.c.l.b16 %v2336
      %v2369 = vunpack.c.l.b16 %v2337
      %v2370 = vunpack.c.l.b16 %v2338
      %v2371 = vunpack.c.l.b16 %v2339
      %v2372 = vunpack.c.l.b16 %v2340
      %v2373 = vunpack.c.l.b16 %v2341
      %v2374 = vunpack.c.l.b16 %v2342
      %v2375 = vunpack.c.l.b16 %v2343
      %v2376 = vunpack.c.l.b16 %v2344
      %v2377 = vunpack.c.l.b16 %v2345
      %v2378 = vunpack.c.l.b16 %v2346
      %v2379 = vunpack.c.l.b16 %v2347
      %v2380 = vunpack.c.l.b16 %v2348
      %v2381 = vunpack.c.l.b16 %v2349
      %v2382 = vunpack.c.l.b16 %v2350
      %v2383 = vunpack.c.l.b16 %v2351
      %v2384 = vpack.c.b16 %v2369, %v2368
      %v2385 = vpack.c.b16 %v2371, %v2370
      %v2386 = vpack.c.b16 %v2373, %v2372
      %v2387 = vpack.c.b16 %v2375, %v2374
      %v2388 = vpack.c.b16 %v2377, %v2376
      %v2389 = vpack.c.b16 %v2379, %v2378
      %v2390 = vpack.c.b16 %v2381, %v2380
      %v2391 = vpack.c.b16 %v2383, %v2382
      %2400 = vmatpush.bf16.msra.mxu0 %v2391
      %2401 = vmatpush.bf16.msra.mxu0 %v2390
      %2402 = vmatpush.bf16.msra.mxu0 %v2389
      %2403 = vmatpush.bf16.msra.mxu0 %v2388
      %2404 = vmatpush.bf16.msra.mxu0 %v2387
      %2405 = vmatpush.bf16.msra.mxu0 %v2386
      %2406 = vmatpush.bf16.msra.mxu0 %v2385
      %2407 = vmatpush.bf16.msra.mxu0 %v2384
      %2408 = vmatmul.bf16.gmra.mxu0 %v2331
      %v2409 = vpop.f32.mrf.mxu0
      %v2410 = vadd.f32 0.0, %v2409
      %v2411 = vpop.f32.mrf.mxu0
      %v2412 = vadd.f32 0.0, %v2411
      %2413 = vmatmul.bf16.gmra.mxu0 %v2332
      %v2414 = vpop.f32.mrf.mxu0
      %v2415 = vadd.f32 0.0, %v2414
      %v2416 = vpop.f32.mrf.mxu0
      %v2417 = vadd.f32 0.0, %v2416
      %2418 = vmatmul.bf16.gmra.mxu0 %v2333
      %v2419 = vpop.f32.mrf.mxu0
      %v2420 = vadd.f32 0.0, %v2419
      %v2421 = vpop.f32.mrf.mxu0
      %v2422 = vadd.f32 0.0, %v2421
      %2423 = vmatmul.bf16.gmra.mxu0 %v2334
      %v2424 = vpop.f32.mrf.mxu0
      %v2425 = vadd.f32 0.0, %v2424
      %v2426 = vpop.f32.mrf.mxu0
      %v2427 = vadd.f32 0.0, %v2426
      %2428 = vdwg.mxu0
      %v2429 = vadd.f32 %v2315, %v2410
      %v2430 = vadd.f32 %v2316, %v2412
      %v2431 = vadd.f32 %v2317, %v2415
      %v2432 = vadd.f32 %v2318, %v2417
      %v2433 = vadd.f32 %v2319, %v2420
      %v2434 = vadd.f32 %v2320, %v2422
      %v2435 = vadd.f32 %v2321, %v2425
      %v2436 = vadd.f32 %v2322, %v2427
      %v2437 = vld [vmem:[%s273] sm:$0xf]
      %v2438 = vld [vmem:[%s273 + $0x4] sm:$0xf]
      %v2439 = vld [vmem:[%s273 + $0x8] sm:$0xf]
      %v2440 = vld [vmem:[%s273 + $0xc] sm:$0xf]
      %v2441 = vld [vmem:[%s273 + $0x10] sm:$0xf]
      %v2442 = vld [vmem:[%s273 + $0x14] sm:$0xf]
      %v2443 = vld [vmem:[%s273 + $0x18] sm:$0xf]
      %v2444 = vld [vmem:[%s273 + $0x1c] sm:$0xf]
      %v2445 = vunpack.c.l.bf16 %v2437
      %v2446 = vunpack.c.l.bf16 %v2438
      %v2447 = vunpack.c.l.bf16 %v2439
      %v2448 = vunpack.c.l.bf16 %v2440
      %v2449 = vunpack.c.l.bf16 %v2441
      %v2450 = vunpack.c.l.bf16 %v2442
      %v2451 = vunpack.c.l.bf16 %v2443
      %v2452 = vunpack.c.l.bf16 %v2444
      %v2453 = vadd.f32 %v2429, %v2445
      %v2454 = vadd.f32 %v2430, %v2446
      %v2455 = vadd.f32 %v2431, %v2447
      %v2456 = vadd.f32 %v2432, %v2448
      %v2457 = vadd.f32 %v2433, %v2449
      %v2458 = vadd.f32 %v2434, %v2450
      %v2459 = vadd.f32 %v2435, %v2451
      %v2460 = vadd.f32 %v2436, %v2452
      %v2461 = vpack.c.bf16 %v2453, %v2453
      %v2462 = vpack.c.bf16 %v2454, %v2454
      %v2463 = vpack.c.bf16 %v2455, %v2455
      %v2464 = vpack.c.bf16 %v2456, %v2456
      %v2465 = vpack.c.bf16 %v2457, %v2457
      %v2466 = vpack.c.bf16 %v2458, %v2458
      %v2467 = vpack.c.bf16 %v2459, %v2459
      %v2468 = vpack.c.bf16 %v2460, %v2460
      %2469 = vst [vmem:[%s278] sm:$0xf] %v2461
      %2470 = vst [vmem:[%s278 + $0x4] sm:$0xf] %v2462
      %2471 = vst [vmem:[%s278 + $0x8] sm:$0xf] %v2463
      %2472 = vst [vmem:[%s278 + $0xc] sm:$0xf] %v2464
      %2473 = vst [vmem:[%s278 + $0x10] sm:$0xf] %v2465
      %2474 = vst [vmem:[%s278 + $0x14] sm:$0xf] %v2466
      %2475 = vst [vmem:[%s278 + $0x18] sm:$0xf] %v2467
      %2476 = vst [vmem:[%s278 + $0x1c] sm:$0xf] %v2468
      %p2477 = scmp.lt.s32.totalorder %s18, 1
      %s2478 = scalar_select %p2477, %s18, 1
      %s2479 = smul.addr %s2478, 8
      %s2480 = smul.addr %s2479, 4
      %s2481 = scalar_lea.vmem %s7, %s2480
      // Predicated region
      $region49: #{network_block_forward.3} parent=47 // pred_check
        %p2482 = pneg %p188
      $region50: #{network_block_forward.3} parent=47 // pred_check_branch
        %2484 = sbr.rel (%p2482) target = $region52
      $region51: #{network_block_forward.3} parent=47 // pred_region
        _
      $region52: #{network_block_forward.3} parent=47 // pred_fallthru
        _
    $region48: #{network_block_forward.3} parent=5 // pred_fallthru
      _
    %p2485 = scmp.le.s32.totalorder 2, %s13
    // Predicated region
    $region53: #{network_block_forward.3} parent=5 // pred_check
      %p2486 = pneg %p2485
    $region54: #{network_block_forward.3} parent=5 // pred_check_branch
      %2488 = sbr.rel (%p2486) target = $region56
    $region55: #{network_block_forward.3} parent=5 // pred_region
      %s2489 = ssub.s32 %s13, 2
      // Predicated region
      $region57: #{network_block_forward.3} parent=55 // pred_check
        %p2490 = pneg %p194
      $region58: #{network_block_forward.3} parent=55 // pred_check_branch
        %2492 = sbr.rel (%p2490) target = $region60
      $region59: #{network_block_forward.3} parent=55 // pred_region
        %p2493 = scmp.lt.s32.totalorder %s19, 1
        %s2494 = scalar_select %p2493, %s19, 1
        %s2495 = smul.addr %s2494, 8
        %s2496 = smul.addr %s2495, 4
        %s2497 = scalar_lea.vmem %s7, %s2496
      $region60: #{network_block_forward.3} parent=55 // pred_fallthru
        _
    $region56: #{network_block_forward.3} parent=5 // pred_fallthru
      _
  $region6: #{network_block_forward.3} parent=0 // loop_footer
    %s17 = sadd.s32 1, %s13
  $region7: #{network_block_forward.3} parent=0 // loop_footer_branch
    %12 = sbr.rel target = $region3
  $region8: #{network_block_forward.3} parent=0 // loop_exit
    _

// kernel: network_block_forward.2
$region0: #{network_block_forward.2}
  #allocation0 [shape = 'u32[]', space=smem, size = 0x4, offset = 0x4, fixed_abs, tag = 'smem constant byte address 0x4 - core index']
  #allocation1 [shape = 'u32[72,128]{1,0:T(1,128)}', space=vmem, size = 0x9000, scoped, tag = 'internal scratch']
  #allocation2 [shape = 'f32[4,9,9,128]{3,2,1,0:T(8,128)}', space=vmem, size = 0x48000, scoped, tag = 'scratch operand']
  #allocation3 [shape = 'f32[10,10,128]{2,1,0:T(8,128)}', space=vmem, size = 0x14000, scoped, tag = 'scratch operand']
  %s0 = inlined_call_operand.vmem [shape: bf16[8,8,8,128], index: 0, kind: input, shape index: {}]
  %s1 = inlined_call_operand.vmem [shape: f32[1,128], index: 1, kind: input, shape index: {}]
  %s2 = inlined_call_operand.vmem [shape: f32[1,128], index: 2, kind: input, shape index: {}]
  %s3 = inlined_call_operand.vmem [shape: bf16[9,128,128], index: 3, kind: input, shape index: {}]
  %s4 = inlined_call_operand.vmem [shape: f32[1,128], index: 4, kind: input, shape index: {}]
  %s5 = inlined_call_operand.vmem [shape: f32[1,128], index: 5, kind: input, shape index: {}]
  %s6 = inlined_call_operand.vmem [shape: bf16[9,128,128], index: 6, kind: input, shape index: {}]
  %s7 = inlined_call_operand.vmem [shape: bf16[128,128], index: 7, kind: input, shape index: {}]
  %s8 = inlined_call_operand.vmem [shape: bf16[2,8,8,128], index: 8, kind: output, shape index: {}]
  %s9 = sld [smem:[#allocation0]]
  $region65: #{network_block_forward.2} parent=0
    _
  %s11 = ssub.s32 1, %s9
  %s12 = scalar_select 0, %s11, %s9
  loop: start=0, step=1, limit=4
  $region2: #{network_block_forward.2} parent=0 // loop_pre_header
    _
  $region3: #{network_block_forward.2} parent=0 // loop_header
    %s14 = sphi 0, %s18
    %p15 = scmp.ge.s32.totalorder %s14, 4
    %s24 = sphi 0, %s26
    %s27 = sphi 0, %s24
    %s28 = sphi 0, %s27
    %s44 = sphi 0, %s28
    %s48 = sphi 0, %s48
    %s50 = sphi 0, %s48
    %s51 = sphi 0, %s50
    %s65 = sphi 0, %s51
    %s69 = sphi 0, %s69
    %s71 = sphi 0, %s69
    %s72 = sphi 0, %s71
    %s86 = sphi 0, %s72
    %s90 = sphi 0, %s90
    %s92 = sphi 0, %s90
    %s93 = sphi 0, %s92
    %s107 = sphi 0, %s93
    %s111 = sphi 0, %s111
    %s113 = sphi 0, %s111
    %s114 = sphi 0, %s113
    %s128 = sphi 0, %s114
    %s132 = sphi 0, %s132
    %s134 = sphi 0, %s132
    %s135 = sphi 0, %s134
    %s149 = sphi 0, %s135
    %s153 = sphi 0, %s153
    %s155 = sphi 0, %s153
    %s156 = sphi 0, %s155
    %s170 = sphi 0, %s156
    %s174 = sphi 0, %s174
    %s176 = sphi 0, %s174
    %s177 = sphi 0, %s176
    %s191 = sphi 0, %s177
    %s197 = sphi 0, %s199
    %s200 = sphi 0, %s197
    %s201 = sphi 0, %s200
    %s217 = sphi 0, %s201
  $region4: #{network_block_forward.2} parent=0 // loop_header_branch
    %17 = sbr.rel (%p15) target = $region8
  $region5: #{network_block_forward.2} parent=0 // loop_body
    %s19 = ssub.s32 %s14, 1
    %s20 = ssub.s32 %s14, 2
    %s21 = sadd.s32 %s14, 1
    %s22 = ssub.s32 %s14, %s21
    %p23 = scmp.eq.s32.totalorder %s22, 0
    %s25 = sadd.s32 %s24, 1
    %s26 = scalar_select %p23, %s24, %s25
    %p29 = pneg %p23
    %p30 = scmp.eq.s32.totalorder %s14, 1
    %p31 = por %p29, %p30
    %p32 = scmp.ne.s32.totalorder %s24, %s27
    %p33 = scmp.eq.s32.totalorder %s14, 0
    %p34 = por %p32, %p33
    %p35 = scmp.ne.s32.totalorder %s24, %s27
    %p36 = scmp.eq.s32.totalorder %s19, 1
    %p37 = por %p35, %p36
    %p38 = scmp.ne.s32.totalorder %s27, %s28
    %p39 = scmp.eq.s32.totalorder %s19, 0
    %p40 = por %p38, %p39
    %p41 = scmp.ne.s32.totalorder %s27, %s28
    %p42 = scmp.eq.s32.totalorder %s20, 1
    %p43 = por %p41, %p42
    %p45 = scmp.ne.s32.totalorder %s28, %s44
    %p46 = scmp.eq.s32.totalorder %s20, 0
    %p47 = por %p45, %p46
    %s49 = sadd.s32 %s48, 1
    %p52 = scmp.eq.s32.totalorder %s14, 1
    %p53 = scmp.ne.s32.totalorder %s48, %s50
    %p54 = scmp.eq.s32.totalorder %s14, 0
    %p55 = por %p53, %p54
    %p56 = scmp.ne.s32.totalorder %s48, %s50
    %p57 = scmp.eq.s32.totalorder %s19, 1
    %p58 = por %p56, %p57
    %p59 = scmp.ne.s32.totalorder %s50, %s51
    %p60 = scmp.eq.s32.totalorder %s19, 0
    %p61 = por %p59, %p60
    %p62 = scmp.ne.s32.totalorder %s50, %s51
    %p63 = scmp.eq.s32.totalorder %s20, 1
    %p64 = por %p62, %p63
    %p66 = scmp.ne.s32.totalorder %s51, %s65
    %p67 = scmp.eq.s32.totalorder %s20, 0
    %p68 = por %p66, %p67
    %s70 = sadd.s32 %s69, 1
    %p73 = scmp.eq.s32.totalorder %s14, 1
    %p74 = scmp.ne.s32.totalorder %s69, %s71
    %p75 = scmp.eq.s32.totalorder %s14, 0
    %p76 = por %p74, %p75
    %p77 = scmp.ne.s32.totalorder %s69, %s71
    %p78 = scmp.eq.s32.totalorder %s19, 1
    %p79 = por %p77, %p78
    %p80 = scmp.ne.s32.totalorder %s71, %s72
    %p81 = scmp.eq.s32.totalorder %s19, 0
    %p82 = por %p80, %p81
    %p83 = scmp.ne.s32.totalorder %s71, %s72
    %p84 = scmp.eq.s32.totalorder %s20, 1
    %p85 = por %p83, %p84
    %p87 = scmp.ne.s32.totalorder %s72, %s86
    %p88 = scmp.eq.s32.totalorder %s20, 0
    %p89 = por %p87, %p88
    %s91 = sadd.s32 %s90, 1
    %p94 = scmp.eq.s32.totalorder %s14, 1
    %p95 = scmp.ne.s32.totalorder %s90, %s92
    %p96 = scmp.eq.s32.totalorder %s14, 0
    %p97 = por %p95, %p96
    %p98 = scmp.ne.s32.totalorder %s90, %s92
    %p99 = scmp.eq.s32.totalorder %s19, 1
    %p100 = por %p98, %p99
    %p101 = scmp.ne.s32.totalorder %s92, %s93
    %p102 = scmp.eq.s32.totalorder %s19, 0
    %p103 = por %p101, %p102
    %p104 = scmp.ne.s32.totalorder %s92, %s93
    %p105 = scmp.eq.s32.totalorder %s20, 1
    %p106 = por %p104, %p105
    %p108 = scmp.ne.s32.totalorder %s93, %s107
    %p109 = scmp.eq.s32.totalorder %s20, 0
    %p110 = por %p108, %p109
    %s112 = sadd.s32 %s111, 1
    %p115 = scmp.eq.s32.totalorder %s14, 1
    %p116 = scmp.ne.s32.totalorder %s111, %s113
    %p117 = scmp.eq.s32.totalorder %s14, 0
    %p118 = por %p116, %p117
    %p119 = scmp.ne.s32.totalorder %s111, %s113
    %p120 = scmp.eq.s32.totalorder %s19, 1
    %p121 = por %p119, %p120
    %p122 = scmp.ne.s32.totalorder %s113, %s114
    %p123 = scmp.eq.s32.totalorder %s19, 0
    %p124 = por %p122, %p123
    %p125 = scmp.ne.s32.totalorder %s113, %s114
    %p126 = scmp.eq.s32.totalorder %s20, 1
    %p127 = por %p125, %p126
    %p129 = scmp.ne.s32.totalorder %s114, %s128
    %p130 = scmp.eq.s32.totalorder %s20, 0
    %p131 = por %p129, %p130
    %s133 = sadd.s32 %s132, 1
    %p136 = scmp.eq.s32.totalorder %s14, 1
    %p137 = scmp.ne.s32.totalorder %s132, %s134
    %p138 = scmp.eq.s32.totalorder %s14, 0
    %p139 = por %p137, %p138
    %p140 = scmp.ne.s32.totalorder %s132, %s134
    %p141 = scmp.eq.s32.totalorder %s19, 1
    %p142 = por %p140, %p141
    %p143 = scmp.ne.s32.totalorder %s134, %s135
    %p144 = scmp.eq.s32.totalorder %s19, 0
    %p145 = por %p143, %p144
    %p146 = scmp.ne.s32.totalorder %s134, %s135
    %p147 = scmp.eq.s32.totalorder %s20, 1
    %p148 = por %p146, %p147
    %p150 = scmp.ne.s32.totalorder %s135, %s149
    %p151 = scmp.eq.s32.totalorder %s20, 0
    %p152 = por %p150, %p151
    %s154 = sadd.s32 %s153, 1
    %p157 = scmp.eq.s32.totalorder %s14, 1
    %p158 = scmp.ne.s32.totalorder %s153, %s155
    %p159 = scmp.eq.s32.totalorder %s14, 0
    %p160 = por %p158, %p159
    %p161 = scmp.ne.s32.totalorder %s153, %s155
    %p162 = scmp.eq.s32.totalorder %s19, 1
    %p163 = por %p161, %p162
    %p164 = scmp.ne.s32.totalorder %s155, %s156
    %p165 = scmp.eq.s32.totalorder %s19, 0
    %p166 = por %p164, %p165
    %p167 = scmp.ne.s32.totalorder %s155, %s156
    %p168 = scmp.eq.s32.totalorder %s20, 1
    %p169 = por %p167, %p168
    %p171 = scmp.ne.s32.totalorder %s156, %s170
    %p172 = scmp.eq.s32.totalorder %s20, 0
    %p173 = por %p171, %p172
    %s175 = sadd.s32 %s174, 1
    %p178 = scmp.eq.s32.totalorder %s14, 1
    %p179 = scmp.ne.s32.totalorder %s174, %s176
    %p180 = scmp.eq.s32.totalorder %s14, 0
    %p181 = por %p179, %p180
    %p182 = scmp.ne.s32.totalorder %s174, %s176
    %p183 = scmp.eq.s32.totalorder %s19, 1
    %p184 = por %p182, %p183
    %p185 = scmp.ne.s32.totalorder %s176, %s177
    %p186 = scmp.eq.s32.totalorder %s19, 0
    %p187 = por %p185, %p186
    %p188 = scmp.ne.s32.totalorder %s176, %s177
    %p189 = scmp.eq.s32.totalorder %s20, 1
    %p190 = por %p188, %p189
    %p192 = scmp.ne.s32.totalorder %s177, %s191
    %p193 = scmp.eq.s32.totalorder %s20, 0
    %p194 = por %p192, %p193
    %s195 = ssub.s32 %s14, %s21
    %p196 = scmp.eq.s32.totalorder %s195, 0
    %s198 = sadd.s32 %s197, 1
    %s199 = scalar_select %p196, %s197, %s198
    %p202 = pneg %p196
    %p203 = scmp.eq.s32.totalorder %s14, 1
    %p204 = por %p202, %p203
    %p205 = scmp.ne.s32.totalorder %s197, %s200
    %p206 = scmp.eq.s32.totalorder %s14, 0
    %p207 = por %p205, %p206
    %p208 = scmp.ne.s32.totalorder %s197, %s200
    %p209 = scmp.eq.s32.totalorder %s19, 1
    %p210 = por %p208, %p209
    %p211 = scmp.ne.s32.totalorder %s200, %s201
    %p212 = scmp.eq.s32.totalorder %s19, 0
    %p213 = por %p211, %p212
    %p214 = scmp.ne.s32.totalorder %s200, %s201
    %p215 = scmp.eq.s32.totalorder %s20, 1
    %p216 = por %p214, %p215
    %p218 = scmp.ne.s32.totalorder %s201, %s217
    %p219 = scmp.eq.s32.totalorder %s20, 0
    %p220 = por %p218, %p219
    %p221 = scmp.le.s32.totalorder 1, %s14
    %p222 = scmp.lt.s32.totalorder %s14, 3
    %p223 = pnand %p221, %p222
    %p224 = pneg %p223
    // Predicated region
    $region9: #{network_block_forward.2} parent=5 // pred_check
      _
    $region10: #{network_block_forward.2} parent=5 // pred_check_branch
      %226 = sbr.rel (%p223) target = $region12
    $region11: #{network_block_forward.2} parent=5 // pred_region
      %s227 = ssub.s32 %s14, 1
      // Predicated region
      $region13: #{network_block_forward.2} parent=11 // pred_check
        %p228 = pneg %p61
      $region14: #{network_block_forward.2} parent=11 // pred_check_branch
        %230 = sbr.rel (%p228) target = $region16
      $region15: #{network_block_forward.2} parent=11 // pred_region
        _
      $region16: #{network_block_forward.2} parent=11 // pred_fallthru
        _
      // Predicated region
      $region17: #{network_block_forward.2} parent=11 // pred_check
        %p231 = pneg %p82
      $region18: #{network_block_forward.2} parent=11 // pred_check_branch
        %233 = sbr.rel (%p231) target = $region20
      $region19: #{network_block_forward.2} parent=11 // pred_region
        _
      $region20: #{network_block_forward.2} parent=11 // pred_fallthru
        _
      // Predicated region
      $region21: #{network_block_forward.2} parent=11 // pred_check
        %p234 = pneg %p103
      $region22: #{network_block_forward.2} parent=11 // pred_check_branch
        %236 = sbr.rel (%p234) target = $region24
      $region23: #{network_block_forward.2} parent=11 // pred_region
        _
      $region24: #{network_block_forward.2} parent=11 // pred_fallthru
        _
      // Predicated region
      $region25: #{network_block_forward.2} parent=11 // pred_check
        %p237 = pneg %p124
      $region26: #{network_block_forward.2} parent=11 // pred_check_branch
        %239 = sbr.rel (%p237) target = $region28
      $region27: #{network_block_forward.2} parent=11 // pred_region
        _
      $region28: #{network_block_forward.2} parent=11 // pred_fallthru
        _
      // Predicated region
      $region29: #{network_block_forward.2} parent=11 // pred_check
        %p240 = pneg %p145
      $region30: #{network_block_forward.2} parent=11 // pred_check_branch
        %242 = sbr.rel (%p240) target = $region32
      $region31: #{network_block_forward.2} parent=11 // pred_region
        _
      $region32: #{network_block_forward.2} parent=11 // pred_fallthru
        _
      // Predicated region
      $region33: #{network_block_forward.2} parent=11 // pred_check
        %p243 = pneg %p166
      $region34: #{network_block_forward.2} parent=11 // pred_check_branch
        %245 = sbr.rel (%p243) target = $region36
      $region35: #{network_block_forward.2} parent=11 // pred_region
        _
      $region36: #{network_block_forward.2} parent=11 // pred_fallthru
        _
      // Predicated region
      $region37: #{network_block_forward.2} parent=11 // pred_check
        %p246 = pneg %p187
      $region38: #{network_block_forward.2} parent=11 // pred_check_branch
        %248 = sbr.rel (%p246) target = $region40
      $region39: #{network_block_forward.2} parent=11 // pred_region
        _
      $region40: #{network_block_forward.2} parent=11 // pred_fallthru
        _
    $region12: #{network_block_forward.2} parent=5 // pred_fallthru
      _
    %p249 = scmp.lt.s32.totalorder %s14, 2
    // Predicated region
    $region41: #{network_block_forward.2} parent=5 // pred_check
      %p250 = pneg %p249
    $region42: #{network_block_forward.2} parent=5 // pred_check_branch
      %252 = sbr.rel (%p250) target = $region44
    $region43: #{network_block_forward.2} parent=5 // pred_region
      // Predicated region
      $region45: #{network_block_forward.2} parent=43 // pred_check
        %p253 = pneg %p34
      $region46: #{network_block_forward.2} parent=43 // pred_check_branch
        %255 = sbr.rel (%p253) target = $region48
      $region47: #{network_block_forward.2} parent=43 // pred_region
        %s256 = smul.u32 4, %s14
        %p257 = scmp.lt.s32.totalorder %s256, 7
        %s258 = scalar_select %p257, %s256, 7
        %s259 = smul.addr %s258, 8
        %s260 = smul.addr %s259, 4
        %s261 = scalar_lea.vmem %s0, %s260
        %s262 = smul.u32 4, %s14
      $region48: #{network_block_forward.2} parent=43 // pred_fallthru
        _
    $region44: #{network_block_forward.2} parent=5 // pred_fallthru
      _
    %p263 = scmp.le.s32.totalorder 1, %s14
    %p264 = scmp.lt.s32.totalorder %s14, 3
    %p265 = pnand %p263, %p264
    %p266 = pneg %p265
    // Predicated region
    $region49: #{network_block_forward.2} parent=5 // pred_check
      _
    $region50: #{network_block_forward.2} parent=5 // pred_check_branch
      %268 = sbr.rel (%p265) target = $region52
    $region51: #{network_block_forward.2} parent=5 // pred_region
      %s269 = ssub.s32 %s14, 1
      %s270 = smul.u32 4, %s19
      %p271 = scmp.lt.s32.totalorder %s270, 7
      %s272 = scalar_select %p271, %s270, 7
      %s273 = smul.addr %s272, 8
      %s274 = smul.addr %s273, 4
      %s275 = scalar_lea.vmem %s0, %s274
      %p276 = pneg %p40
      %p277 = pneg %p37
      %p278 = pneg %p61
      %p279 = pneg %p58
      %p280 = pneg %p82
      %p281 = pneg %p79
      %p282 = pneg %p103
      %p283 = pneg %p100
      %p284 = pneg %p124
      %p285 = pneg %p121
      %p286 = pneg %p145
      %p287 = pneg %p142
      %p288 = pneg %p166
      %p289 = pneg %p163
      %p290 = pneg %p187
      %p291 = pneg %p184
      %p292 = pneg %p213
      %p293 = pneg %p210
      %p294 = scmp.lt.s32.totalorder %s19, 1
      %s295 = scalar_select %p294, %s19, 1
      %s296 = smul.addr %s295, 8
      %s297 = smul.addr %s296, 4
      %s298 = scalar_lea.vmem %s8, %s297
      %s299 = smul.u32 4, %s19
      %p300 = scmp.lt.s32.totalorder %s299, 7
      %s301 = scalar_select %p300, %s299, 7
      %s302 = smul.addr %s301, 8
      %s303 = smul.addr %s302, 4
      %s304 = scalar_lea.vmem %s0, %s303
      %s305 = smul.u32 4, %s19
      %p306 = scmp.lt.s32.totalorder %s19, 1
      %s307 = scalar_select %p306, %s19, 1
      %s308 = smul.addr %s307, 8
      %s309 = smul.addr %s308, 4
      %s310 = scalar_lea.vmem %s8, %s309
      %311 = vst [vmem:[#allocation2] sm:$0xff] 0.0
      %312 = vst [vmem:[#allocation2 + $0x8] sm:$0x1] 0.0
      %313 = vst [vmem:[#allocation2 + $0x10] sm:$0xff] 0.0
      %314 = vst [vmem:[#allocation2 + $0x18] sm:$0x1] 0.0
      %315 = vst [vmem:[#allocation2 + $0x20] sm:$0xff] 0.0
      %316 = vst [vmem:[#allocation2 + $0x28] sm:$0x1] 0.0
      %317 = vst [vmem:[#allocation2 + $0x30] sm:$0xff] 0.0
      %318 = vst [vmem:[#allocation2 + $0x38] sm:$0x1] 0.0
      %319 = vst [vmem:[#allocation2 + $0x40] sm:$0xff] 0.0
      %320 = vst [vmem:[#allocation2 + $0x48] sm:$0x1] 0.0
      %321 = vst [vmem:[#allocation2 + $0x50] sm:$0xff] 0.0
      %322 = vst [vmem:[#allocation2 + $0x58] sm:$0x1] 0.0
      %323 = vst [vmem:[#allocation2 + $0x60] sm:$0xff] 0.0
      %324 = vst [vmem:[#allocation2 + $0x68] sm:$0x1] 0.0
      %325 = vst [vmem:[#allocation2 + $0x70] sm:$0xff] 0.0
      %326 = vst [vmem:[#allocation2 + $0x78] sm:$0x1] 0.0
      %327 = vst [vmem:[#allocation2 + $0x80] sm:$0xff] 0.0
      %328 = vst [vmem:[#allocation2 + $0x88] sm:$0x1] 0.0
      %329 = vst [vmem:[#allocation2 + $0x90] sm:$0xff] 0.0
      %330 = vst [vmem:[#allocation2 + $0x98] sm:$0x1] 0.0
      %331 = vst [vmem:[#allocation2 + $0xa0] sm:$0xff] 0.0
      %332 = vst [vmem:[#allocation2 + $0xa8] sm:$0x1] 0.0
      %333 = vst [vmem:[#allocation2 + $0xb0] sm:$0xff] 0.0
      %334 = vst [vmem:[#allocation2 + $0xb8] sm:$0x1] 0.0
      %335 = vst [vmem:[#allocation2 + $0xc0] sm:$0xff] 0.0
      %336 = vst [vmem:[#allocation2 + $0xc8] sm:$0x1] 0.0
      %337 = vst [vmem:[#allocation2 + $0xd0] sm:$0xff] 0.0
      %338 = vst [vmem:[#allocation2 + $0xd8] sm:$0x1] 0.0
      %339 = vst [vmem:[#allocation2 + $0xe0] sm:$0xff] 0.0
      %340 = vst [vmem:[#allocation2 + $0xe8] sm:$0x1] 0.0
      %341 = vst [vmem:[#allocation2 + $0xf0] sm:$0xff] 0.0
      %342 = vst [vmem:[#allocation2 + $0xf8] sm:$0x1] 0.0
      %343 = vst [vmem:[#allocation2 + $0x100] sm:$0xff] 0.0
      %344 = vst [vmem:[#allocation2 + $0x108] sm:$0x1] 0.0
      %345 = vst [vmem:[#allocation2 + $0x110] sm:$0xff] 0.0
      %346 = vst [vmem:[#allocation2 + $0x118] sm:$0x1] 0.0
      %347 = vst [vmem:[#allocation2 + $0x120] sm:$0xff] 0.0
      %348 = vst [vmem:[#allocation2 + $0x128] sm:$0x1] 0.0
      %349 = vst [vmem:[#allocation2 + $0x130] sm:$0xff] 0.0
      %350 = vst [vmem:[#allocation2 + $0x138] sm:$0x1] 0.0
      %351 = vst [vmem:[#allocation2 + $0x140] sm:$0xff] 0.0
      %352 = vst [vmem:[#allocation2 + $0x148] sm:$0x1] 0.0
      %353 = vst [vmem:[#allocation2 + $0x150] sm:$0xff] 0.0
      %354 = vst [vmem:[#allocation2 + $0x158] sm:$0x1] 0.0
      %355 = vst [vmem:[#allocation2 + $0x160] sm:$0xff] 0.0
      %356 = vst [vmem:[#allocation2 + $0x168] sm:$0x1] 0.0
      %357 = vst [vmem:[#allocation2 + $0x170] sm:$0xff] 0.0
      %358 = vst [vmem:[#allocation2 + $0x178] sm:$0x1] 0.0
      %359 = vst [vmem:[#allocation2 + $0x180] sm:$0xff] 0.0
      %360 = vst [vmem:[#allocation2 + $0x188] sm:$0x1] 0.0
      %361 = vst [vmem:[#allocation2 + $0x190] sm:$0xff] 0.0
      %362 = vst [vmem:[#allocation2 + $0x198] sm:$0x1] 0.0
      %363 = vst [vmem:[#allocation2 + $0x1a0] sm:$0xff] 0.0
      %364 = vst [vmem:[#allocation2 + $0x1a8] sm:$0x1] 0.0
      %365 = vst [vmem:[#allocation2 + $0x1b0] sm:$0xff] 0.0
      %366 = vst [vmem:[#allocation2 + $0x1b8] sm:$0x1] 0.0
      %367 = vst [vmem:[#allocation2 + $0x1c0] sm:$0xff] 0.0
      %368 = vst [vmem:[#allocation2 + $0x1c8] sm:$0x1] 0.0
      %369 = vst [vmem:[#allocation2 + $0x1d0] sm:$0xff] 0.0
      %370 = vst [vmem:[#allocation2 + $0x1d8] sm:$0x1] 0.0
      %371 = vst [vmem:[#allocation2 + $0x1e0] sm:$0xff] 0.0
      %372 = vst [vmem:[#allocation2 + $0x1e8] sm:$0x1] 0.0
      %373 = vst [vmem:[#allocation2 + $0x1f0] sm:$0xff] 0.0
      %374 = vst [vmem:[#allocation2 + $0x1f8] sm:$0x1] 0.0
      %375 = vst [vmem:[#allocation2 + $0x200] sm:$0xff] 0.0
      %376 = vst [vmem:[#allocation2 + $0x208] sm:$0x1] 0.0
      %377 = vst [vmem:[#allocation2 + $0x210] sm:$0xff] 0.0
      %378 = vst [vmem:[#allocation2 + $0x218] sm:$0x1] 0.0
      %379 = vst [vmem:[#allocation2 + $0x220] sm:$0xff] 0.0
      %380 = vst [vmem:[#allocation2 + $0x228] sm:$0x1] 0.0
      %381 = vst [vmem:[#allocation2 + $0x230] sm:$0xff] 0.0
      %382 = vst [vmem:[#allocation2 + $0x238] sm:$0x1] 0.0
      %v383 = vld [vmem:[%s304] sm:$0xf]
      %v384 = vld [vmem:[%s304 + $0x4] sm:$0xf]
      %v385 = vld [vmem:[%s304 + $0x8] sm:$0xf]
      %v386 = vld [vmem:[%s304 + $0xc] sm:$0xf]
      %v387 = vld [vmem:[%s304 + $0x10] sm:$0xf]
      %v388 = vld [vmem:[%s304 + $0x14] sm:$0xf]
      %v389 = vld [vmem:[%s304 + $0x18] sm:$0xf]
      %v390 = vld [vmem:[%s304 + $0x1c] sm:$0xf]
      %v391 = vunpack.c.l.bf16 %v383
      %v392 = vunpack.c.l.bf16 %v384
      %v393 = vunpack.c.l.bf16 %v385
      %v394 = vunpack.c.l.bf16 %v386
      %v395 = vunpack.c.l.bf16 %v387
      %v396 = vunpack.c.l.bf16 %v388
      %v397 = vunpack.c.l.bf16 %v389
      %v398 = vunpack.c.l.bf16 %v390
      %v399 = vld [vmem:[%s1] sm:$0x1]
      %v401 = vperm.slane %v399, 0
      %v403 = vmul.f32 %v391, %v401
      %v404 = vmul.f32 %v392, %v401
      %v405 = vmul.f32 %v393, %v401
      %v406 = vmul.f32 %v394, %v401
      %v407 = vmul.f32 %v395, %v401
      %v408 = vmul.f32 %v396, %v401
      %v409 = vmul.f32 %v397, %v401
      %v410 = vmul.f32 %v398, %v401
      %v411 = vld [vmem:[%s2] sm:$0x1]
      %v413 = vperm.slane %v411, 0
      %v415 = vadd.f32 %v403, %v413
      %v416 = vadd.f32 %v404, %v413
      %v417 = vadd.f32 %v405, %v413
      %v418 = vadd.f32 %v406, %v413
      %v419 = vadd.f32 %v407, %v413
      %v420 = vadd.f32 %v408, %v413
      %v421 = vadd.f32 %v409, %v413
      %v422 = vadd.f32 %v410, %v413
      %v423 = vmax.f32 %v415, 0.0
      %v424 = vmax.f32 %v416, 0.0
      %v425 = vmax.f32 %v417, 0.0
      %v426 = vmax.f32 %v418, 0.0
      %v427 = vmax.f32 %v419, 0.0
      %v428 = vmax.f32 %v420, 0.0
      %v429 = vmax.f32 %v421, 0.0
      %v430 = vmax.f32 %v422, 0.0
      %s431 = scalar_lea.vmem [#allocation2], 16
      %432 = vst [vmem:[%s431 + $0x1] sm:$0xff] %v423
      %433 = vst [vmem:[%s431 + $0x11] sm:$0xff] %v424
      %434 = vst [vmem:[%s431 + $0x21] sm:$0xff] %v425
      %435 = vst [vmem:[%s431 + $0x31] sm:$0xff] %v426
      %436 = vst [vmem:[%s431 + $0x41] sm:$0xff] %v427
      %437 = vst [vmem:[%s431 + $0x51] sm:$0xff] %v428
      %438 = vst [vmem:[%s431 + $0x61] sm:$0xff] %v429
      %439 = vst [vmem:[%s431 + $0x71] sm:$0xff] %v430
      %s440 = scalar_lea.vmem %s304, 32
      %v441 = vld [vmem:[%s440] sm:$0xf]
      %v442 = vld [vmem:[%s440 + $0x4] sm:$0xf]
      %v443 = vld [vmem:[%s440 + $0x8] sm:$0xf]
      %v444 = vld [vmem:[%s440 + $0xc] sm:$0xf]
      %v445 = vld [vmem:[%s440 + $0x10] sm:$0xf]
      %v446 = vld [vmem:[%s440 + $0x14] sm:$0xf]
      %v447 = vld [vmem:[%s440 + $0x18] sm:$0xf]
      %v448 = vld [vmem:[%s440 + $0x1c] sm:$0xf]
      %v449 = vunpack.c.l.bf16 %v441
      %v450 = vunpack.c.l.bf16 %v442
      %v451 = vunpack.c.l.bf16 %v443
      %v452 = vunpack.c.l.bf16 %v444
      %v453 = vunpack.c.l.bf16 %v445
      %v454 = vunpack.c.l.bf16 %v446
      %v455 = vunpack.c.l.bf16 %v447
      %v456 = vunpack.c.l.bf16 %v448
      %v457 = vld [vmem:[%s1] sm:$0x1]
      %v459 = vperm.slane %v457, 0
      %v461 = vmul.f32 %v449, %v459
      %v462 = vmul.f32 %v450, %v459
      %v463 = vmul.f32 %v451, %v459
      %v464 = vmul.f32 %v452, %v459
      %v465 = vmul.f32 %v453, %v459
      %v466 = vmul.f32 %v454, %v459
      %v467 = vmul.f32 %v455, %v459
      %v468 = vmul.f32 %v456, %v459
      %v469 = vld [vmem:[%s2] sm:$0x1]
      %v471 = vperm.slane %v469, 0
      %v473 = vadd.f32 %v461, %v471
      %v474 = vadd.f32 %v462, %v471
      %v475 = vadd.f32 %v463, %v471
      %v476 = vadd.f32 %v464, %v471
      %v477 = vadd.f32 %v465, %v471
      %v478 = vadd.f32 %v466, %v471
      %v479 = vadd.f32 %v467, %v471
      %v480 = vadd.f32 %v468, %v471
      %v481 = vmax.f32 %v473, 0.0
      %v482 = vmax.f32 %v474, 0.0
      %v483 = vmax.f32 %v475, 0.0
      %v484 = vmax.f32 %v476, 0.0
      %v485 = vmax.f32 %v477, 0.0
      %v486 = vmax.f32 %v478, 0.0
      %v487 = vmax.f32 %v479, 0.0
      %v488 = vmax.f32 %v480, 0.0
      %s489 = scalar_lea.vmem [#allocation2], 160
      %490 = vst [vmem:[%s489] sm:$0xff] %v481
      %491 = vst [vmem:[%s489 + $0x10] sm:$0xff] %v482
      %492 = vst [vmem:[%s489 + $0x20] sm:$0xff] %v483
      %493 = vst [vmem:[%s489 + $0x30] sm:$0xff] %v484
      %494 = vst [vmem:[%s489 + $0x40] sm:$0xff] %v485
      %495 = vst [vmem:[%s489 + $0x50] sm:$0xff] %v486
      %496 = vst [vmem:[%s489 + $0x60] sm:$0xff] %v487
      %497 = vst [vmem:[%s489 + $0x70] sm:$0xff] %v488
      %s498 = scalar_lea.vmem %s304, 64
      %v499 = vld [vmem:[%s498] sm:$0xf]
      %v500 = vld [vmem:[%s498 + $0x4] sm:$0xf]
      %v501 = vld [vmem:[%s498 + $0x8] sm:$0xf]
      %v502 = vld [vmem:[%s498 + $0xc] sm:$0xf]
      %v503 = vld [vmem:[%s498 + $0x10] sm:$0xf]
      %v504 = vld [vmem:[%s498 + $0x14] sm:$0xf]
      %v505 = vld [vmem:[%s498 + $0x18] sm:$0xf]
      %v506 = vld [vmem:[%s498 + $0x1c] sm:$0xf]
      %v507 = vunpack.c.l.bf16 %v499
      %v508 = vunpack.c.l.bf16 %v500
      %v509 = vunpack.c.l.bf16 %v501
      %v510 = vunpack.c.l.bf16 %v502
      %v511 = vunpack.c.l.bf16 %v503
      %v512 = vunpack.c.l.bf16 %v504
      %v513 = vunpack.c.l.bf16 %v505
      %v514 = vunpack.c.l.bf16 %v506
      %v515 = vld [vmem:[%s1] sm:$0x1]
      %v517 = vperm.slane %v515, 0
      %v519 = vmul.f32 %v507, %v517
      %v520 = vmul.f32 %v508, %v517
      %v521 = vmul.f32 %v509, %v517
      %v522 = vmul.f32 %v510, %v517
      %v523 = vmul.f32 %v511, %v517
      %v524 = vmul.f32 %v512, %v517
      %v525 = vmul.f32 %v513, %v517
      %v526 = vmul.f32 %v514, %v517
      %v527 = vld [vmem:[%s2] sm:$0x1]
      %v529 = vperm.slane %v527, 0
      %v531 = vadd.f32 %v519, %v529
      %v532 = vadd.f32 %v520, %v529
      %v533 = vadd.f32 %v521, %v529
      %v534 = vadd.f32 %v522, %v529
      %v535 = vadd.f32 %v523, %v529
      %v536 = vadd.f32 %v524, %v529
      %v537 = vadd.f32 %v525, %v529
      %v538 = vadd.f32 %v526, %v529
      %v539 = vmax.f32 %v531, 0.0
      %v540 = vmax.f32 %v532, 0.0
      %v541 = vmax.f32 %v533, 0.0
      %v542 = vmax.f32 %v534, 0.0
      %v543 = vmax.f32 %v535, 0.0
      %v544 = vmax.f32 %v536, 0.0
      %v545 = vmax.f32 %v537, 0.0
      %v546 = vmax.f32 %v538, 0.0
      %s547 = scalar_lea.vmem [#allocation2], 288
      %548 = vst [vmem:[%s547 + $0x1] sm:$0xff] %v539
      %549 = vst [vmem:[%s547 + $0x11] sm:$0xff] %v540
      %550 = vst [vmem:[%s547 + $0x21] sm:$0xff] %v541
      %551 = vst [vmem:[%s547 + $0x31] sm:$0xff] %v542
      %552 = vst [vmem:[%s547 + $0x41] sm:$0xff] %v543
      %553 = vst [vmem:[%s547 + $0x51] sm:$0xff] %v544
      %554 = vst [vmem:[%s547 + $0x61] sm:$0xff] %v545
      %555 = vst [vmem:[%s547 + $0x71] sm:$0xff] %v546
      %s556 = scalar_lea.vmem %s304, 96
      %v557 = vld [vmem:[%s556] sm:$0xf]
      %v558 = vld [vmem:[%s556 + $0x4] sm:$0xf]
      %v559 = vld [vmem:[%s556 + $0x8] sm:$0xf]
      %v560 = vld [vmem:[%s556 + $0xc] sm:$0xf]
      %v561 = vld [vmem:[%s556 + $0x10] sm:$0xf]
      %v562 = vld [vmem:[%s556 + $0x14] sm:$0xf]
      %v563 = vld [vmem:[%s556 + $0x18] sm:$0xf]
      %v564 = vld [vmem:[%s556 + $0x1c] sm:$0xf]
      %v565 = vunpack.c.l.bf16 %v557
      %v566 = vunpack.c.l.bf16 %v558
      %v567 = vunpack.c.l.bf16 %v559
      %v568 = vunpack.c.l.bf16 %v560
      %v569 = vunpack.c.l.bf16 %v561
      %v570 = vunpack.c.l.bf16 %v562
      %v571 = vunpack.c.l.bf16 %v563
      %v572 = vunpack.c.l.bf16 %v564
      %v573 = vld [vmem:[%s1] sm:$0x1]
      %v575 = vperm.slane %v573, 0
      %v577 = vmul.f32 %v565, %v575
      %v578 = vmul.f32 %v566, %v575
      %v579 = vmul.f32 %v567, %v575
      %v580 = vmul.f32 %v568, %v575
      %v581 = vmul.f32 %v569, %v575
      %v582 = vmul.f32 %v570, %v575
      %v583 = vmul.f32 %v571, %v575
      %v584 = vmul.f32 %v572, %v575
      %v585 = vld [vmem:[%s2] sm:$0x1]
      %v587 = vperm.slane %v585, 0
      %v589 = vadd.f32 %v577, %v587
      %v590 = vadd.f32 %v578, %v587
      %v591 = vadd.f32 %v579, %v587
      %v592 = vadd.f32 %v580, %v587
      %v593 = vadd.f32 %v581, %v587
      %v594 = vadd.f32 %v582, %v587
      %v595 = vadd.f32 %v583, %v587
      %v596 = vadd.f32 %v584, %v587
      %v597 = vmax.f32 %v589, 0.0
      %v598 = vmax.f32 %v590, 0.0
      %v599 = vmax.f32 %v591, 0.0
      %v600 = vmax.f32 %v592, 0.0
      %v601 = vmax.f32 %v593, 0.0
      %v602 = vmax.f32 %v594, 0.0
      %v603 = vmax.f32 %v595, 0.0
      %v604 = vmax.f32 %v596, 0.0
      %s605 = scalar_lea.vmem [#allocation2], 432
      %606 = vst [vmem:[%s605] sm:$0xff] %v597
      %607 = vst [vmem:[%s605 + $0x10] sm:$0xff] %v598
      %608 = vst [vmem:[%s605 + $0x20] sm:$0xff] %v599
      %609 = vst [vmem:[%s605 + $0x30] sm:$0xff] %v600
      %610 = vst [vmem:[%s605 + $0x40] sm:$0xff] %v601
      %611 = vst [vmem:[%s605 + $0x50] sm:$0xff] %v602
      %612 = vst [vmem:[%s605 + $0x60] sm:$0xff] %v603
      %613 = vst [vmem:[%s605 + $0x70] sm:$0xff] %v604
      %v614 = vld [vmem:[#allocation2] sm:$0xff]
      %v615 = vld [vmem:[#allocation2 + $0x10] sm:$0xff]
      %v616 = vld [vmem:[#allocation2 + $0x20] sm:$0xff]
      %v617 = vld [vmem:[#allocation2 + $0x30] sm:$0xff]
      %v618 = vld [vmem:[#allocation2 + $0x40] sm:$0xff]
      %v619 = vld [vmem:[#allocation2 + $0x50] sm:$0xff]
      %v620 = vld [vmem:[#allocation2 + $0x60] sm:$0xff]
      %v621 = vld [vmem:[#allocation2 + $0x70] sm:$0xff]
      %v622 = vpack.c.bf16 %v615, %v614
      %v623 = vpack.c.bf16 %v617, %v616
      %v624 = vpack.c.bf16 %v619, %v618
      %v625 = vpack.c.bf16 %v621, %v620
      %v626 = vld [vmem:[%s3] sm:$0xf]
      %v627 = vld [vmem:[%s3 + $0x4] sm:$0xf]
      %v628 = vld [vmem:[%s3 + $0x8] sm:$0xf]
      %v629 = vld [vmem:[%s3 + $0xc] sm:$0xf]
      %v630 = vld [vmem:[%s3 + $0x10] sm:$0xf]
      %v631 = vld [vmem:[%s3 + $0x14] sm:$0xf]
      %v632 = vld [vmem:[%s3 + $0x18] sm:$0xf]
      %v633 = vld [vmem:[%s3 + $0x1c] sm:$0xf]
      %v634 = vld [vmem:[%s3 + $0x20] sm:$0xf]
      %v635 = vld [vmem:[%s3 + $0x24] sm:$0xf]
      %v636 = vld [vmem:[%s3 + $0x28] sm:$0xf]
      %v637 = vld [vmem:[%s3 + $0x2c] sm:$0xf]
      %v638 = vld [vmem:[%s3 + $0x30] sm:$0xf]
      %v639 = vld [vmem:[%s3 + $0x34] sm:$0xf]
      %v640 = vld [vmem:[%s3 + $0x38] sm:$0xf]
      %v641 = vld [vmem:[%s3 + $0x3c] sm:$0xf]
      %s642 = scalar_lea.vmem [#allocation2], 144
      %v643 = vld [vmem:[%s642] sm:$0xff]
      %v644 = vld [vmem:[%s642 + $0x10] sm:$0xff]
      %v645 = vld [vmem:[%s642 + $0x20] sm:$0xff]
      %v646 = vld [vmem:[%s642 + $0x30] sm:$0xff]
      %v647 = vld [vmem:[%s642 + $0x40] sm:$0xff]
      %v648 = vld [vmem:[%s642 + $0x50] sm:$0xff]
      %v649 = vld [vmem:[%s642 + $0x60] sm:$0xff]
      %v650 = vld [vmem:[%s642 + $0x70] sm:$0xff]
      %v651 = vpack.c.bf16 %v644, %v643
      %v652 = vpack.c.bf16 %v646, %v645
      %v653 = vpack.c.bf16 %v648, %v647
      %v654 = vpack.c.bf16 %v650, %v649
      %s655 = scalar_lea.vmem %s3, 64
      %v656 = vld [vmem:[%s655] sm:$0xf]
      %v657 = vld [vmem:[%s655 + $0x4] sm:$0xf]
      %v658 = vld [vmem:[%s655 + $0x8] sm:$0xf]
      %v659 = vld [vmem:[%s655 + $0xc] sm:$0xf]
      %v660 = vld [vmem:[%s655 + $0x10] sm:$0xf]
      %v661 = vld [vmem:[%s655 + $0x14] sm:$0xf]
      %v662 = vld [vmem:[%s655 + $0x18] sm:$0xf]
      %v663 = vld [vmem:[%s655 + $0x1c] sm:$0xf]
      %v664 = vld [vmem:[%s655 + $0x20] sm:$0xf]
      %v665 = vld [vmem:[%s655 + $0x24] sm:$0xf]
      %v666 = vld [vmem:[%s655 + $0x28] sm:$0xf]
      %v667 = vld [vmem:[%s655 + $0x2c] sm:$0xf]
      %v668 = vld [vmem:[%s655 + $0x30] sm:$0xf]
      %v669 = vld [vmem:[%s655 + $0x34] sm:$0xf]
      %v670 = vld [vmem:[%s655 + $0x38] sm:$0xf]
      %v671 = vld [vmem:[%s655 + $0x3c] sm:$0xf]
      %v688 = vunpack.c.l.b16 %v656
      %v689 = vunpack.c.l.b16 %v657
      %v690 = vunpack.c.l.b16 %v658
      %v691 = vunpack.c.l.b16 %v659
      %v692 = vunpack.c.l.b16 %v660
      %v693 = vunpack.c.l.b16 %v661
      %v694 = vunpack.c.l.b16 %v662
      %v695 = vunpack.c.l.b16 %v663
      %v696 = vunpack.c.l.b16 %v664
      %v697 = vunpack.c.l.b16 %v665
      %v698 = vunpack.c.l.b16 %v666
      %v699 = vunpack.c.l.b16 %v667
      %v700 = vunpack.c.l.b16 %v668
      %v701 = vunpack.c.l.b16 %v669
      %v702 = vunpack.c.l.b16 %v670
      %v703 = vunpack.c.l.b16 %v671
      %v704 = vpack.c.b16 %v689, %v688
      %v705 = vpack.c.b16 %v691, %v690
      %v706 = vpack.c.b16 %v693, %v692
      %v707 = vpack.c.b16 %v695, %v694
      %v708 = vpack.c.b16 %v697, %v696
      %v709 = vpack.c.b16 %v699, %v698
      %v710 = vpack.c.b16 %v701, %v700
      %v711 = vpack.c.b16 %v703, %v702
      %720 = vmatpush.bf16.msra.mxu0 %v711
      %721 = vmatpush.bf16.msra.mxu0 %v710
      %722 = vmatpush.bf16.msra.mxu0 %v709
      %723 = vmatpush.bf16.msra.mxu0 %v708
      %724 = vmatpush.bf16.msra.mxu0 %v707
      %725 = vmatpush.bf16.msra.mxu0 %v706
      %726 = vmatpush.bf16.msra.mxu0 %v705
      %727 = vmatpush.bf16.msra.mxu0 %v704
      %728 = vmatmul.bf16.gmra.mxu0 %v651
      %v729 = vpop.f32.mrf.mxu0
      %v730 = vadd.f32 0.0, %v729
      %v731 = vpop.f32.mrf.mxu0
      %v732 = vadd.f32 0.0, %v731
      %733 = vmatmul.bf16.gmra.mxu0 %v652
      %v734 = vpop.f32.mrf.mxu0
      %v735 = vadd.f32 0.0, %v734
      %v736 = vpop.f32.mrf.mxu0
      %v737 = vadd.f32 0.0, %v736
      %738 = vmatmul.bf16.gmra.mxu0 %v653
      %v739 = vpop.f32.mrf.mxu0
      %v740 = vadd.f32 0.0, %v739
      %v741 = vpop.f32.mrf.mxu0
      %v742 = vadd.f32 0.0, %v741
      %743 = vmatmul.bf16.gmra.mxu0 %v654
      %v744 = vpop.f32.mrf.mxu0
      %v745 = vadd.f32 0.0, %v744
      %v746 = vpop.f32.mrf.mxu0
      %v747 = vadd.f32 0.0, %v746
      %748 = vdwg.mxu0
      %v765 = vunpack.c.l.b16 %v626
      %v766 = vunpack.c.l.b16 %v627
      %v767 = vunpack.c.l.b16 %v628
      %v768 = vunpack.c.l.b16 %v629
      %v769 = vunpack.c.l.b16 %v630
      %v770 = vunpack.c.l.b16 %v631
      %v771 = vunpack.c.l.b16 %v632
      %v772 = vunpack.c.l.b16 %v633
      %v773 = vunpack.c.l.b16 %v634
      %v774 = vunpack.c.l.b16 %v635
      %v775 = vunpack.c.l.b16 %v636
      %v776 = vunpack.c.l.b16 %v637
      %v777 = vunpack.c.l.b16 %v638
      %v778 = vunpack.c.l.b16 %v639
      %v779 = vunpack.c.l.b16 %v640
      %v780 = vunpack.c.l.b16 %v641
      %v781 = vpack.c.b16 %v766, %v765
      %v782 = vpack.c.b16 %v768, %v767
      %v783 = vpack.c.b16 %v770, %v769
      %v784 = vpack.c.b16 %v772, %v771
      %v785 = vpack.c.b16 %v774, %v773
      %v786 = vpack.c.b16 %v776, %v775
      %v787 = vpack.c.b16 %v778, %v777
      %v788 = vpack.c.b16 %v780, %v779
      %797 = vmatpush.bf16.msra.mxu0 %v788
      %798 = vmatpush.bf16.msra.mxu0 %v787
      %799 = vmatpush.bf16.msra.mxu0 %v786
      %800 = vmatpush.bf16.msra.mxu0 %v785
      %801 = vmatpush.bf16.msra.mxu0 %v784
      %802 = vmatpush.bf16.msra.mxu0 %v783
      %803 = vmatpush.bf16.msra.mxu0 %v782
      %804 = vmatpush.bf16.msra.mxu0 %v781
      %805 = vmatmul.bf16.gmra.mxu0 %v622
      %v806 = vpop.f32.mrf.mxu0
      %v807 = vadd.f32 %v730, %v806
      %v808 = vpop.f32.mrf.mxu0
      %v809 = vadd.f32 %v732, %v808
      %810 = vmatmul.bf16.gmra.mxu0 %v623
      %v811 = vpop.f32.mrf.mxu0
      %v812 = vadd.f32 %v735, %v811
      %v813 = vpop.f32.mrf.mxu0
      %v814 = vadd.f32 %v737, %v813
      %815 = vmatmul.bf16.gmra.mxu0 %v624
      %v816 = vpop.f32.mrf.mxu0
      %v817 = vadd.f32 %v740, %v816
      %v818 = vpop.f32.mrf.mxu0
      %v819 = vadd.f32 %v742, %v818
      %820 = vmatmul.bf16.gmra.mxu0 %v625
      %v821 = vpop.f32.mrf.mxu0
      %v822 = vadd.f32 %v745, %v821
      %v823 = vpop.f32.mrf.mxu0
      %v824 = vadd.f32 %v747, %v823
      %825 = vdwg.mxu0
      %v826 = vld [vmem:[#allocation2 + $0x1] sm:$0xff]
      %v827 = vld [vmem:[#allocation2 + $0x11] sm:$0xff]
      %v828 = vld [vmem:[#allocation2 + $0x21] sm:$0xff]
      %v829 = vld [vmem:[#allocation2 + $0x31] sm:$0xff]
      %v830 = vld [vmem:[#allocation2 + $0x41] sm:$0xff]
      %v831 = vld [vmem:[#allocation2 + $0x51] sm:$0xff]
      %v832 = vld [vmem:[#allocation2 + $0x61] sm:$0xff]
      %v833 = vld [vmem:[#allocation2 + $0x71] sm:$0xff]
      %v834 = vpack.c.bf16 %v827, %v826
      %v835 = vpack.c.bf16 %v829, %v828
      %v836 = vpack.c.bf16 %v831, %v830
      %v837 = vpack.c.bf16 %v833, %v832
      %s838 = scalar_lea.vmem %s3, 128
      %v839 = vld [vmem:[%s838] sm:$0xf]
      %v840 = vld [vmem:[%s838 + $0x4] sm:$0xf]
      %v841 = vld [vmem:[%s838 + $0x8] sm:$0xf]
      %v842 = vld [vmem:[%s838 + $0xc] sm:$0xf]
      %v843 = vld [vmem:[%s838 + $0x10] sm:$0xf]
      %v844 = vld [vmem:[%s838 + $0x14] sm:$0xf]
      %v845 = vld [vmem:[%s838 + $0x18] sm:$0xf]
      %v846 = vld [vmem:[%s838 + $0x1c] sm:$0xf]
      %v847 = vld [vmem:[%s838 + $0x20] sm:$0xf]
      %v848 = vld [vmem:[%s838 + $0x24] sm:$0xf]
      %v849 = vld [vmem:[%s838 + $0x28] sm:$0xf]
      %v850 = vld [vmem:[%s838 + $0x2c] sm:$0xf]
      %v851 = vld [vmem:[%s838 + $0x30] sm:$0xf]
      %v852 = vld [vmem:[%s838 + $0x34] sm:$0xf]
      %v853 = vld [vmem:[%s838 + $0x38] sm:$0xf]
      %v854 = vld [vmem:[%s838 + $0x3c] sm:$0xf]
      %v871 = vunpack.c.l.b16 %v839
      %v872 = vunpack.c.l.b16 %v840
      %v873 = vunpack.c.l.b16 %v841
      %v874 = vunpack.c.l.b16 %v842
      %v875 = vunpack.c.l.b16 %v843
      %v876 = vunpack.c.l.b16 %v844
      %v877 = vunpack.c.l.b16 %v845
      %v878 = vunpack.c.l.b16 %v846
      %v879 = vunpack.c.l.b16 %v847
      %v880 = vunpack.c.l.b16 %v848
      %v881 = vunpack.c.l.b16 %v849
      %v882 = vunpack.c.l.b16 %v850
      %v883 = vunpack.c.l.b16 %v851
      %v884 = vunpack.c.l.b16 %v852
      %v885 = vunpack.c.l.b16 %v853
      %v886 = vunpack.c.l.b16 %v854
      %v887 = vpack.c.b16 %v872, %v871
      %v888 = vpack.c.b16 %v874, %v873
      %v889 = vpack.c.b16 %v876, %v875
      %v890 = vpack.c.b16 %v878, %v877
      %v891 = vpack.c.b16 %v880, %v879
      %v892 = vpack.c.b16 %v882, %v881
      %v893 = vpack.c.b16 %v884, %v883
      %v894 = vpack.c.b16 %v886, %v885
      %903 = vmatpush.bf16.msra.mxu0 %v894
      %904 = vmatpush.bf16.msra.mxu0 %v893
      %905 = vmatpush.bf16.msra.mxu0 %v892
      %906 = vmatpush.bf16.msra.mxu0 %v891
      %907 = vmatpush.bf16.msra.mxu0 %v890
      %908 = vmatpush.bf16.msra.mxu0 %v889
      %909 = vmatpush.bf16.msra.mxu0 %v888
      %910 = vmatpush.bf16.msra.mxu0 %v887
      %911 = vmatmul.bf16.gmra.mxu0 %v834
      %v912 = vpop.f32.mrf.mxu0
      %v913 = vadd.f32 0.0, %v912
      %v914 = vpop.f32.mrf.mxu0
      %v915 = vadd.f32 0.0, %v914
      %916 = vmatmul.bf16.gmra.mxu0 %v835
      %v917 = vpop.f32.mrf.mxu0
      %v918 = vadd.f32 0.0, %v917
      %v919 = vpop.f32.mrf.mxu0
      %v920 = vadd.f32 0.0, %v919
      %921 = vmatmul.bf16.gmra.mxu0 %v836
      %v922 = vpop.f32.mrf.mxu0
      %v923 = vadd.f32 0.0, %v922
      %v924 = vpop.f32.mrf.mxu0
      %v925 = vadd.f32 0.0, %v924
      %926 = vmatmul.bf16.gmra.mxu0 %v837
      %v927 = vpop.f32.mrf.mxu0
      %v928 = vadd.f32 0.0, %v927
      %v929 = vpop.f32.mrf.mxu0
      %v930 = vadd.f32 0.0, %v929
      %931 = vdwg.mxu0
      %v932 = vadd.f32 %v807, %v913
      %v933 = vadd.f32 %v809, %v915
      %v934 = vadd.f32 %v812, %v918
      %v935 = vadd.f32 %v814, %v920
      %v936 = vadd.f32 %v817, %v923
      %v937 = vadd.f32 %v819, %v925
      %v938 = vadd.f32 %v822, %v928
      %v939 = vadd.f32 %v824, %v930
      %v940 = vld [vmem:[%s547] sm:$0xff]
      %v941 = vld [vmem:[%s547 + $0x10] sm:$0xff]
      %v942 = vld [vmem:[%s547 + $0x20] sm:$0xff]
      %v943 = vld [vmem:[%s547 + $0x30] sm:$0xff]
      %v944 = vld [vmem:[%s547 + $0x40] sm:$0xff]
      %v945 = vld [vmem:[%s547 + $0x50] sm:$0xff]
      %v946 = vld [vmem:[%s547 + $0x60] sm:$0xff]
      %v947 = vld [vmem:[%s547 + $0x70] sm:$0xff]
      %v948 = vpack.c.bf16 %v941, %v940
      %v949 = vpack.c.bf16 %v943, %v942
      %v950 = vpack.c.bf16 %v945, %v944
      %v951 = vpack.c.bf16 %v947, %v946
      %s952 = scalar_lea.vmem %s3, 192
      %v953 = vld [vmem:[%s952] sm:$0xf]
      %v954 = vld [vmem:[%s952 + $0x4] sm:$0xf]
      %v955 = vld [vmem:[%s952 + $0x8] sm:$0xf]
      %v956 = vld [vmem:[%s952 + $0xc] sm:$0xf]
      %v957 = vld [vmem:[%s952 + $0x10] sm:$0xf]
      %v958 = vld [vmem:[%s952 + $0x14] sm:$0xf]
      %v959 = vld [vmem:[%s952 + $0x18] sm:$0xf]
      %v960 = vld [vmem:[%s952 + $0x1c] sm:$0xf]
      %v961 = vld [vmem:[%s952 + $0x20] sm:$0xf]
      %v962 = vld [vmem:[%s952 + $0x24] sm:$0xf]
      %v963 = vld [vmem:[%s952 + $0x28] sm:$0xf]
      %v964 = vld [vmem:[%s952 + $0x2c] sm:$0xf]
      %v965 = vld [vmem:[%s952 + $0x30] sm:$0xf]
      %v966 = vld [vmem:[%s952 + $0x34] sm:$0xf]
      %v967 = vld [vmem:[%s952 + $0x38] sm:$0xf]
      %v968 = vld [vmem:[%s952 + $0x3c] sm:$0xf]
      %v985 = vunpack.c.l.b16 %v953
      %v986 = vunpack.c.l.b16 %v954
      %v987 = vunpack.c.l.b16 %v955
      %v988 = vunpack.c.l.b16 %v956
      %v989 = vunpack.c.l.b16 %v957
      %v990 = vunpack.c.l.b16 %v958
      %v991 = vunpack.c.l.b16 %v959
      %v992 = vunpack.c.l.b16 %v960
      %v993 = vunpack.c.l.b16 %v961
      %v994 = vunpack.c.l.b16 %v962
      %v995 = vunpack.c.l.b16 %v963
      %v996 = vunpack.c.l.b16 %v964
      %v997 = vunpack.c.l.b16 %v965
      %v998 = vunpack.c.l.b16 %v966
      %v999 = vunpack.c.l.b16 %v967
      %v1000 = vunpack.c.l.b16 %v968
      %v1001 = vpack.c.b16 %v986, %v985
      %v1002 = vpack.c.b16 %v988, %v987
      %v1003 = vpack.c.b16 %v990, %v989
      %v1004 = vpack.c.b16 %v992, %v991
      %v1005 = vpack.c.b16 %v994, %v993
      %v1006 = vpack.c.b16 %v996, %v995
      %v1007 = vpack.c.b16 %v998, %v997
      %v1008 = vpack.c.b16 %v1000, %v999
      %1017 = vmatpush.bf16.msra.mxu0 %v1008
      %1018 = vmatpush.bf16.msra.mxu0 %v1007
      %1019 = vmatpush.bf16.msra.mxu0 %v1006
      %1020 = vmatpush.bf16.msra.mxu0 %v1005
      %1021 = vmatpush.bf16.msra.mxu0 %v1004
      %1022 = vmatpush.bf16.msra.mxu0 %v1003
      %1023 = vmatpush.bf16.msra.mxu0 %v1002
      %1024 = vmatpush.bf16.msra.mxu0 %v1001
      %1025 = vmatmul.bf16.gmra.mxu0 %v948
      %v1026 = vpop.f32.mrf.mxu0
      %v1027 = vadd.f32 0.0, %v1026
      %v1028 = vpop.f32.mrf.mxu0
      %v1029 = vadd.f32 0.0, %v1028
      %1030 = vmatmul.bf16.gmra.mxu0 %v949
      %v1031 = vpop.f32.mrf.mxu0
      %v1032 = vadd.f32 0.0, %v1031
      %v1033 = vpop.f32.mrf.mxu0
      %v1034 = vadd.f32 0.0, %v1033
      %1035 = vmatmul.bf16.gmra.mxu0 %v950
      %v1036 = vpop.f32.mrf.mxu0
      %v1037 = vadd.f32 0.0, %v1036
      %v1038 = vpop.f32.mrf.mxu0
      %v1039 = vadd.f32 0.0, %v1038
      %1040 = vmatmul.bf16.gmra.mxu0 %v951
      %v1041 = vpop.f32.mrf.mxu0
      %v1042 = vadd.f32 0.0, %v1041
      %v1043 = vpop.f32.mrf.mxu0
      %v1044 = vadd.f32 0.0, %v1043
      %1045 = vdwg.mxu0
      %v1046 = vadd.f32 %v932, %v1027
      %v1047 = vadd.f32 %v933, %v1029
      %v1048 = vadd.f32 %v934, %v1032
      %v1049 = vadd.f32 %v935, %v1034
      %v1050 = vadd.f32 %v936, %v1037
      %v1051 = vadd.f32 %v937, %v1039
      %v1052 = vadd.f32 %v938, %v1042
      %v1053 = vadd.f32 %v939, %v1044
      %v1054 = vld [vmem:[%s605] sm:$0xff]
      %v1055 = vld [vmem:[%s605 + $0x10] sm:$0xff]
      %v1056 = vld [vmem:[%s605 + $0x20] sm:$0xff]
      %v1057 = vld [vmem:[%s605 + $0x30] sm:$0xff]
      %v1058 = vld [vmem:[%s605 + $0x40] sm:$0xff]
      %v1059 = vld [vmem:[%s605 + $0x50] sm:$0xff]
      %v1060 = vld [vmem:[%s605 + $0x60] sm:$0xff]
      %v1061 = vld [vmem:[%s605 + $0x70] sm:$0xff]
      %v1062 = vpack.c.bf16 %v1055, %v1054
      %v1063 = vpack.c.bf16 %v1057, %v1056
      %v1064 = vpack.c.bf16 %v1059, %v1058
      %v1065 = vpack.c.bf16 %v1061, %v1060
      %s1066 = scalar_lea.vmem %s3, 256
      %v1067 = vld [vmem:[%s1066] sm:$0xf]
      %v1068 = vld [vmem:[%s1066 + $0x4] sm:$0xf]
      %v1069 = vld [vmem:[%s1066 + $0x8] sm:$0xf]
      %v1070 = vld [vmem:[%s1066 + $0xc] sm:$0xf]
      %v1071 = vld [vmem:[%s1066 + $0x10] sm:$0xf]
      %v1072 = vld [vmem:[%s1066 + $0x14] sm:$0xf]
      %v1073 = vld [vmem:[%s1066 + $0x18] sm:$0xf]
      %v1074 = vld [vmem:[%s1066 + $0x1c] sm:$0xf]
      %v1075 = vld [vmem:[%s1066 + $0x20] sm:$0xf]
      %v1076 = vld [vmem:[%s1066 + $0x24] sm:$0xf]
      %v1077 = vld [vmem:[%s1066 + $0x28] sm:$0xf]
      %v1078 = vld [vmem:[%s1066 + $0x2c] sm:$0xf]
      %v1079 = vld [vmem:[%s1066 + $0x30] sm:$0xf]
      %v1080 = vld [vmem:[%s1066 + $0x34] sm:$0xf]
      %v1081 = vld [vmem:[%s1066 + $0x38] sm:$0xf]
      %v1082 = vld [vmem:[%s1066 + $0x3c] sm:$0xf]
      %v1099 = vunpack.c.l.b16 %v1067
      %v1100 = vunpack.c.l.b16 %v1068
      %v1101 = vunpack.c.l.b16 %v1069
      %v1102 = vunpack.c.l.b16 %v1070
      %v1103 = vunpack.c.l.b16 %v1071
      %v1104 = vunpack.c.l.b16 %v1072
      %v1105 = vunpack.c.l.b16 %v1073
      %v1106 = vunpack.c.l.b16 %v1074
      %v1107 = vunpack.c.l.b16 %v1075
      %v1108 = vunpack.c.l.b16 %v1076
      %v1109 = vunpack.c.l.b16 %v1077
      %v1110 = vunpack.c.l.b16 %v1078
      %v1111 = vunpack.c.l.b16 %v1079
      %v1112 = vunpack.c.l.b16 %v1080
      %v1113 = vunpack.c.l.b16 %v1081
      %v1114 = vunpack.c.l.b16 %v1082
      %v1115 = vpack.c.b16 %v1100, %v1099
      %v1116 = vpack.c.b16 %v1102, %v1101
      %v1117 = vpack.c.b16 %v1104, %v1103
      %v1118 = vpack.c.b16 %v1106, %v1105
      %v1119 = vpack.c.b16 %v1108, %v1107
      %v1120 = vpack.c.b16 %v1110, %v1109
      %v1121 = vpack.c.b16 %v1112, %v1111
      %v1122 = vpack.c.b16 %v1114, %v1113
      %1131 = vmatpush.bf16.msra.mxu0 %v1122
      %1132 = vmatpush.bf16.msra.mxu0 %v1121
      %1133 = vmatpush.bf16.msra.mxu0 %v1120
      %1134 = vmatpush.bf16.msra.mxu0 %v1119
      %1135 = vmatpush.bf16.msra.mxu0 %v1118
      %1136 = vmatpush.bf16.msra.mxu0 %v1117
      %1137 = vmatpush.bf16.msra.mxu0 %v1116
      %1138 = vmatpush.bf16.msra.mxu0 %v1115
      %1139 = vmatmul.bf16.gmra.mxu0 %v1062
      %v1140 = vpop.f32.mrf.mxu0
      %v1141 = vadd.f32 0.0, %v1140
      %v1142 = vpop.f32.mrf.mxu0
      %v1143 = vadd.f32 0.0, %v1142
      %1144 = vmatmul.bf16.gmra.mxu0 %v1063
      %v1145 = vpop.f32.mrf.mxu0
      %v1146 = vadd.f32 0.0, %v1145
      %v1147 = vpop.f32.mrf.mxu0
      %v1148 = vadd.f32 0.0, %v1147
      %1149 = vmatmul.bf16.gmra.mxu0 %v1064
      %v1150 = vpop.f32.mrf.mxu0
      %v1151 = vadd.f32 0.0, %v1150
      %v1152 = vpop.f32.mrf.mxu0
      %v1153 = vadd.f32 0.0, %v1152
      %1154 = vmatmul.bf16.gmra.mxu0 %v1065
      %v1155 = vpop.f32.mrf.mxu0
      %v1156 = vadd.f32 0.0, %v1155
      %v1157 = vpop.f32.mrf.mxu0
      %v1158 = vadd.f32 0.0, %v1157
      %1159 = vdwg.mxu0
      %v1160 = vadd.f32 %v1046, %v1141
      %v1161 = vadd.f32 %v1047, %v1143
      %v1162 = vadd.f32 %v1048, %v1146
      %v1163 = vadd.f32 %v1049, %v1148
      %v1164 = vadd.f32 %v1050, %v1151
      %v1165 = vadd.f32 %v1051, %v1153
      %v1166 = vadd.f32 %v1052, %v1156
      %v1167 = vadd.f32 %v1053, %v1158
      %v1168 = vld [vmem:[%s547 + $0x1] sm:$0xff]
      %v1169 = vld [vmem:[%s547 + $0x11] sm:$0xff]
      %v1170 = vld [vmem:[%s547 + $0x21] sm:$0xff]
      %v1171 = vld [vmem:[%s547 + $0x31] sm:$0xff]
      %v1172 = vld [vmem:[%s547 + $0x41] sm:$0xff]
      %v1173 = vld [vmem:[%s547 + $0x51] sm:$0xff]
      %v1174 = vld [vmem:[%s547 + $0x61] sm:$0xff]
      %v1175 = vld [vmem:[%s547 + $0x71] sm:$0xff]
      %v1176 = vpack.c.bf16 %v1169, %v1168
      %v1177 = vpack.c.bf16 %v1171, %v1170
      %v1178 = vpack.c.bf16 %v1173, %v1172
      %v1179 = vpack.c.bf16 %v1175, %v1174
      %s1180 = scalar_lea.vmem %s3, 320
      %v1181 = vld [vmem:[%s1180] sm:$0xf]
      %v1182 = vld [vmem:[%s1180 + $0x4] sm:$0xf]
      %v1183 = vld [vmem:[%s1180 + $0x8] sm:$0xf]
      %v1184 = vld [vmem:[%s1180 + $0xc] sm:$0xf]
      %v1185 = vld [vmem:[%s1180 + $0x10] sm:$0xf]
      %v1186 = vld [vmem:[%s1180 + $0x14] sm:$0xf]
      %v1187 = vld [vmem:[%s1180 + $0x18] sm:$0xf]
      %v1188 = vld [vmem:[%s1180 + $0x1c] sm:$0xf]
      %v1189 = vld [vmem:[%s1180 + $0x20] sm:$0xf]
      %v1190 = vld [vmem:[%s1180 + $0x24] sm:$0xf]
      %v1191 = vld [vmem:[%s1180 + $0x28] sm:$0xf]
      %v1192 = vld [vmem:[%s1180 + $0x2c] sm:$0xf]
      %v1193 = vld [vmem:[%s1180 + $0x30] sm:$0xf]
      %v1194 = vld [vmem:[%s1180 + $0x34] sm:$0xf]
      %v1195 = vld [vmem:[%s1180 + $0x38] sm:$0xf]
      %v1196 = vld [vmem:[%s1180 + $0x3c] sm:$0xf]
      %v1213 = vunpack.c.l.b16 %v1181
      %v1214 = vunpack.c.l.b16 %v1182
      %v1215 = vunpack.c.l.b16 %v1183
      %v1216 = vunpack.c.l.b16 %v1184
      %v1217 = vunpack.c.l.b16 %v1185
      %v1218 = vunpack.c.l.b16 %v1186
      %v1219 = vunpack.c.l.b16 %v1187
      %v1220 = vunpack.c.l.b16 %v1188
      %v1221 = vunpack.c.l.b16 %v1189
      %v1222 = vunpack.c.l.b16 %v1190
      %v1223 = vunpack.c.l.b16 %v1191
      %v1224 = vunpack.c.l.b16 %v1192
      %v1225 = vunpack.c.l.b16 %v1193
      %v1226 = vunpack.c.l.b16 %v1194
      %v1227 = vunpack.c.l.b16 %v1195
      %v1228 = vunpack.c.l.b16 %v1196
      %v1229 = vpack.c.b16 %v1214, %v1213
      %v1230 = vpack.c.b16 %v1216, %v1215
      %v1231 = vpack.c.b16 %v1218, %v1217
      %v1232 = vpack.c.b16 %v1220, %v1219
      %v1233 = vpack.c.b16 %v1222, %v1221
      %v1234 = vpack.c.b16 %v1224, %v1223
      %v1235 = vpack.c.b16 %v1226, %v1225
      %v1236 = vpack.c.b16 %v1228, %v1227
      %1245 = vmatpush.bf16.msra.mxu0 %v1236
      %1246 = vmatpush.bf16.msra.mxu0 %v1235
      %1247 = vmatpush.bf16.msra.mxu0 %v1234
      %1248 = vmatpush.bf16.msra.mxu0 %v1233
      %1249 = vmatpush.bf16.msra.mxu0 %v1232
      %1250 = vmatpush.bf16.msra.mxu0 %v1231
      %1251 = vmatpush.bf16.msra.mxu0 %v1230
      %1252 = vmatpush.bf16.msra.mxu0 %v1229
      %1253 = vmatmul.bf16.gmra.mxu0 %v1176
      %v1254 = vpop.f32.mrf.mxu0
      %v1255 = vadd.f32 0.0, %v1254
      %v1256 = vpop.f32.mrf.mxu0
      %v1257 = vadd.f32 0.0, %v1256
      %1258 = vmatmul.bf16.gmra.mxu0 %v1177
      %v1259 = vpop.f32.mrf.mxu0
      %v1260 = vadd.f32 0.0, %v1259
      %v1261 = vpop.f32.mrf.mxu0
      %v1262 = vadd.f32 0.0, %v1261
      %1263 = vmatmul.bf16.gmra.mxu0 %v1178
      %v1264 = vpop.f32.mrf.mxu0
      %v1265 = vadd.f32 0.0, %v1264
      %v1266 = vpop.f32.mrf.mxu0
      %v1267 = vadd.f32 0.0, %v1266
      %1268 = vmatmul.bf16.gmra.mxu0 %v1179
      %v1269 = vpop.f32.mrf.mxu0
      %v1270 = vadd.f32 0.0, %v1269
      %v1271 = vpop.f32.mrf.mxu0
      %v1272 = vadd.f32 0.0, %v1271
      %1273 = vdwg.mxu0
      %v1274 = vadd.f32 %v1160, %v1255
      %v1275 = vadd.f32 %v1161, %v1257
      %v1276 = vadd.f32 %v1162, %v1260
      %v1277 = vadd.f32 %v1163, %v1262
      %v1278 = vadd.f32 %v1164, %v1265
      %v1279 = vadd.f32 %v1165, %v1267
      %v1280 = vadd.f32 %v1166, %v1270
      %v1281 = vadd.f32 %v1167, %v1272
      %v1282 = vld [vmem:[%s431] sm:$0xff]
      %v1283 = vld [vmem:[%s431 + $0x10] sm:$0xff]
      %v1284 = vld [vmem:[%s431 + $0x20] sm:$0xff]
      %v1285 = vld [vmem:[%s431 + $0x30] sm:$0xff]
      %v1286 = vld [vmem:[%s431 + $0x40] sm:$0xff]
      %v1287 = vld [vmem:[%s431 + $0x50] sm:$0xff]
      %v1288 = vld [vmem:[%s431 + $0x60] sm:$0xff]
      %v1289 = vld [vmem:[%s431 + $0x70] sm:$0xff]
      %v1290 = vpack.c.bf16 %v1283, %v1282
      %v1291 = vpack.c.bf16 %v1285, %v1284
      %v1292 = vpack.c.bf16 %v1287, %v1286
      %v1293 = vpack.c.bf16 %v1289, %v1288
      %s1294 = scalar_lea.vmem %s3, 384
      %v1295 = vld [vmem:[%s1294] sm:$0xf]
      %v1296 = vld [vmem:[%s1294 + $0x4] sm:$0xf]
      %v1297 = vld [vmem:[%s1294 + $0x8] sm:$0xf]
      %v1298 = vld [vmem:[%s1294 + $0xc] sm:$0xf]
      %v1299 = vld [vmem:[%s1294 + $0x10] sm:$0xf]
      %v1300 = vld [vmem:[%s1294 + $0x14] sm:$0xf]
      %v1301 = vld [vmem:[%s1294 + $0x18] sm:$0xf]
      %v1302 = vld [vmem:[%s1294 + $0x1c] sm:$0xf]
      %v1303 = vld [vmem:[%s1294 + $0x20] sm:$0xf]
      %v1304 = vld [vmem:[%s1294 + $0x24] sm:$0xf]
      %v1305 = vld [vmem:[%s1294 + $0x28] sm:$0xf]
      %v1306 = vld [vmem:[%s1294 + $0x2c] sm:$0xf]
      %v1307 = vld [vmem:[%s1294 + $0x30] sm:$0xf]
      %v1308 = vld [vmem:[%s1294 + $0x34] sm:$0xf]
      %v1309 = vld [vmem:[%s1294 + $0x38] sm:$0xf]
      %v1310 = vld [vmem:[%s1294 + $0x3c] sm:$0xf]
      %v1327 = vunpack.c.l.b16 %v1295
      %v1328 = vunpack.c.l.b16 %v1296
      %v1329 = vunpack.c.l.b16 %v1297
      %v1330 = vunpack.c.l.b16 %v1298
      %v1331 = vunpack.c.l.b16 %v1299
      %v1332 = vunpack.c.l.b16 %v1300
      %v1333 = vunpack.c.l.b16 %v1301
      %v1334 = vunpack.c.l.b16 %v1302
      %v1335 = vunpack.c.l.b16 %v1303
      %v1336 = vunpack.c.l.b16 %v1304
      %v1337 = vunpack.c.l.b16 %v1305
      %v1338 = vunpack.c.l.b16 %v1306
      %v1339 = vunpack.c.l.b16 %v1307
      %v1340 = vunpack.c.l.b16 %v1308
      %v1341 = vunpack.c.l.b16 %v1309
      %v1342 = vunpack.c.l.b16 %v1310
      %v1343 = vpack.c.b16 %v1328, %v1327
      %v1344 = vpack.c.b16 %v1330, %v1329
      %v1345 = vpack.c.b16 %v1332, %v1331
      %v1346 = vpack.c.b16 %v1334, %v1333
      %v1347 = vpack.c.b16 %v1336, %v1335
      %v1348 = vpack.c.b16 %v1338, %v1337
      %v1349 = vpack.c.b16 %v1340, %v1339
      %v1350 = vpack.c.b16 %v1342, %v1341
      %1359 = vmatpush.bf16.msra.mxu0 %v1350
      %1360 = vmatpush.bf16.msra.mxu0 %v1349
      %1361 = vmatpush.bf16.msra.mxu0 %v1348
      %1362 = vmatpush.bf16.msra.mxu0 %v1347
      %1363 = vmatpush.bf16.msra.mxu0 %v1346
      %1364 = vmatpush.bf16.msra.mxu0 %v1345
      %1365 = vmatpush.bf16.msra.mxu0 %v1344
      %1366 = vmatpush.bf16.msra.mxu0 %v1343
      %1367 = vmatmul.bf16.gmra.mxu0 %v1290
      %v1368 = vpop.f32.mrf.mxu0
      %v1369 = vadd.f32 0.0, %v1368
      %v1370 = vpop.f32.mrf.mxu0
      %v1371 = vadd.f32 0.0, %v1370
      %1372 = vmatmul.bf16.gmra.mxu0 %v1291
      %v1373 = vpop.f32.mrf.mxu0
      %v1374 = vadd.f32 0.0, %v1373
      %v1375 = vpop.f32.mrf.mxu0
      %v1376 = vadd.f32 0.0, %v1375
      %1377 = vmatmul.bf16.gmra.mxu0 %v1292
      %v1378 = vpop.f32.mrf.mxu0
      %v1379 = vadd.f32 0.0, %v1378
      %v1380 = vpop.f32.mrf.mxu0
      %v1381 = vadd.f32 0.0, %v1380
      %1382 = vmatmul.bf16.gmra.mxu0 %v1293
      %v1383 = vpop.f32.mrf.mxu0
      %v1384 = vadd.f32 0.0, %v1383
      %v1385 = vpop.f32.mrf.mxu0
      %v1386 = vadd.f32 0.0, %v1385
      %1387 = vdwg.mxu0
      %v1388 = vadd.f32 %v1274, %v1369
      %v1389 = vadd.f32 %v1275, %v1371
      %v1390 = vadd.f32 %v1276, %v1374
      %v1391 = vadd.f32 %v1277, %v1376
      %v1392 = vadd.f32 %v1278, %v1379
      %v1393 = vadd.f32 %v1279, %v1381
      %v1394 = vadd.f32 %v1280, %v1384
      %v1395 = vadd.f32 %v1281, %v1386
      %v1396 = vld [vmem:[%s489] sm:$0xff]
      %v1397 = vld [vmem:[%s489 + $0x10] sm:$0xff]
      %v1398 = vld [vmem:[%s489 + $0x20] sm:$0xff]
      %v1399 = vld [vmem:[%s489 + $0x30] sm:$0xff]
      %v1400 = vld [vmem:[%s489 + $0x40] sm:$0xff]
      %v1401 = vld [vmem:[%s489 + $0x50] sm:$0xff]
      %v1402 = vld [vmem:[%s489 + $0x60] sm:$0xff]
      %v1403 = vld [vmem:[%s489 + $0x70] sm:$0xff]
      %v1404 = vpack.c.bf16 %v1397, %v1396
      %v1405 = vpack.c.bf16 %v1399, %v1398
      %v1406 = vpack.c.bf16 %v1401, %v1400
      %v1407 = vpack.c.bf16 %v1403, %v1402
      %s1408 = scalar_lea.vmem %s3, 448
      %v1409 = vld [vmem:[%s1408] sm:$0xf]
      %v1410 = vld [vmem:[%s1408 + $0x4] sm:$0xf]
      %v1411 = vld [vmem:[%s1408 + $0x8] sm:$0xf]
      %v1412 = vld [vmem:[%s1408 + $0xc] sm:$0xf]
      %v1413 = vld [vmem:[%s1408 + $0x10] sm:$0xf]
      %v1414 = vld [vmem:[%s1408 + $0x14] sm:$0xf]
      %v1415 = vld [vmem:[%s1408 + $0x18] sm:$0xf]
      %v1416 = vld [vmem:[%s1408 + $0x1c] sm:$0xf]
      %v1417 = vld [vmem:[%s1408 + $0x20] sm:$0xf]
      %v1418 = vld [vmem:[%s1408 + $0x24] sm:$0xf]
      %v1419 = vld [vmem:[%s1408 + $0x28] sm:$0xf]
      %v1420 = vld [vmem:[%s1408 + $0x2c] sm:$0xf]
      %v1421 = vld [vmem:[%s1408 + $0x30] sm:$0xf]
      %v1422 = vld [vmem:[%s1408 + $0x34] sm:$0xf]
      %v1423 = vld [vmem:[%s1408 + $0x38] sm:$0xf]
      %v1424 = vld [vmem:[%s1408 + $0x3c] sm:$0xf]
      %v1441 = vunpack.c.l.b16 %v1409
      %v1442 = vunpack.c.l.b16 %v1410
      %v1443 = vunpack.c.l.b16 %v1411
      %v1444 = vunpack.c.l.b16 %v1412
      %v1445 = vunpack.c.l.b16 %v1413
      %v1446 = vunpack.c.l.b16 %v1414
      %v1447 = vunpack.c.l.b16 %v1415
      %v1448 = vunpack.c.l.b16 %v1416
      %v1449 = vunpack.c.l.b16 %v1417
      %v1450 = vunpack.c.l.b16 %v1418
      %v1451 = vunpack.c.l.b16 %v1419
      %v1452 = vunpack.c.l.b16 %v1420
      %v1453 = vunpack.c.l.b16 %v1421
      %v1454 = vunpack.c.l.b16 %v1422
      %v1455 = vunpack.c.l.b16 %v1423
      %v1456 = vunpack.c.l.b16 %v1424
      %v1457 = vpack.c.b16 %v1442, %v1441
      %v1458 = vpack.c.b16 %v1444, %v1443
      %v1459 = vpack.c.b16 %v1446, %v1445
      %v1460 = vpack.c.b16 %v1448, %v1447
      %v1461 = vpack.c.b16 %v1450, %v1449
      %v1462 = vpack.c.b16 %v1452, %v1451
      %v1463 = vpack.c.b16 %v1454, %v1453
      %v1464 = vpack.c.b16 %v1456, %v1455
      %1473 = vmatpush.bf16.msra.mxu0 %v1464
      %1474 = vmatpush.bf16.msra.mxu0 %v1463
      %1475 = vmatpush.bf16.msra.mxu0 %v1462
      %1476 = vmatpush.bf16.msra.mxu0 %v1461
      %1477 = vmatpush.bf16.msra.mxu0 %v1460
      %1478 = vmatpush.bf16.msra.mxu0 %v1459
      %1479 = vmatpush.bf16.msra.mxu0 %v1458
      %1480 = vmatpush.bf16.msra.mxu0 %v1457
      %1481 = vmatmul.bf16.gmra.mxu0 %v1404
      %v1482 = vpop.f32.mrf.mxu0
      %v1483 = vadd.f32 0.0, %v1482
      %v1484 = vpop.f32.mrf.mxu0
      %v1485 = vadd.f32 0.0, %v1484
      %1486 = vmatmul.bf16.gmra.mxu0 %v1405
      %v1487 = vpop.f32.mrf.mxu0
      %v1488 = vadd.f32 0.0, %v1487
      %v1489 = vpop.f32.mrf.mxu0
      %v1490 = vadd.f32 0.0, %v1489
      %1491 = vmatmul.bf16.gmra.mxu0 %v1406
      %v1492 = vpop.f32.mrf.mxu0
      %v1493 = vadd.f32 0.0, %v1492
      %v1494 = vpop.f32.mrf.mxu0
      %v1495 = vadd.f32 0.0, %v1494
      %1496 = vmatmul.bf16.gmra.mxu0 %v1407
      %v1497 = vpop.f32.mrf.mxu0
      %v1498 = vadd.f32 0.0, %v1497
      %v1499 = vpop.f32.mrf.mxu0
      %v1500 = vadd.f32 0.0, %v1499
      %1501 = vdwg.mxu0
      %v1502 = vadd.f32 %v1388, %v1483
      %v1503 = vadd.f32 %v1389, %v1485
      %v1504 = vadd.f32 %v1390, %v1488
      %v1505 = vadd.f32 %v1391, %v1490
      %v1506 = vadd.f32 %v1392, %v1493
      %v1507 = vadd.f32 %v1393, %v1495
      %v1508 = vadd.f32 %v1394, %v1498
      %v1509 = vadd.f32 %v1395, %v1500
      %v1510 = vld [vmem:[%s431 + $0x1] sm:$0xff]
      %v1511 = vld [vmem:[%s431 + $0x11] sm:$0xff]
      %v1512 = vld [vmem:[%s431 + $0x21] sm:$0xff]
      %v1513 = vld [vmem:[%s431 + $0x31] sm:$0xff]
      %v1514 = vld [vmem:[%s431 + $0x41] sm:$0xff]
      %v1515 = vld [vmem:[%s431 + $0x51] sm:$0xff]
      %v1516 = vld [vmem:[%s431 + $0x61] sm:$0xff]
      %v1517 = vld [vmem:[%s431 + $0x71] sm:$0xff]
      %v1518 = vpack.c.bf16 %v1511, %v1510
      %v1519 = vpack.c.bf16 %v1513, %v1512
      %v1520 = vpack.c.bf16 %v1515, %v1514
      %v1521 = vpack.c.bf16 %v1517, %v1516
      %s1522 = scalar_lea.vmem %s3, 512
      %v1523 = vld [vmem:[%s1522] sm:$0xf]
      %v1524 = vld [vmem:[%s1522 + $0x4] sm:$0xf]
      %v1525 = vld [vmem:[%s1522 + $0x8] sm:$0xf]
      %v1526 = vld [vmem:[%s1522 + $0xc] sm:$0xf]
      %v1527 = vld [vmem:[%s1522 + $0x10] sm:$0xf]
      %v1528 = vld [vmem:[%s1522 + $0x14] sm:$0xf]
      %v1529 = vld [vmem:[%s1522 + $0x18] sm:$0xf]
      %v1530 = vld [vmem:[%s1522 + $0x1c] sm:$0xf]
      %v1531 = vld [vmem:[%s1522 + $0x20] sm:$0xf]
      %v1532 = vld [vmem:[%s1522 + $0x24] sm:$0xf]
      %v1533 = vld [vmem:[%s1522 + $0x28] sm:$0xf]
      %v1534 = vld [vmem:[%s1522 + $0x2c] sm:$0xf]
      %v1535 = vld [vmem:[%s1522 + $0x30] sm:$0xf]
      %v1536 = vld [vmem:[%s1522 + $0x34] sm:$0xf]
      %v1537 = vld [vmem:[%s1522 + $0x38] sm:$0xf]
      %v1538 = vld [vmem:[%s1522 + $0x3c] sm:$0xf]
      %v1555 = vunpack.c.l.b16 %v1523
      %v1556 = vunpack.c.l.b16 %v1524
      %v1557 = vunpack.c.l.b16 %v1525
      %v1558 = vunpack.c.l.b16 %v1526
      %v1559 = vunpack.c.l.b16 %v1527
      %v1560 = vunpack.c.l.b16 %v1528
      %v1561 = vunpack.c.l.b16 %v1529
      %v1562 = vunpack.c.l.b16 %v1530
      %v1563 = vunpack.c.l.b16 %v1531
      %v1564 = vunpack.c.l.b16 %v1532
      %v1565 = vunpack.c.l.b16 %v1533
      %v1566 = vunpack.c.l.b16 %v1534
      %v1567 = vunpack.c.l.b16 %v1535
      %v1568 = vunpack.c.l.b16 %v1536
      %v1569 = vunpack.c.l.b16 %v1537
      %v1570 = vunpack.c.l.b16 %v1538
      %v1571 = vpack.c.b16 %v1556, %v1555
      %v1572 = vpack.c.b16 %v1558, %v1557
      %v1573 = vpack.c.b16 %v1560, %v1559
      %v1574 = vpack.c.b16 %v1562, %v1561
      %v1575 = vpack.c.b16 %v1564, %v1563
      %v1576 = vpack.c.b16 %v1566, %v1565
      %v1577 = vpack.c.b16 %v1568, %v1567
      %v1578 = vpack.c.b16 %v1570, %v1569
      %1587 = vmatpush.bf16.msra.mxu0 %v1578
      %1588 = vmatpush.bf16.msra.mxu0 %v1577
      %1589 = vmatpush.bf16.msra.mxu0 %v1576
      %1590 = vmatpush.bf16.msra.mxu0 %v1575
      %1591 = vmatpush.bf16.msra.mxu0 %v1574
      %1592 = vmatpush.bf16.msra.mxu0 %v1573
      %1593 = vmatpush.bf16.msra.mxu0 %v1572
      %1594 = vmatpush.bf16.msra.mxu0 %v1571
      %1595 = vmatmul.bf16.gmra.mxu0 %v1518
      %v1596 = vpop.f32.mrf.mxu0
      %v1597 = vadd.f32 0.0, %v1596
      %v1598 = vpop.f32.mrf.mxu0
      %v1599 = vadd.f32 0.0, %v1598
      %1600 = vmatmul.bf16.gmra.mxu0 %v1519
      %v1601 = vpop.f32.mrf.mxu0
      %v1602 = vadd.f32 0.0, %v1601
      %v1603 = vpop.f32.mrf.mxu0
      %v1604 = vadd.f32 0.0, %v1603
      %1605 = vmatmul.bf16.gmra.mxu0 %v1520
      %v1606 = vpop.f32.mrf.mxu0
      %v1607 = vadd.f32 0.0, %v1606
      %v1608 = vpop.f32.mrf.mxu0
      %v1609 = vadd.f32 0.0, %v1608
      %1610 = vmatmul.bf16.gmra.mxu0 %v1521
      %v1611 = vpop.f32.mrf.mxu0
      %v1612 = vadd.f32 0.0, %v1611
      %v1613 = vpop.f32.mrf.mxu0
      %v1614 = vadd.f32 0.0, %v1613
      %1615 = vdwg.mxu0
      %v1616 = vadd.f32 %v1502, %v1597
      %v1617 = vadd.f32 %v1503, %v1599
      %v1618 = vadd.f32 %v1504, %v1602
      %v1619 = vadd.f32 %v1505, %v1604
      %v1620 = vadd.f32 %v1506, %v1607
      %v1621 = vadd.f32 %v1507, %v1609
      %v1622 = vadd.f32 %v1508, %v1612
      %v1623 = vadd.f32 %v1509, %v1614
      %1624 = vst [vmem:[#allocation3] sm:$0xff] 0.0
      %1625 = vst [vmem:[#allocation3 + $0x8] sm:$0x3] 0.0
      %1626 = vst [vmem:[#allocation3 + $0x10] sm:$0xff] 0.0
      %1627 = vst [vmem:[#allocation3 + $0x18] sm:$0x3] 0.0
      %1628 = vst [vmem:[#allocation3 + $0x20] sm:$0xff] 0.0
      %1629 = vst [vmem:[#allocation3 + $0x28] sm:$0x3] 0.0
      %1630 = vst [vmem:[#allocation3 + $0x30] sm:$0xff] 0.0
      %1631 = vst [vmem:[#allocation3 + $0x38] sm:$0x3] 0.0
      %1632 = vst [vmem:[#allocation3 + $0x40] sm:$0xff] 0.0
      %1633 = vst [vmem:[#allocation3 + $0x48] sm:$0x3] 0.0
      %1634 = vst [vmem:[#allocation3 + $0x50] sm:$0xff] 0.0
      %1635 = vst [vmem:[#allocation3 + $0x58] sm:$0x3] 0.0
      %1636 = vst [vmem:[#allocation3 + $0x60] sm:$0xff] 0.0
      %1637 = vst [vmem:[#allocation3 + $0x68] sm:$0x3] 0.0
      %1638 = vst [vmem:[#allocation3 + $0x70] sm:$0xff] 0.0
      %1639 = vst [vmem:[#allocation3 + $0x78] sm:$0x3] 0.0
      %1640 = vst [vmem:[#allocation3 + $0x80] sm:$0xff] 0.0
      %1641 = vst [vmem:[#allocation3 + $0x88] sm:$0x3] 0.0
      %1642 = vst [vmem:[#allocation3 + $0x90] sm:$0xff] 0.0
      %1643 = vst [vmem:[#allocation3 + $0x98] sm:$0x3] 0.0
      %v1644 = vld [vmem:[%s4] sm:$0x1]
      %v1646 = vperm.slane %v1644, 0
      %v1648 = vmul.f32 %v1616, %v1646
      %v1649 = vmul.f32 %v1617, %v1646
      %v1650 = vmul.f32 %v1618, %v1646
      %v1651 = vmul.f32 %v1619, %v1646
      %v1652 = vmul.f32 %v1620, %v1646
      %v1653 = vmul.f32 %v1621, %v1646
      %v1654 = vmul.f32 %v1622, %v1646
      %v1655 = vmul.f32 %v1623, %v1646
      %v1656 = vld [vmem:[%s5] sm:$0x1]
      %v1658 = vperm.slane %v1656, 0
      %v1660 = vadd.f32 %v1648, %v1658
      %v1661 = vadd.f32 %v1649, %v1658
      %v1662 = vadd.f32 %v1650, %v1658
      %v1663 = vadd.f32 %v1651, %v1658
      %v1664 = vadd.f32 %v1652, %v1658
      %v1665 = vadd.f32 %v1653, %v1658
      %v1666 = vadd.f32 %v1654, %v1658
      %v1667 = vadd.f32 %v1655, %v1658
      %v1668 = vmax.f32 %v1660, 0.0
      %v1669 = vmax.f32 %v1661, 0.0
      %v1670 = vmax.f32 %v1662, 0.0
      %v1671 = vmax.f32 %v1663, 0.0
      %v1672 = vmax.f32 %v1664, 0.0
      %v1673 = vmax.f32 %v1665, 0.0
      %v1674 = vmax.f32 %v1666, 0.0
      %v1675 = vmax.f32 %v1667, 0.0
      %s1676 = scalar_lea.vmem [#allocation3], 16
      %1677 = vst [vmem:[%s1676 + $0x1] sm:$0xff] %v1668
      %1678 = vst [vmem:[%s1676 + $0x11] sm:$0xff] %v1669
      %1679 = vst [vmem:[%s1676 + $0x21] sm:$0xff] %v1670
      %1680 = vst [vmem:[%s1676 + $0x31] sm:$0xff] %v1671
      %1681 = vst [vmem:[%s1676 + $0x41] sm:$0xff] %v1672
      %1682 = vst [vmem:[%s1676 + $0x51] sm:$0xff] %v1673
      %1683 = vst [vmem:[%s1676 + $0x61] sm:$0xff] %v1674
      %1684 = vst [vmem:[%s1676 + $0x71] sm:$0xff] %v1675
      %v1685 = vld [vmem:[#allocation3] sm:$0xff]
      %v1686 = vld [vmem:[#allocation3 + $0x10] sm:$0xff]
      %v1687 = vld [vmem:[#allocation3 + $0x20] sm:$0xff]
      %v1688 = vld [vmem:[#allocation3 + $0x30] sm:$0xff]
      %v1689 = vld [vmem:[#allocation3 + $0x40] sm:$0xff]
      %v1690 = vld [vmem:[#allocation3 + $0x50] sm:$0xff]
      %v1691 = vld [vmem:[#allocation3 + $0x60] sm:$0xff]
      %v1692 = vld [vmem:[#allocation3 + $0x70] sm:$0xff]
      %v1693 = vpack.c.bf16 %v1686, %v1685
      %v1694 = vpack.c.bf16 %v1688, %v1687
      %v1695 = vpack.c.bf16 %v1690, %v1689
      %v1696 = vpack.c.bf16 %v1692, %v1691
      %v1697 = vld [vmem:[%s6] sm:$0xf]
      %v1698 = vld [vmem:[%s6 + $0x4] sm:$0xf]
      %v1699 = vld [vmem:[%s6 + $0x8] sm:$0xf]
      %v1700 = vld [vmem:[%s6 + $0xc] sm:$0xf]
      %v1701 = vld [vmem:[%s6 + $0x10] sm:$0xf]
      %v1702 = vld [vmem:[%s6 + $0x14] sm:$0xf]
      %v1703 = vld [vmem:[%s6 + $0x18] sm:$0xf]
      %v1704 = vld [vmem:[%s6 + $0x1c] sm:$0xf]
      %v1705 = vld [vmem:[%s6 + $0x20] sm:$0xf]
      %v1706 = vld [vmem:[%s6 + $0x24] sm:$0xf]
      %v1707 = vld [vmem:[%s6 + $0x28] sm:$0xf]
      %v1708 = vld [vmem:[%s6 + $0x2c] sm:$0xf]
      %v1709 = vld [vmem:[%s6 + $0x30] sm:$0xf]
      %v1710 = vld [vmem:[%s6 + $0x34] sm:$0xf]
      %v1711 = vld [vmem:[%s6 + $0x38] sm:$0xf]
      %v1712 = vld [vmem:[%s6 + $0x3c] sm:$0xf]
      %v1713 = vld [vmem:[#allocation3 + $0x1] sm:$0xff]
      %v1714 = vld [vmem:[#allocation3 + $0x11] sm:$0xff]
      %v1715 = vld [vmem:[#allocation3 + $0x21] sm:$0xff]
      %v1716 = vld [vmem:[#allocation3 + $0x31] sm:$0xff]
      %v1717 = vld [vmem:[#allocation3 + $0x41] sm:$0xff]
      %v1718 = vld [vmem:[#allocation3 + $0x51] sm:$0xff]
      %v1719 = vld [vmem:[#allocation3 + $0x61] sm:$0xff]
      %v1720 = vld [vmem:[#allocation3 + $0x71] sm:$0xff]
      %v1721 = vpack.c.bf16 %v1714, %v1713
      %v1722 = vpack.c.bf16 %v1716, %v1715
      %v1723 = vpack.c.bf16 %v1718, %v1717
      %v1724 = vpack.c.bf16 %v1720, %v1719
      %s1725 = scalar_lea.vmem %s6, 64
      %v1726 = vld [vmem:[%s1725] sm:$0xf]
      %v1727 = vld [vmem:[%s1725 + $0x4] sm:$0xf]
      %v1728 = vld [vmem:[%s1725 + $0x8] sm:$0xf]
      %v1729 = vld [vmem:[%s1725 + $0xc] sm:$0xf]
      %v1730 = vld [vmem:[%s1725 + $0x10] sm:$0xf]
      %v1731 = vld [vmem:[%s1725 + $0x14] sm:$0xf]
      %v1732 = vld [vmem:[%s1725 + $0x18] sm:$0xf]
      %v1733 = vld [vmem:[%s1725 + $0x1c] sm:$0xf]
      %v1734 = vld [vmem:[%s1725 + $0x20] sm:$0xf]
      %v1735 = vld [vmem:[%s1725 + $0x24] sm:$0xf]
      %v1736 = vld [vmem:[%s1725 + $0x28] sm:$0xf]
      %v1737 = vld [vmem:[%s1725 + $0x2c] sm:$0xf]
      %v1738 = vld [vmem:[%s1725 + $0x30] sm:$0xf]
      %v1739 = vld [vmem:[%s1725 + $0x34] sm:$0xf]
      %v1740 = vld [vmem:[%s1725 + $0x38] sm:$0xf]
      %v1741 = vld [vmem:[%s1725 + $0x3c] sm:$0xf]
      %v1758 = vunpack.c.l.b16 %v1726
      %v1759 = vunpack.c.l.b16 %v1727
      %v1760 = vunpack.c.l.b16 %v1728
      %v1761 = vunpack.c.l.b16 %v1729
      %v1762 = vunpack.c.l.b16 %v1730
      %v1763 = vunpack.c.l.b16 %v1731
      %v1764 = vunpack.c.l.b16 %v1732
      %v1765 = vunpack.c.l.b16 %v1733
      %v1766 = vunpack.c.l.b16 %v1734
      %v1767 = vunpack.c.l.b16 %v1735
      %v1768 = vunpack.c.l.b16 %v1736
      %v1769 = vunpack.c.l.b16 %v1737
      %v1770 = vunpack.c.l.b16 %v1738
      %v1771 = vunpack.c.l.b16 %v1739
      %v1772 = vunpack.c.l.b16 %v1740
      %v1773 = vunpack.c.l.b16 %v1741
      %v1774 = vpack.c.b16 %v1759, %v1758
      %v1775 = vpack.c.b16 %v1761, %v1760
      %v1776 = vpack.c.b16 %v1763, %v1762
      %v1777 = vpack.c.b16 %v1765, %v1764
      %v1778 = vpack.c.b16 %v1767, %v1766
      %v1779 = vpack.c.b16 %v1769, %v1768
      %v1780 = vpack.c.b16 %v1771, %v1770
      %v1781 = vpack.c.b16 %v1773, %v1772
      %1790 = vmatpush.bf16.msra.mxu0 %v1781
      %1791 = vmatpush.bf16.msra.mxu0 %v1780
      %1792 = vmatpush.bf16.msra.mxu0 %v1779
      %1793 = vmatpush.bf16.msra.mxu0 %v1778
      %1794 = vmatpush.bf16.msra.mxu0 %v1777
      %1795 = vmatpush.bf16.msra.mxu0 %v1776
      %1796 = vmatpush.bf16.msra.mxu0 %v1775
      %1797 = vmatpush.bf16.msra.mxu0 %v1774
      %1798 = vmatmul.bf16.gmra.mxu0 %v1721
      %v1799 = vpop.f32.mrf.mxu0
      %v1800 = vadd.f32 0.0, %v1799
      %v1801 = vpop.f32.mrf.mxu0
      %v1802 = vadd.f32 0.0, %v1801
      %1803 = vmatmul.bf16.gmra.mxu0 %v1722
      %v1804 = vpop.f32.mrf.mxu0
      %v1805 = vadd.f32 0.0, %v1804
      %v1806 = vpop.f32.mrf.mxu0
      %v1807 = vadd.f32 0.0, %v1806
      %1808 = vmatmul.bf16.gmra.mxu0 %v1723
      %v1809 = vpop.f32.mrf.mxu0
      %v1810 = vadd.f32 0.0, %v1809
      %v1811 = vpop.f32.mrf.mxu0
      %v1812 = vadd.f32 0.0, %v1811
      %1813 = vmatmul.bf16.gmra.mxu0 %v1724
      %v1814 = vpop.f32.mrf.mxu0
      %v1815 = vadd.f32 0.0, %v1814
      %v1816 = vpop.f32.mrf.mxu0
      %v1817 = vadd.f32 0.0, %v1816
      %1818 = vdwg.mxu0
      %v1835 = vunpack.c.l.b16 %v1697
      %v1836 = vunpack.c.l.b16 %v1698
      %v1837 = vunpack.c.l.b16 %v1699
      %v1838 = vunpack.c.l.b16 %v1700
      %v1839 = vunpack.c.l.b16 %v1701
      %v1840 = vunpack.c.l.b16 %v1702
      %v1841 = vunpack.c.l.b16 %v1703
      %v1842 = vunpack.c.l.b16 %v1704
      %v1843 = vunpack.c.l.b16 %v1705
      %v1844 = vunpack.c.l.b16 %v1706
      %v1845 = vunpack.c.l.b16 %v1707
      %v1846 = vunpack.c.l.b16 %v1708
      %v1847 = vunpack.c.l.b16 %v1709
      %v1848 = vunpack.c.l.b16 %v1710
      %v1849 = vunpack.c.l.b16 %v1711
      %v1850 = vunpack.c.l.b16 %v1712
      %v1851 = vpack.c.b16 %v1836, %v1835
      %v1852 = vpack.c.b16 %v1838, %v1837
      %v1853 = vpack.c.b16 %v1840, %v1839
      %v1854 = vpack.c.b16 %v1842, %v1841
      %v1855 = vpack.c.b16 %v1844, %v1843
      %v1856 = vpack.c.b16 %v1846, %v1845
      %v1857 = vpack.c.b16 %v1848, %v1847
      %v1858 = vpack.c.b16 %v1850, %v1849
      %1867 = vmatpush.bf16.msra.mxu0 %v1858
      %1868 = vmatpush.bf16.msra.mxu0 %v1857
      %1869 = vmatpush.bf16.msra.mxu0 %v1856
      %1870 = vmatpush.bf16.msra.mxu0 %v1855
      %1871 = vmatpush.bf16.msra.mxu0 %v1854
      %1872 = vmatpush.bf16.msra.mxu0 %v1853
      %1873 = vmatpush.bf16.msra.mxu0 %v1852
      %1874 = vmatpush.bf16.msra.mxu0 %v1851
      %1875 = vmatmul.bf16.gmra.mxu0 %v1693
      %v1876 = vpop.f32.mrf.mxu0
      %v1877 = vadd.f32 %v1800, %v1876
      %v1878 = vpop.f32.mrf.mxu0
      %v1879 = vadd.f32 %v1802, %v1878
      %1880 = vmatmul.bf16.gmra.mxu0 %v1694
      %v1881 = vpop.f32.mrf.mxu0
      %v1882 = vadd.f32 %v1805, %v1881
      %v1883 = vpop.f32.mrf.mxu0
      %v1884 = vadd.f32 %v1807, %v1883
      %1885 = vmatmul.bf16.gmra.mxu0 %v1695
      %v1886 = vpop.f32.mrf.mxu0
      %v1887 = vadd.f32 %v1810, %v1886
      %v1888 = vpop.f32.mrf.mxu0
      %v1889 = vadd.f32 %v1812, %v1888
      %1890 = vmatmul.bf16.gmra.mxu0 %v1696
      %v1891 = vpop.f32.mrf.mxu0
      %v1892 = vadd.f32 %v1815, %v1891
      %v1893 = vpop.f32.mrf.mxu0
      %v1894 = vadd.f32 %v1817, %v1893
      %1895 = vdwg.mxu0
      %v1896 = vld [vmem:[#allocation3 + $0x2] sm:$0xff]
      %v1897 = vld [vmem:[#allocation3 + $0x12] sm:$0xff]
      %v1898 = vld [vmem:[#allocation3 + $0x22] sm:$0xff]
      %v1899 = vld [vmem:[#allocation3 + $0x32] sm:$0xff]
      %v1900 = vld [vmem:[#allocation3 + $0x42] sm:$0xff]
      %v1901 = vld [vmem:[#allocation3 + $0x52] sm:$0xff]
      %v1902 = vld [vmem:[#allocation3 + $0x62] sm:$0xff]
      %v1903 = vld [vmem:[#allocation3 + $0x72] sm:$0xff]
      %v1904 = vpack.c.bf16 %v1897, %v1896
      %v1905 = vpack.c.bf16 %v1899, %v1898
      %v1906 = vpack.c.bf16 %v1901, %v1900
      %v1907 = vpack.c.bf16 %v1903, %v1902
      %s1908 = scalar_lea.vmem %s6, 128
      %v1909 = vld [vmem:[%s1908] sm:$0xf]
      %v1910 = vld [vmem:[%s1908 + $0x4] sm:$0xf]
      %v1911 = vld [vmem:[%s1908 + $0x8] sm:$0xf]
      %v1912 = vld [vmem:[%s1908 + $0xc] sm:$0xf]
      %v1913 = vld [vmem:[%s1908 + $0x10] sm:$0xf]
      %v1914 = vld [vmem:[%s1908 + $0x14] sm:$0xf]
      %v1915 = vld [vmem:[%s1908 + $0x18] sm:$0xf]
      %v1916 = vld [vmem:[%s1908 + $0x1c] sm:$0xf]
      %v1917 = vld [vmem:[%s1908 + $0x20] sm:$0xf]
      %v1918 = vld [vmem:[%s1908 + $0x24] sm:$0xf]
      %v1919 = vld [vmem:[%s1908 + $0x28] sm:$0xf]
      %v1920 = vld [vmem:[%s1908 + $0x2c] sm:$0xf]
      %v1921 = vld [vmem:[%s1908 + $0x30] sm:$0xf]
      %v1922 = vld [vmem:[%s1908 + $0x34] sm:$0xf]
      %v1923 = vld [vmem:[%s1908 + $0x38] sm:$0xf]
      %v1924 = vld [vmem:[%s1908 + $0x3c] sm:$0xf]
      %v1941 = vunpack.c.l.b16 %v1909
      %v1942 = vunpack.c.l.b16 %v1910
      %v1943 = vunpack.c.l.b16 %v1911
      %v1944 = vunpack.c.l.b16 %v1912
      %v1945 = vunpack.c.l.b16 %v1913
      %v1946 = vunpack.c.l.b16 %v1914
      %v1947 = vunpack.c.l.b16 %v1915
      %v1948 = vunpack.c.l.b16 %v1916
      %v1949 = vunpack.c.l.b16 %v1917
      %v1950 = vunpack.c.l.b16 %v1918
      %v1951 = vunpack.c.l.b16 %v1919
      %v1952 = vunpack.c.l.b16 %v1920
      %v1953 = vunpack.c.l.b16 %v1921
      %v1954 = vunpack.c.l.b16 %v1922
      %v1955 = vunpack.c.l.b16 %v1923
      %v1956 = vunpack.c.l.b16 %v1924
      %v1957 = vpack.c.b16 %v1942, %v1941
      %v1958 = vpack.c.b16 %v1944, %v1943
      %v1959 = vpack.c.b16 %v1946, %v1945
      %v1960 = vpack.c.b16 %v1948, %v1947
      %v1961 = vpack.c.b16 %v1950, %v1949
      %v1962 = vpack.c.b16 %v1952, %v1951
      %v1963 = vpack.c.b16 %v1954, %v1953
      %v1964 = vpack.c.b16 %v1956, %v1955
      %1973 = vmatpush.bf16.msra.mxu0 %v1964
      %1974 = vmatpush.bf16.msra.mxu0 %v1963
      %1975 = vmatpush.bf16.msra.mxu0 %v1962
      %1976 = vmatpush.bf16.msra.mxu0 %v1961
      %1977 = vmatpush.bf16.msra.mxu0 %v1960
      %1978 = vmatpush.bf16.msra.mxu0 %v1959
      %1979 = vmatpush.bf16.msra.mxu0 %v1958
      %1980 = vmatpush.bf16.msra.mxu0 %v1957
      %1981 = vmatmul.bf16.gmra.mxu0 %v1904
      %v1982 = vpop.f32.mrf.mxu0
      %v1983 = vadd.f32 0.0, %v1982
      %v1984 = vpop.f32.mrf.mxu0
      %v1985 = vadd.f32 0.0, %v1984
      %1986 = vmatmul.bf16.gmra.mxu0 %v1905
      %v1987 = vpop.f32.mrf.mxu0
      %v1988 = vadd.f32 0.0, %v1987
      %v1989 = vpop.f32.mrf.mxu0
      %v1990 = vadd.f32 0.0, %v1989
      %1991 = vmatmul.bf16.gmra.mxu0 %v1906
      %v1992 = vpop.f32.mrf.mxu0
      %v1993 = vadd.f32 0.0, %v1992
      %v1994 = vpop.f32.mrf.mxu0
      %v1995 = vadd.f32 0.0, %v1994
      %1996 = vmatmul.bf16.gmra.mxu0 %v1907
      %v1997 = vpop.f32.mrf.mxu0
      %v1998 = vadd.f32 0.0, %v1997
      %v1999 = vpop.f32.mrf.mxu0
      %v2000 = vadd.f32 0.0, %v1999
      %2001 = vdwg.mxu0
      %v2002 = vadd.f32 %v1877, %v1983
      %v2003 = vadd.f32 %v1879, %v1985
      %v2004 = vadd.f32 %v1882, %v1988
      %v2005 = vadd.f32 %v1884, %v1990
      %v2006 = vadd.f32 %v1887, %v1993
      %v2007 = vadd.f32 %v1889, %v1995
      %v2008 = vadd.f32 %v1892, %v1998
      %v2009 = vadd.f32 %v1894, %v2000
      %v2010 = vld [vmem:[%s1676] sm:$0xff]
      %v2011 = vld [vmem:[%s1676 + $0x10] sm:$0xff]
      %v2012 = vld [vmem:[%s1676 + $0x20] sm:$0xff]
      %v2013 = vld [vmem:[%s1676 + $0x30] sm:$0xff]
      %v2014 = vld [vmem:[%s1676 + $0x40] sm:$0xff]
      %v2015 = vld [vmem:[%s1676 + $0x50] sm:$0xff]
      %v2016 = vld [vmem:[%s1676 + $0x60] sm:$0xff]
      %v2017 = vld [vmem:[%s1676 + $0x70] sm:$0xff]
      %v2018 = vpack.c.bf16 %v2011, %v2010
      %v2019 = vpack.c.bf16 %v2013, %v2012
      %v2020 = vpack.c.bf16 %v2015, %v2014
      %v2021 = vpack.c.bf16 %v2017, %v2016
      %s2022 = scalar_lea.vmem %s6, 192
      %v2023 = vld [vmem:[%s2022] sm:$0xf]
      %v2024 = vld [vmem:[%s2022 + $0x4] sm:$0xf]
      %v2025 = vld [vmem:[%s2022 + $0x8] sm:$0xf]
      %v2026 = vld [vmem:[%s2022 + $0xc] sm:$0xf]
      %v2027 = vld [vmem:[%s2022 + $0x10] sm:$0xf]
      %v2028 = vld [vmem:[%s2022 + $0x14] sm:$0xf]
      %v2029 = vld [vmem:[%s2022 + $0x18] sm:$0xf]
      %v2030 = vld [vmem:[%s2022 + $0x1c] sm:$0xf]
      %v2031 = vld [vmem:[%s2022 + $0x20] sm:$0xf]
      %v2032 = vld [vmem:[%s2022 + $0x24] sm:$0xf]
      %v2033 = vld [vmem:[%s2022 + $0x28] sm:$0xf]
      %v2034 = vld [vmem:[%s2022 + $0x2c] sm:$0xf]
      %v2035 = vld [vmem:[%s2022 + $0x30] sm:$0xf]
      %v2036 = vld [vmem:[%s2022 + $0x34] sm:$0xf]
      %v2037 = vld [vmem:[%s2022 + $0x38] sm:$0xf]
      %v2038 = vld [vmem:[%s2022 + $0x3c] sm:$0xf]
      %v2055 = vunpack.c.l.b16 %v2023
      %v2056 = vunpack.c.l.b16 %v2024
      %v2057 = vunpack.c.l.b16 %v2025
      %v2058 = vunpack.c.l.b16 %v2026
      %v2059 = vunpack.c.l.b16 %v2027
      %v2060 = vunpack.c.l.b16 %v2028
      %v2061 = vunpack.c.l.b16 %v2029
      %v2062 = vunpack.c.l.b16 %v2030
      %v2063 = vunpack.c.l.b16 %v2031
      %v2064 = vunpack.c.l.b16 %v2032
      %v2065 = vunpack.c.l.b16 %v2033
      %v2066 = vunpack.c.l.b16 %v2034
      %v2067 = vunpack.c.l.b16 %v2035
      %v2068 = vunpack.c.l.b16 %v2036
      %v2069 = vunpack.c.l.b16 %v2037
      %v2070 = vunpack.c.l.b16 %v2038
      %v2071 = vpack.c.b16 %v2056, %v2055
      %v2072 = vpack.c.b16 %v2058, %v2057
      %v2073 = vpack.c.b16 %v2060, %v2059
      %v2074 = vpack.c.b16 %v2062, %v2061
      %v2075 = vpack.c.b16 %v2064, %v2063
      %v2076 = vpack.c.b16 %v2066, %v2065
      %v2077 = vpack.c.b16 %v2068, %v2067
      %v2078 = vpack.c.b16 %v2070, %v2069
      %2087 = vmatpush.bf16.msra.mxu0 %v2078
      %2088 = vmatpush.bf16.msra.mxu0 %v2077
      %2089 = vmatpush.bf16.msra.mxu0 %v2076
      %2090 = vmatpush.bf16.msra.mxu0 %v2075
      %2091 = vmatpush.bf16.msra.mxu0 %v2074
      %2092 = vmatpush.bf16.msra.mxu0 %v2073
      %2093 = vmatpush.bf16.msra.mxu0 %v2072
      %2094 = vmatpush.bf16.msra.mxu0 %v2071
      %2095 = vmatmul.bf16.gmra.mxu0 %v2018
      %v2096 = vpop.f32.mrf.mxu0
      %v2097 = vadd.f32 0.0, %v2096
      %v2098 = vpop.f32.mrf.mxu0
      %v2099 = vadd.f32 0.0, %v2098
      %2100 = vmatmul.bf16.gmra.mxu0 %v2019
      %v2101 = vpop.f32.mrf.mxu0
      %v2102 = vadd.f32 0.0, %v2101
      %v2103 = vpop.f32.mrf.mxu0
      %v2104 = vadd.f32 0.0, %v2103
      %2105 = vmatmul.bf16.gmra.mxu0 %v2020
      %v2106 = vpop.f32.mrf.mxu0
      %v2107 = vadd.f32 0.0, %v2106
      %v2108 = vpop.f32.mrf.mxu0
      %v2109 = vadd.f32 0.0, %v2108
      %2110 = vmatmul.bf16.gmra.mxu0 %v2021
      %v2111 = vpop.f32.mrf.mxu0
      %v2112 = vadd.f32 0.0, %v2111
      %v2113 = vpop.f32.mrf.mxu0
      %v2114 = vadd.f32 0.0, %v2113
      %2115 = vdwg.mxu0
      %v2116 = vadd.f32 %v2002, %v2097
      %v2117 = vadd.f32 %v2003, %v2099
      %v2118 = vadd.f32 %v2004, %v2102
      %v2119 = vadd.f32 %v2005, %v2104
      %v2120 = vadd.f32 %v2006, %v2107
      %v2121 = vadd.f32 %v2007, %v2109
      %v2122 = vadd.f32 %v2008, %v2112
      %v2123 = vadd.f32 %v2009, %v2114
      %v2124 = vld [vmem:[%s1676 + $0x1] sm:$0xff]
      %v2125 = vld [vmem:[%s1676 + $0x11] sm:$0xff]
      %v2126 = vld [vmem:[%s1676 + $0x21] sm:$0xff]
      %v2127 = vld [vmem:[%s1676 + $0x31] sm:$0xff]
      %v2128 = vld [vmem:[%s1676 + $0x41] sm:$0xff]
      %v2129 = vld [vmem:[%s1676 + $0x51] sm:$0xff]
      %v2130 = vld [vmem:[%s1676 + $0x61] sm:$0xff]
      %v2131 = vld [vmem:[%s1676 + $0x71] sm:$0xff]
      %v2132 = vpack.c.bf16 %v2125, %v2124
      %v2133 = vpack.c.bf16 %v2127, %v2126
      %v2134 = vpack.c.bf16 %v2129, %v2128
      %v2135 = vpack.c.bf16 %v2131, %v2130
      %s2136 = scalar_lea.vmem %s6, 256
      %v2137 = vld [vmem:[%s2136] sm:$0xf]
      %v2138 = vld [vmem:[%s2136 + $0x4] sm:$0xf]
      %v2139 = vld [vmem:[%s2136 + $0x8] sm:$0xf]
      %v2140 = vld [vmem:[%s2136 + $0xc] sm:$0xf]
      %v2141 = vld [vmem:[%s2136 + $0x10] sm:$0xf]
      %v2142 = vld [vmem:[%s2136 + $0x14] sm:$0xf]
      %v2143 = vld [vmem:[%s2136 + $0x18] sm:$0xf]
      %v2144 = vld [vmem:[%s2136 + $0x1c] sm:$0xf]
      %v2145 = vld [vmem:[%s2136 + $0x20] sm:$0xf]
      %v2146 = vld [vmem:[%s2136 + $0x24] sm:$0xf]
      %v2147 = vld [vmem:[%s2136 + $0x28] sm:$0xf]
      %v2148 = vld [vmem:[%s2136 + $0x2c] sm:$0xf]
      %v2149 = vld [vmem:[%s2136 + $0x30] sm:$0xf]
      %v2150 = vld [vmem:[%s2136 + $0x34] sm:$0xf]
      %v2151 = vld [vmem:[%s2136 + $0x38] sm:$0xf]
      %v2152 = vld [vmem:[%s2136 + $0x3c] sm:$0xf]
      %v2169 = vunpack.c.l.b16 %v2137
      %v2170 = vunpack.c.l.b16 %v2138
      %v2171 = vunpack.c.l.b16 %v2139
      %v2172 = vunpack.c.l.b16 %v2140
      %v2173 = vunpack.c.l.b16 %v2141
      %v2174 = vunpack.c.l.b16 %v2142
      %v2175 = vunpack.c.l.b16 %v2143
      %v2176 = vunpack.c.l.b16 %v2144
      %v2177 = vunpack.c.l.b16 %v2145
      %v2178 = vunpack.c.l.b16 %v2146
      %v2179 = vunpack.c.l.b16 %v2147
      %v2180 = vunpack.c.l.b16 %v2148
      %v2181 = vunpack.c.l.b16 %v2149
      %v2182 = vunpack.c.l.b16 %v2150
      %v2183 = vunpack.c.l.b16 %v2151
      %v2184 = vunpack.c.l.b16 %v2152
      %v2185 = vpack.c.b16 %v2170, %v2169
      %v2186 = vpack.c.b16 %v2172, %v2171
      %v2187 = vpack.c.b16 %v2174, %v2173
      %v2188 = vpack.c.b16 %v2176, %v2175
      %v2189 = vpack.c.b16 %v2178, %v2177
      %v2190 = vpack.c.b16 %v2180, %v2179
      %v2191 = vpack.c.b16 %v2182, %v2181
      %v2192 = vpack.c.b16 %v2184, %v2183
      %2201 = vmatpush.bf16.msra.mxu0 %v2192
      %2202 = vmatpush.bf16.msra.mxu0 %v2191
      %2203 = vmatpush.bf16.msra.mxu0 %v2190
      %2204 = vmatpush.bf16.msra.mxu0 %v2189
      %2205 = vmatpush.bf16.msra.mxu0 %v2188
      %2206 = vmatpush.bf16.msra.mxu0 %v2187
      %2207 = vmatpush.bf16.msra.mxu0 %v2186
      %2208 = vmatpush.bf16.msra.mxu0 %v2185
      %2209 = vmatmul.bf16.gmra.mxu0 %v2132
      %v2210 = vpop.f32.mrf.mxu0
      %v2211 = vadd.f32 0.0, %v2210
      %v2212 = vpop.f32.mrf.mxu0
      %v2213 = vadd.f32 0.0, %v2212
      %2214 = vmatmul.bf16.gmra.mxu0 %v2133
      %v2215 = vpop.f32.mrf.mxu0
      %v2216 = vadd.f32 0.0, %v2215
      %v2217 = vpop.f32.mrf.mxu0
      %v2218 = vadd.f32 0.0, %v2217
      %2219 = vmatmul.bf16.gmra.mxu0 %v2134
      %v2220 = vpop.f32.mrf.mxu0
      %v2221 = vadd.f32 0.0, %v2220
      %v2222 = vpop.f32.mrf.mxu0
      %v2223 = vadd.f32 0.0, %v2222
      %2224 = vmatmul.bf16.gmra.mxu0 %v2135
      %v2225 = vpop.f32.mrf.mxu0
      %v2226 = vadd.f32 0.0, %v2225
      %v2227 = vpop.f32.mrf.mxu0
      %v2228 = vadd.f32 0.0, %v2227
      %2229 = vdwg.mxu0
      %v2230 = vadd.f32 %v2116, %v2211
      %v2231 = vadd.f32 %v2117, %v2213
      %v2232 = vadd.f32 %v2118, %v2216
      %v2233 = vadd.f32 %v2119, %v2218
      %v2234 = vadd.f32 %v2120, %v2221
      %v2235 = vadd.f32 %v2121, %v2223
      %v2236 = vadd.f32 %v2122, %v2226
      %v2237 = vadd.f32 %v2123, %v2228
      %v2238 = vld [vmem:[%s1676 + $0x2] sm:$0xff]
      %v2239 = vld [vmem:[%s1676 + $0x12] sm:$0xff]
      %v2240 = vld [vmem:[%s1676 + $0x22] sm:$0xff]
      %v2241 = vld [vmem:[%s1676 + $0x32] sm:$0xff]
      %v2242 = vld [vmem:[%s1676 + $0x42] sm:$0xff]
      %v2243 = vld [vmem:[%s1676 + $0x52] sm:$0xff]
      %v2244 = vld [vmem:[%s1676 + $0x62] sm:$0xff]
      %v2245 = vld [vmem:[%s1676 + $0x72] sm:$0xff]
      %v2246 = vpack.c.bf16 %v2239, %v2238
      %v2247 = vpack.c.bf16 %v2241, %v2240
      %v2248 = vpack.c.bf16 %v2243, %v2242
      %v2249 = vpack.c.bf16 %v2245, %v2244
      %s2250 = scalar_lea.vmem %s6, 320
      %v2251 = vld [vmem:[%s2250] sm:$0xf]
      %v2252 = vld [vmem:[%s2250 + $0x4] sm:$0xf]
      %v2253 = vld [vmem:[%s2250 + $0x8] sm:$0xf]
      %v2254 = vld [vmem:[%s2250 + $0xc] sm:$0xf]
      %v2255 = vld [vmem:[%s2250 + $0x10] sm:$0xf]
      %v2256 = vld [vmem:[%s2250 + $0x14] sm:$0xf]
      %v2257 = vld [vmem:[%s2250 + $0x18] sm:$0xf]
      %v2258 = vld [vmem:[%s2250 + $0x1c] sm:$0xf]
      %v2259 = vld [vmem:[%s2250 + $0x20] sm:$0xf]
      %v2260 = vld [vmem:[%s2250 + $0x24] sm:$0xf]
      %v2261 = vld [vmem:[%s2250 + $0x28] sm:$0xf]
      %v2262 = vld [vmem:[%s2250 + $0x2c] sm:$0xf]
      %v2263 = vld [vmem:[%s2250 + $0x30] sm:$0xf]
      %v2264 = vld [vmem:[%s2250 + $0x34] sm:$0xf]
      %v2265 = vld [vmem:[%s2250 + $0x38] sm:$0xf]
      %v2266 = vld [vmem:[%s2250 + $0x3c] sm:$0xf]
      %v2283 = vunpack.c.l.b16 %v2251
      %v2284 = vunpack.c.l.b16 %v2252
      %v2285 = vunpack.c.l.b16 %v2253
      %v2286 = vunpack.c.l.b16 %v2254
      %v2287 = vunpack.c.l.b16 %v2255
      %v2288 = vunpack.c.l.b16 %v2256
      %v2289 = vunpack.c.l.b16 %v2257
      %v2290 = vunpack.c.l.b16 %v2258
      %v2291 = vunpack.c.l.b16 %v2259
      %v2292 = vunpack.c.l.b16 %v2260
      %v2293 = vunpack.c.l.b16 %v2261
      %v2294 = vunpack.c.l.b16 %v2262
      %v2295 = vunpack.c.l.b16 %v2263
      %v2296 = vunpack.c.l.b16 %v2264
      %v2297 = vunpack.c.l.b16 %v2265
      %v2298 = vunpack.c.l.b16 %v2266
      %v2299 = vpack.c.b16 %v2284, %v2283
      %v2300 = vpack.c.b16 %v2286, %v2285
      %v2301 = vpack.c.b16 %v2288, %v2287
      %v2302 = vpack.c.b16 %v2290, %v2289
      %v2303 = vpack.c.b16 %v2292, %v2291
      %v2304 = vpack.c.b16 %v2294, %v2293
      %v2305 = vpack.c.b16 %v2296, %v2295
      %v2306 = vpack.c.b16 %v2298, %v2297
      %2315 = vmatpush.bf16.msra.mxu0 %v2306
      %2316 = vmatpush.bf16.msra.mxu0 %v2305
      %2317 = vmatpush.bf16.msra.mxu0 %v2304
      %2318 = vmatpush.bf16.msra.mxu0 %v2303
      %2319 = vmatpush.bf16.msra.mxu0 %v2302
      %2320 = vmatpush.bf16.msra.mxu0 %v2301
      %2321 = vmatpush.bf16.msra.mxu0 %v2300
      %2322 = vmatpush.bf16.msra.mxu0 %v2299
      %2323 = vmatmul.bf16.gmra.mxu0 %v2246
      %v2324 = vpop.f32.mrf.mxu0
      %v2325 = vadd.f32 0.0, %v2324
      %v2326 = vpop.f32.mrf.mxu0
      %v2327 = vadd.f32 0.0, %v2326
      %2328 = vmatmul.bf16.gmra.mxu0 %v2247
      %v2329 = vpop.f32.mrf.mxu0
      %v2330 = vadd.f32 0.0, %v2329
      %v2331 = vpop.f32.mrf.mxu0
      %v2332 = vadd.f32 0.0, %v2331
      %2333 = vmatmul.bf16.gmra.mxu0 %v2248
      %v2334 = vpop.f32.mrf.mxu0
      %v2335 = vadd.f32 0.0, %v2334
      %v2336 = vpop.f32.mrf.mxu0
      %v2337 = vadd.f32 0.0, %v2336
      %2338 = vmatmul.bf16.gmra.mxu0 %v2249
      %v2339 = vpop.f32.mrf.mxu0
      %v2340 = vadd.f32 0.0, %v2339
      %v2341 = vpop.f32.mrf.mxu0
      %v2342 = vadd.f32 0.0, %v2341
      %2343 = vdwg.mxu0
      %v2344 = vadd.f32 %v2230, %v2325
      %v2345 = vadd.f32 %v2231, %v2327
      %v2346 = vadd.f32 %v2232, %v2330
      %v2347 = vadd.f32 %v2233, %v2332
      %v2348 = vadd.f32 %v2234, %v2335
      %v2349 = vadd.f32 %v2235, %v2337
      %v2350 = vadd.f32 %v2236, %v2340
      %v2351 = vadd.f32 %v2237, %v2342
      %s2352 = scalar_lea.vmem [#allocation3], 32
      %v2353 = vld [vmem:[%s2352] sm:$0xff]
      %v2354 = vld [vmem:[%s2352 + $0x10] sm:$0xff]
      %v2355 = vld [vmem:[%s2352 + $0x20] sm:$0xff]
      %v2356 = vld [vmem:[%s2352 + $0x30] sm:$0xff]
      %v2357 = vld [vmem:[%s2352 + $0x40] sm:$0xff]
      %v2358 = vld [vmem:[%s2352 + $0x50] sm:$0xff]
      %v2359 = vld [vmem:[%s2352 + $0x60] sm:$0xff]
      %v2360 = vld [vmem:[%s2352 + $0x70] sm:$0xff]
      %v2361 = vpack.c.bf16 %v2354, %v2353
      %v2362 = vpack.c.bf16 %v2356, %v2355
      %v2363 = vpack.c.bf16 %v2358, %v2357
      %v2364 = vpack.c.bf16 %v2360, %v2359
      %s2365 = scalar_lea.vmem %s6, 384
      %v2366 = vld [vmem:[%s2365] sm:$0xf]
      %v2367 = vld [vmem:[%s2365 + $0x4] sm:$0xf]
      %v2368 = vld [vmem:[%s2365 + $0x8] sm:$0xf]
      %v2369 = vld [vmem:[%s2365 + $0xc] sm:$0xf]
      %v2370 = vld [vmem:[%s2365 + $0x10] sm:$0xf]
      %v2371 = vld [vmem:[%s2365 + $0x14] sm:$0xf]
      %v2372 = vld [vmem:[%s2365 + $0x18] sm:$0xf]
      %v2373 = vld [vmem:[%s2365 + $0x1c] sm:$0xf]
      %v2374 = vld [vmem:[%s2365 + $0x20] sm:$0xf]
      %v2375 = vld [vmem:[%s2365 + $0x24] sm:$0xf]
      %v2376 = vld [vmem:[%s2365 + $0x28] sm:$0xf]
      %v2377 = vld [vmem:[%s2365 + $0x2c] sm:$0xf]
      %v2378 = vld [vmem:[%s2365 + $0x30] sm:$0xf]
      %v2379 = vld [vmem:[%s2365 + $0x34] sm:$0xf]
      %v2380 = vld [vmem:[%s2365 + $0x38] sm:$0xf]
      %v2381 = vld [vmem:[%s2365 + $0x3c] sm:$0xf]
      %v2398 = vunpack.c.l.b16 %v2366
      %v2399 = vunpack.c.l.b16 %v2367
      %v2400 = vunpack.c.l.b16 %v2368
      %v2401 = vunpack.c.l.b16 %v2369
      %v2402 = vunpack.c.l.b16 %v2370
      %v2403 = vunpack.c.l.b16 %v2371
      %v2404 = vunpack.c.l.b16 %v2372
      %v2405 = vunpack.c.l.b16 %v2373
      %v2406 = vunpack.c.l.b16 %v2374
      %v2407 = vunpack.c.l.b16 %v2375
      %v2408 = vunpack.c.l.b16 %v2376
      %v2409 = vunpack.c.l.b16 %v2377
      %v2410 = vunpack.c.l.b16 %v2378
      %v2411 = vunpack.c.l.b16 %v2379
      %v2412 = vunpack.c.l.b16 %v2380
      %v2413 = vunpack.c.l.b16 %v2381
      %v2414 = vpack.c.b16 %v2399, %v2398
      %v2415 = vpack.c.b16 %v2401, %v2400
      %v2416 = vpack.c.b16 %v2403, %v2402
      %v2417 = vpack.c.b16 %v2405, %v2404
      %v2418 = vpack.c.b16 %v2407, %v2406
      %v2419 = vpack.c.b16 %v2409, %v2408
      %v2420 = vpack.c.b16 %v2411, %v2410
      %v2421 = vpack.c.b16 %v2413, %v2412
      %2430 = vmatpush.bf16.msra.mxu0 %v2421
      %2431 = vmatpush.bf16.msra.mxu0 %v2420
      %2432 = vmatpush.bf16.msra.mxu0 %v2419
      %2433 = vmatpush.bf16.msra.mxu0 %v2418
      %2434 = vmatpush.bf16.msra.mxu0 %v2417
      %2435 = vmatpush.bf16.msra.mxu0 %v2416
      %2436 = vmatpush.bf16.msra.mxu0 %v2415
      %2437 = vmatpush.bf16.msra.mxu0 %v2414
      %2438 = vmatmul.bf16.gmra.mxu0 %v2361
      %v2439 = vpop.f32.mrf.mxu0
      %v2440 = vadd.f32 0.0, %v2439
      %v2441 = vpop.f32.mrf.mxu0
      %v2442 = vadd.f32 0.0, %v2441
      %2443 = vmatmul.bf16.gmra.mxu0 %v2362
      %v2444 = vpop.f32.mrf.mxu0
      %v2445 = vadd.f32 0.0, %v2444
      %v2446 = vpop.f32.mrf.mxu0
      %v2447 = vadd.f32 0.0, %v2446
      %2448 = vmatmul.bf16.gmra.mxu0 %v2363
      %v2449 = vpop.f32.mrf.mxu0
      %v2450 = vadd.f32 0.0, %v2449
      %v2451 = vpop.f32.mrf.mxu0
      %v2452 = vadd.f32 0.0, %v2451
      %2453 = vmatmul.bf16.gmra.mxu0 %v2364
      %v2454 = vpop.f32.mrf.mxu0
      %v2455 = vadd.f32 0.0, %v2454
      %v2456 = vpop.f32.mrf.mxu0
      %v2457 = vadd.f32 0.0, %v2456
      %2458 = vdwg.mxu0
      %v2459 = vadd.f32 %v2344, %v2440
      %v2460 = vadd.f32 %v2345, %v2442
      %v2461 = vadd.f32 %v2346, %v2445
      %v2462 = vadd.f32 %v2347, %v2447
      %v2463 = vadd.f32 %v2348, %v2450
      %v2464 = vadd.f32 %v2349, %v2452
      %v2465 = vadd.f32 %v2350, %v2455
      %v2466 = vadd.f32 %v2351, %v2457
      %v2467 = vld [vmem:[%s2352 + $0x1] sm:$0xff]
      %v2468 = vld [vmem:[%s2352 + $0x11] sm:$0xff]
      %v2469 = vld [vmem:[%s2352 + $0x21] sm:$0xff]
      %v2470 = vld [vmem:[%s2352 + $0x31] sm:$0xff]
      %v2471 = vld [vmem:[%s2352 + $0x41] sm:$0xff]
      %v2472 = vld [vmem:[%s2352 + $0x51] sm:$0xff]
      %v2473 = vld [vmem:[%s2352 + $0x61] sm:$0xff]
      %v2474 = vld [vmem:[%s2352 + $0x71] sm:$0xff]
      %v2475 = vpack.c.bf16 %v2468, %v2467
      %v2476 = vpack.c.bf16 %v2470, %v2469
      %v2477 = vpack.c.bf16 %v2472, %v2471
      %v2478 = vpack.c.bf16 %v2474, %v2473
      %s2479 = scalar_lea.vmem %s6, 448
      %v2480 = vld [vmem:[%s2479] sm:$0xf]
      %v2481 = vld [vmem:[%s2479 + $0x4] sm:$0xf]
      %v2482 = vld [vmem:[%s2479 + $0x8] sm:$0xf]
      %v2483 = vld [vmem:[%s2479 + $0xc] sm:$0xf]
      %v2484 = vld [vmem:[%s2479 + $0x10] sm:$0xf]
      %v2485 = vld [vmem:[%s2479 + $0x14] sm:$0xf]
      %v2486 = vld [vmem:[%s2479 + $0x18] sm:$0xf]
      %v2487 = vld [vmem:[%s2479 + $0x1c] sm:$0xf]
      %v2488 = vld [vmem:[%s2479 + $0x20] sm:$0xf]
      %v2489 = vld [vmem:[%s2479 + $0x24] sm:$0xf]
      %v2490 = vld [vmem:[%s2479 + $0x28] sm:$0xf]
      %v2491 = vld [vmem:[%s2479 + $0x2c] sm:$0xf]
      %v2492 = vld [vmem:[%s2479 + $0x30] sm:$0xf]
      %v2493 = vld [vmem:[%s2479 + $0x34] sm:$0xf]
      %v2494 = vld [vmem:[%s2479 + $0x38] sm:$0xf]
      %v2495 = vld [vmem:[%s2479 + $0x3c] sm:$0xf]
      %v2512 = vunpack.c.l.b16 %v2480
      %v2513 = vunpack.c.l.b16 %v2481
      %v2514 = vunpack.c.l.b16 %v2482
      %v2515 = vunpack.c.l.b16 %v2483
      %v2516 = vunpack.c.l.b16 %v2484
      %v2517 = vunpack.c.l.b16 %v2485
      %v2518 = vunpack.c.l.b16 %v2486
      %v2519 = vunpack.c.l.b16 %v2487
      %v2520 = vunpack.c.l.b16 %v2488
      %v2521 = vunpack.c.l.b16 %v2489
      %v2522 = vunpack.c.l.b16 %v2490
      %v2523 = vunpack.c.l.b16 %v2491
      %v2524 = vunpack.c.l.b16 %v2492
      %v2525 = vunpack.c.l.b16 %v2493
      %v2526 = vunpack.c.l.b16 %v2494
      %v2527 = vunpack.c.l.b16 %v2495
      %v2528 = vpack.c.b16 %v2513, %v2512
      %v2529 = vpack.c.b16 %v2515, %v2514
      %v2530 = vpack.c.b16 %v2517, %v2516
      %v2531 = vpack.c.b16 %v2519, %v2518
      %v2532 = vpack.c.b16 %v2521, %v2520
      %v2533 = vpack.c.b16 %v2523, %v2522
      %v2534 = vpack.c.b16 %v2525, %v2524
      %v2535 = vpack.c.b16 %v2527, %v2526
      %2544 = vmatpush.bf16.msra.mxu0 %v2535
      %2545 = vmatpush.bf16.msra.mxu0 %v2534
      %2546 = vmatpush.bf16.msra.mxu0 %v2533
      %2547 = vmatpush.bf16.msra.mxu0 %v2532
      %2548 = vmatpush.bf16.msra.mxu0 %v2531
      %2549 = vmatpush.bf16.msra.mxu0 %v2530
      %2550 = vmatpush.bf16.msra.mxu0 %v2529
      %2551 = vmatpush.bf16.msra.mxu0 %v2528
      %2552 = vmatmul.bf16.gmra.mxu0 %v2475
      %v2553 = vpop.f32.mrf.mxu0
      %v2554 = vadd.f32 0.0, %v2553
      %v2555 = vpop.f32.mrf.mxu0
      %v2556 = vadd.f32 0.0, %v2555
      %2557 = vmatmul.bf16.gmra.mxu0 %v2476
      %v2558 = vpop.f32.mrf.mxu0
      %v2559 = vadd.f32 0.0, %v2558
      %v2560 = vpop.f32.mrf.mxu0
      %v2561 = vadd.f32 0.0, %v2560
      %2562 = vmatmul.bf16.gmra.mxu0 %v2477
      %v2563 = vpop.f32.mrf.mxu0
      %v2564 = vadd.f32 0.0, %v2563
      %v2565 = vpop.f32.mrf.mxu0
      %v2566 = vadd.f32 0.0, %v2565
      %2567 = vmatmul.bf16.gmra.mxu0 %v2478
      %v2568 = vpop.f32.mrf.mxu0
      %v2569 = vadd.f32 0.0, %v2568
      %v2570 = vpop.f32.mrf.mxu0
      %v2571 = vadd.f32 0.0, %v2570
      %2572 = vdwg.mxu0
      %v2573 = vadd.f32 %v2459, %v2554
      %v2574 = vadd.f32 %v2460, %v2556
      %v2575 = vadd.f32 %v2461, %v2559
      %v2576 = vadd.f32 %v2462, %v2561
      %v2577 = vadd.f32 %v2463, %v2564
      %v2578 = vadd.f32 %v2464, %v2566
      %v2579 = vadd.f32 %v2465, %v2569
      %v2580 = vadd.f32 %v2466, %v2571
      %v2581 = vld [vmem:[%s2352 + $0x2] sm:$0xff]
      %v2582 = vld [vmem:[%s2352 + $0x12] sm:$0xff]
      %v2583 = vld [vmem:[%s2352 + $0x22] sm:$0xff]
      %v2584 = vld [vmem:[%s2352 + $0x32] sm:$0xff]
      %v2585 = vld [vmem:[%s2352 + $0x42] sm:$0xff]
      %v2586 = vld [vmem:[%s2352 + $0x52] sm:$0xff]
      %v2587 = vld [vmem:[%s2352 + $0x62] sm:$0xff]
      %v2588 = vld [vmem:[%s2352 + $0x72] sm:$0xff]
      %v2589 = vpack.c.bf16 %v2582, %v2581
      %v2590 = vpack.c.bf16 %v2584, %v2583
      %v2591 = vpack.c.bf16 %v2586, %v2585
      %v2592 = vpack.c.bf16 %v2588, %v2587
      %s2593 = scalar_lea.vmem %s6, 512
      %v2594 = vld [vmem:[%s2593] sm:$0xf]
      %v2595 = vld [vmem:[%s2593 + $0x4] sm:$0xf]
      %v2596 = vld [vmem:[%s2593 + $0x8] sm:$0xf]
      %v2597 = vld [vmem:[%s2593 + $0xc] sm:$0xf]
      %v2598 = vld [vmem:[%s2593 + $0x10] sm:$0xf]
      %v2599 = vld [vmem:[%s2593 + $0x14] sm:$0xf]
      %v2600 = vld [vmem:[%s2593 + $0x18] sm:$0xf]
      %v2601 = vld [vmem:[%s2593 + $0x1c] sm:$0xf]
      %v2602 = vld [vmem:[%s2593 + $0x20] sm:$0xf]
      %v2603 = vld [vmem:[%s2593 + $0x24] sm:$0xf]
      %v2604 = vld [vmem:[%s2593 + $0x28] sm:$0xf]
      %v2605 = vld [vmem:[%s2593 + $0x2c] sm:$0xf]
      %v2606 = vld [vmem:[%s2593 + $0x30] sm:$0xf]
      %v2607 = vld [vmem:[%s2593 + $0x34] sm:$0xf]
      %v2608 = vld [vmem:[%s2593 + $0x38] sm:$0xf]
      %v2609 = vld [vmem:[%s2593 + $0x3c] sm:$0xf]
      %v2626 = vunpack.c.l.b16 %v2594
      %v2627 = vunpack.c.l.b16 %v2595
      %v2628 = vunpack.c.l.b16 %v2596
      %v2629 = vunpack.c.l.b16 %v2597
      %v2630 = vunpack.c.l.b16 %v2598
      %v2631 = vunpack.c.l.b16 %v2599
      %v2632 = vunpack.c.l.b16 %v2600
      %v2633 = vunpack.c.l.b16 %v2601
      %v2634 = vunpack.c.l.b16 %v2602
      %v2635 = vunpack.c.l.b16 %v2603
      %v2636 = vunpack.c.l.b16 %v2604
      %v2637 = vunpack.c.l.b16 %v2605
      %v2638 = vunpack.c.l.b16 %v2606
      %v2639 = vunpack.c.l.b16 %v2607
      %v2640 = vunpack.c.l.b16 %v2608
      %v2641 = vunpack.c.l.b16 %v2609
      %v2642 = vpack.c.b16 %v2627, %v2626
      %v2643 = vpack.c.b16 %v2629, %v2628
      %v2644 = vpack.c.b16 %v2631, %v2630
      %v2645 = vpack.c.b16 %v2633, %v2632
      %v2646 = vpack.c.b16 %v2635, %v2634
      %v2647 = vpack.c.b16 %v2637, %v2636
      %v2648 = vpack.c.b16 %v2639, %v2638
      %v2649 = vpack.c.b16 %v2641, %v2640
      %2658 = vmatpush.bf16.msra.mxu0 %v2649
      %2659 = vmatpush.bf16.msra.mxu0 %v2648
      %2660 = vmatpush.bf16.msra.mxu0 %v2647
      %2661 = vmatpush.bf16.msra.mxu0 %v2646
      %2662 = vmatpush.bf16.msra.mxu0 %v2645
      %2663 = vmatpush.bf16.msra.mxu0 %v2644
      %2664 = vmatpush.bf16.msra.mxu0 %v2643
      %2665 = vmatpush.bf16.msra.mxu0 %v2642
      %2666 = vmatmul.bf16.gmra.mxu0 %v2589
      %v2667 = vpop.f32.mrf.mxu0
      %v2668 = vadd.f32 0.0, %v2667
      %v2669 = vpop.f32.mrf.mxu0
      %v2670 = vadd.f32 0.0, %v2669
      %2671 = vmatmul.bf16.gmra.mxu0 %v2590
      %v2672 = vpop.f32.mrf.mxu0
      %v2673 = vadd.f32 0.0, %v2672
      %v2674 = vpop.f32.mrf.mxu0
      %v2675 = vadd.f32 0.0, %v2674
      %2676 = vmatmul.bf16.gmra.mxu0 %v2591
      %v2677 = vpop.f32.mrf.mxu0
      %v2678 = vadd.f32 0.0, %v2677
      %v2679 = vpop.f32.mrf.mxu0
      %v2680 = vadd.f32 0.0, %v2679
      %2681 = vmatmul.bf16.gmra.mxu0 %v2592
      %v2682 = vpop.f32.mrf.mxu0
      %v2683 = vadd.f32 0.0, %v2682
      %v2684 = vpop.f32.mrf.mxu0
      %v2685 = vadd.f32 0.0, %v2684
      %2686 = vdwg.mxu0
      %v2687 = vadd.f32 %v2573, %v2668
      %v2688 = vadd.f32 %v2574, %v2670
      %v2689 = vadd.f32 %v2575, %v2673
      %v2690 = vadd.f32 %v2576, %v2675
      %v2691 = vadd.f32 %v2577, %v2678
      %v2692 = vadd.f32 %v2578, %v2680
      %v2693 = vadd.f32 %v2579, %v2683
      %v2694 = vadd.f32 %v2580, %v2685
      %v2695 = vld [vmem:[%s605] sm:$0xff]
      %v2696 = vld [vmem:[%s605 + $0x10] sm:$0xff]
      %v2697 = vld [vmem:[%s605 + $0x20] sm:$0xff]
      %v2698 = vld [vmem:[%s605 + $0x30] sm:$0xff]
      %v2699 = vld [vmem:[%s605 + $0x40] sm:$0xff]
      %v2700 = vld [vmem:[%s605 + $0x50] sm:$0xff]
      %v2701 = vld [vmem:[%s605 + $0x60] sm:$0xff]
      %v2702 = vld [vmem:[%s605 + $0x70] sm:$0xff]
      %v2703 = vpack.c.bf16 %v2696, %v2695
      %v2704 = vpack.c.bf16 %v2698, %v2697
      %v2705 = vpack.c.bf16 %v2700, %v2699
      %v2706 = vpack.c.bf16 %v2702, %v2701
      %v2707 = vld [vmem:[%s7] sm:$0xf]
      %v2708 = vld [vmem:[%s7 + $0x4] sm:$0xf]
      %v2709 = vld [vmem:[%s7 + $0x8] sm:$0xf]
      %v2710 = vld [vmem:[%s7 + $0xc] sm:$0xf]
      %v2711 = vld [vmem:[%s7 + $0x10] sm:$0xf]
      %v2712 = vld [vmem:[%s7 + $0x14] sm:$0xf]
      %v2713 = vld [vmem:[%s7 + $0x18] sm:$0xf]
      %v2714 = vld [vmem:[%s7 + $0x1c] sm:$0xf]
      %v2715 = vld [vmem:[%s7 + $0x20] sm:$0xf]
      %v2716 = vld [vmem:[%s7 + $0x24] sm:$0xf]
      %v2717 = vld [vmem:[%s7 + $0x28] sm:$0xf]
      %v2718 = vld [vmem:[%s7 + $0x2c] sm:$0xf]
      %v2719 = vld [vmem:[%s7 + $0x30] sm:$0xf]
      %v2720 = vld [vmem:[%s7 + $0x34] sm:$0xf]
      %v2721 = vld [vmem:[%s7 + $0x38] sm:$0xf]
      %v2722 = vld [vmem:[%s7 + $0x3c] sm:$0xf]
      %v2739 = vunpack.c.l.b16 %v2707
      %v2740 = vunpack.c.l.b16 %v2708
      %v2741 = vunpack.c.l.b16 %v2709
      %v2742 = vunpack.c.l.b16 %v2710
      %v2743 = vunpack.c.l.b16 %v2711
      %v2744 = vunpack.c.l.b16 %v2712
      %v2745 = vunpack.c.l.b16 %v2713
      %v2746 = vunpack.c.l.b16 %v2714
      %v2747 = vunpack.c.l.b16 %v2715
      %v2748 = vunpack.c.l.b16 %v2716
      %v2749 = vunpack.c.l.b16 %v2717
      %v2750 = vunpack.c.l.b16 %v2718
      %v2751 = vunpack.c.l.b16 %v2719
      %v2752 = vunpack.c.l.b16 %v2720
      %v2753 = vunpack.c.l.b16 %v2721
      %v2754 = vunpack.c.l.b16 %v2722
      %v2755 = vpack.c.b16 %v2740, %v2739
      %v2756 = vpack.c.b16 %v2742, %v2741
      %v2757 = vpack.c.b16 %v2744, %v2743
      %v2758 = vpack.c.b16 %v2746, %v2745
      %v2759 = vpack.c.b16 %v2748, %v2747
      %v2760 = vpack.c.b16 %v2750, %v2749
      %v2761 = vpack.c.b16 %v2752, %v2751
      %v2762 = vpack.c.b16 %v2754, %v2753
      %2771 = vmatpush.bf16.msra.mxu0 %v2762
      %2772 = vmatpush.bf16.msra.mxu0 %v2761
      %2773 = vmatpush.bf16.msra.mxu0 %v2760
      %2774 = vmatpush.bf16.msra.mxu0 %v2759
      %2775 = vmatpush.bf16.msra.mxu0 %v2758
      %2776 = vmatpush.bf16.msra.mxu0 %v2757
      %2777 = vmatpush.bf16.msra.mxu0 %v2756
      %2778 = vmatpush.bf16.msra.mxu0 %v2755
      %2779 = vmatmul.bf16.gmra.mxu0 %v2703
      %v2780 = vpop.f32.mrf.mxu0
      %v2781 = vadd.f32 0.0, %v2780
      %v2782 = vpop.f32.mrf.mxu0
      %v2783 = vadd.f32 0.0, %v2782
      %2784 = vmatmul.bf16.gmra.mxu0 %v2704
      %v2785 = vpop.f32.mrf.mxu0
      %v2786 = vadd.f32 0.0, %v2785
      %v2787 = vpop.f32.mrf.mxu0
      %v2788 = vadd.f32 0.0, %v2787
      %2789 = vmatmul.bf16.gmra.mxu0 %v2705
      %v2790 = vpop.f32.mrf.mxu0
      %v2791 = vadd.f32 0.0, %v2790
      %v2792 = vpop.f32.mrf.mxu0
      %v2793 = vadd.f32 0.0, %v2792
      %2794 = vmatmul.bf16.gmra.mxu0 %v2706
      %v2795 = vpop.f32.mrf.mxu0
      %v2796 = vadd.f32 0.0, %v2795
      %v2797 = vpop.f32.mrf.mxu0
      %v2798 = vadd.f32 0.0, %v2797
      %2799 = vdwg.mxu0
      %v2800 = vadd.f32 %v2687, %v2781
      %v2801 = vadd.f32 %v2688, %v2783
      %v2802 = vadd.f32 %v2689, %v2786
      %v2803 = vadd.f32 %v2690, %v2788
      %v2804 = vadd.f32 %v2691, %v2791
      %v2805 = vadd.f32 %v2692, %v2793
      %v2806 = vadd.f32 %v2693, %v2796
      %v2807 = vadd.f32 %v2694, %v2798
      %v2808 = vpack.c.bf16 %v2800, %v2800
      %v2809 = vpack.c.bf16 %v2801, %v2801
      %v2810 = vpack.c.bf16 %v2802, %v2802
      %v2811 = vpack.c.bf16 %v2803, %v2803
      %v2812 = vpack.c.bf16 %v2804, %v2804
      %v2813 = vpack.c.bf16 %v2805, %v2805
      %v2814 = vpack.c.bf16 %v2806, %v2806
      %v2815 = vpack.c.bf16 %v2807, %v2807
      %2816 = vst [vmem:[%s310] sm:$0xf] %v2808
      %2817 = vst [vmem:[%s310 + $0x4] sm:$0xf] %v2809
      %2818 = vst [vmem:[%s310 + $0x8] sm:$0xf] %v2810
      %2819 = vst [vmem:[%s310 + $0xc] sm:$0xf] %v2811
      %2820 = vst [vmem:[%s310 + $0x10] sm:$0xf] %v2812
      %2821 = vst [vmem:[%s310 + $0x14] sm:$0xf] %v2813
      %2822 = vst [vmem:[%s310 + $0x18] sm:$0xf] %v2814
      %2823 = vst [vmem:[%s310 + $0x1c] sm:$0xf] %v2815
      %p2824 = scmp.lt.s32.totalorder %s19, 1
      %s2825 = scalar_select %p2824, %s19, 1
      %s2826 = smul.addr %s2825, 8
      %s2827 = smul.addr %s2826, 4
      %s2828 = scalar_lea.vmem %s8, %s2827
      // Predicated region
      $region53: #{network_block_forward.2} parent=51 // pred_check
        %p2829 = pneg %p210
      $region54: #{network_block_forward.2} parent=51 // pred_check_branch
        %2831 = sbr.rel (%p2829) target = $region56
      $region55: #{network_block_forward.2} parent=51 // pred_region
        _
      $region56: #{network_block_forward.2} parent=51 // pred_fallthru
        _
    $region52: #{network_block_forward.2} parent=5 // pred_fallthru
      _
    %p2832 = scmp.le.s32.totalorder 2, %s14
    // Predicated region
    $region57: #{network_block_forward.2} parent=5 // pred_check
      %p2833 = pneg %p2832
    $region58: #{network_block_forward.2} parent=5 // pred_check_branch
      %2835 = sbr.rel (%p2833) target = $region60
    $region59: #{network_block_forward.2} parent=5 // pred_region
      %s2836 = ssub.s32 %s14, 2
      // Predicated region
      $region61: #{network_block_forward.2} parent=59 // pred_check
        %p2837 = pneg %p216
      $region62: #{network_block_forward.2} parent=59 // pred_check_branch
        %2839 = sbr.rel (%p2837) target = $region64
      $region63: #{network_block_forward.2} parent=59 // pred_region
        %p2840 = scmp.lt.s32.totalorder %s20, 1
        %s2841 = scalar_select %p2840, %s20, 1
        %s2842 = smul.addr %s2841, 8
        %s2843 = smul.addr %s2842, 4
        %s2844 = scalar_lea.vmem %s8, %s2843
      $region64: #{network_block_forward.2} parent=59 // pred_fallthru
        _
    $region60: #{network_block_forward.2} parent=5 // pred_fallthru
      _
  $region6: #{network_block_forward.2} parent=0 // loop_footer
    %s18 = sadd.s32 1, %s14
  $region7: #{network_block_forward.2} parent=0 // loop_footer_branch
    %13 = sbr.rel target = $region3
  $region8: #{network_block_forward.2} parent=0 // loop_exit
    _

</llo_original>
